<compile_context>
chip_gen: v6e
topology: v6e:2x2x1
jax: 0.10.0
libtpu: 0.0.40
codegen_flags: <defaults>
</compile_context>

<pallas_src>
import functools
import math

import jax
import jax.numpy as jnp
from jax import lax
from jax.experimental import pallas as pl
from jax.experimental.pallas import tpu as pltpu


def _layernorm(x, scale, bias, eps=1e-6):
    # x: (N, D), scale/bias: (1, D). Matches torch.nn.LayerNorm (biased var).
    mean = jnp.mean(x, axis=-1, keepdims=True)
    xc = x - mean
    var = jnp.mean(xc * xc, axis=-1, keepdims=True)
    inv = lax.rsqrt(var + eps)
    return xc * inv * scale + bias


def _gelu_exact(x):
    # torch.nn.GELU() default (approximate='none'): 0.5*x*(1+erf(x/sqrt(2)))
    return 0.5 * x * (1.0 + lax.erf(x * (1.0 / math.sqrt(2.0))))


def block_kernel(x_ref,
                 ln1_s_ref, ln1_b_ref,
                 wqkv_ref, bqkv_ref, wo_ref, bo_ref,
                 ln2_s_ref, ln2_b_ref,
                 w1_ref, b1_ref, w2_ref, b2_ref,
                 o_ref, *, heads):
    Bt, S, D = x_ref.shape
    hd = D // heads
    N = Bt * S

    # (Bt, S, D) -> (Bt*S, D): leading/sublane merge only (S multiple of 8 or Bt==1).
    x = x_ref[...].reshape(N, D)

    # ---- attention branch (pre-norm) ----
    xn = _layernorm(x, ln1_s_ref[...], ln1_b_ref[...])

    # Fused QKV projection: one bf16 MXU matmul, f32 accumulation.
    # NOTE: 1/sqrt(hd) is already folded into the Q columns of wqkv/bqkv.
    qkv = jnp.dot(xn.astype(jnp.bfloat16), wqkv_ref[...],
                  preferred_element_type=jnp.float32) + bqkv_ref[...]      # (N, 3D)

    # Build (heads*Bt, S, hd) batched operands.  Lane slices per head are the
    # only relayout; the stack is along a new leading axis (cheap).
    def split_heads(base):
        parts = [qkv[:, base + h * hd: base + (h + 1) * hd].reshape(Bt, S, hd)
                 for h in range(heads)]
        return jnp.concatenate(parts, axis=0).astype(jnp.bfloat16)         # (H*Bt, S, hd)

    q3 = split_heads(0)
    k3 = split_heads(D)
    v3 = split_heads(2 * D)

    # Single batched dot_general over all (head, batch) pairs.
    scores = jnp.einsum('bqd,bkd->bqk', q3, k3,
                        preferred_element_type=jnp.float32)                # (H*Bt, S, S)
    m = jnp.max(scores, axis=-1, keepdims=True)
    p = jnp.exp(scores - m)                                                # unnormalized
    denom = jnp.sum(p, axis=-1, keepdims=True)                             # (H*Bt, S, 1)
    # Deferred softmax normalization: PV matmul on unnormalized p, then scale
    # the (H*Bt, S, hd) context (S/hd fewer multiplies than scaling p).
    ctx = jnp.einsum('bqk,bkd->bqd', p.astype(jnp.bfloat16), v3,
                     preferred_element_type=jnp.float32)                   # (H*Bt, S, hd)
    ctx = ctx * pl.reciprocal(denom, approx=True)                          # EUP divide

    # Merge heads back along lanes -> (N, D) and do ONE K=D output projection
    # (replaces the H-way per-head matmul loop + f32 accumulator).
    ctx2 = jnp.concatenate(
        [ctx[h * Bt:(h + 1) * Bt].reshape(N, hd) for h in range(heads)],
        axis=-1).astype(jnp.bfloat16)                                      # (N, D)
    attn_out = jnp.dot(ctx2, wo_ref[...],
                       preferred_element_type=jnp.float32) + bo_ref[...]
    x1 = x + attn_out                                                      # residual 1

    # ---- MLP branch (pre-norm) ----
    xn2 = _layernorm(x1, ln2_s_ref[...], ln2_b_ref[...])
    h1 = jnp.dot(xn2.astype(jnp.bfloat16), w1_ref[...],
                 preferred_element_type=jnp.float32) + b1_ref[...]
    h1 = _gelu_exact(h1)
    # TODO(synk): dropout omitted (identity at inference / dropout_rate=0).
    h2 = jnp.dot(h1.astype(jnp.bfloat16), w2_ref[...],
                 preferred_element_type=jnp.float32) + b2_ref[...]
    o_ref[...] = (x1 + h2).reshape(Bt, S, D)                               # residual 2


def _vmem_capacity_bytes():
    """Physical VMEM of the running chip; conservative default if unknown."""
    try:
        info = pltpu.get_tpu_info()
        cap = getattr(info, "vmem_capacity_bytes", None)
        if cap:
            return int(cap)
    except Exception:
        pass
    return 64 << 20   # v7x per-TensorCore size (most restrictive)


def _pick_batch_tile(B, S, D, heads, M, act_budget_bytes):
    """Largest Bt dividing B whose per-step activations fit the VMEM budget.

    Prefers an even grid (v7x megacore / both TCs loaded).  Keeps the
    in-kernel (Bt, S, D) -> (Bt*S, D) reshape layout-trivial (S % 8 == 0 or
    Bt == 1).
    """
    if B <= 1:
        return max(B, 1)
    if S % 8 != 0:
        return 1

    def act_bytes(bt):
        n = bt * S
        return 4 * (2 * heads * bt * S * S     # scores + p (f32)
                    + n * 3 * D                # qkv
                    + n * M                    # h1
                    + 8 * n * D)               # x, xn, ctx, attn_out, x1, xn2, h2, out

    fitting = [bt for bt in range(1, B + 1)
               if B % bt == 0 and act_bytes(bt) <= act_budget_bytes]
    if not fitting:
        return 1
    even_grid = [bt for bt in fitting if (B // bt) % 2 == 0]
    return max(even_grid) if even_grid else max(fitting)


def block_forward(x, params, *, heads):
    B, S, D = x.shape
    assert D % heads == 0, "dim must be divisible by heads"
    hd = D // heads
    M = params["w1"].shape[1]
    scale = 1.0 / math.sqrt(hd)

    # Fuse Q/K/V weights -> (D, 3D); fold the attention scale into the Q
    # columns; store matmul weights as bf16 (half the DMA / VMEM footprint,
    # f32 accumulation inside the kernel keeps accuracy).
    wdt = jnp.bfloat16
    wqkv = jnp.concatenate([params["wq"] * scale, params["wk"], params["wv"]],
                           axis=1).astype(wdt)
    bqkv = jnp.concatenate([params["bq"] * scale, params["bk"], params["bv"]],
                           axis=1)
    wo = params["wo"].astype(wdt)
    w1 = params["w1"].astype(wdt)
    w2 = params["w2"].astype(wdt)

    vmem_cap = _vmem_capacity_bytes()
    act_budget = max(vmem_cap // 4, 4 << 20)          # ~16 MiB on v7x, ~32 MiB on v5e/v6e
    Bt = _pick_batch_tile(B, S, D, heads, M, act_budget)
    assert S % 8 == 0 or Bt == 1, "non-trivial reshape would need S % 8 == 0"
    grid = (B // Bt,)

    operands = (x,
                params["ln1_s"], params["ln1_b"],
                wqkv, bqkv, wo, params["bo"],
                params["ln2_s"], params["ln2_b"],
                w1, params["b1"], w2, params["b2"])

    # Scoped-VMEM budget: resident weights (covering the double-buffered
    # fallback), double-buffered x/out tiles, and in-kernel temporaries —
    # capped below the physical VMEM of the running chip (64 MiB on v7x).
    nbytes = lambda a: int(a.size) * a.dtype.itemsize
    weight_bytes = sum(nbytes(a) for a in operands[1:])
    xio_bytes = 2 * (2 * Bt * S * D * 4)
    act_bytes = 4 * (2 * heads * Bt * S * S + Bt * S * (3 * D + M + 8 * D))
    want = 2 * weight_bytes + xio_bytes + 2 * act_bytes + (4 << 20)
    hard_cap = int(0.9 * vmem_cap)
    vmem_limit = int(max(min(want, hard_cap), min(32 << 20, hard_cap)))

    kernel = functools.partial(block_kernel, heads=heads)

    def build(single_buffer_weights):
        if single_buffer_weights:
            # Constant index map + Buffered(1): one resident VMEM copy per weight.
            wspec = lambda shape: pl.BlockSpec(
                shape, lambda b: tuple(0 for _ in shape),
                pipeline_mode=pl.Buffered(1))
        else:
            wspec = lambda shape: pl.BlockSpec(
                shape, lambda b: tuple(0 for _ in shape))

        in_specs = [
            pl.BlockSpec((Bt, S, D), lambda b: (b, 0, 0)),   # x
            wspec((1, D)), wspec((1, D)),                    # ln1 scale / bias
            wspec((D, 3 * D)), wspec((1, 3 * D)),            # fused Wqkv, bqkv
            wspec((D, D)), wspec((1, D)),                    # Wo, bo
            wspec((1, D)), wspec((1, D)),                    # ln2 scale / bias
            wspec((D, M)), wspec((1, M)),                    # W1, b1
            wspec((M, D)), wspec((1, D)),                    # W2, b2
        ]
        return pl.pallas_call(
            kernel,
            out_shape=jax.ShapeDtypeStruct((B, S, D), jnp.float32),
            grid=grid,
            in_specs=in_specs,
            out_specs=pl.BlockSpec((Bt, S, D), lambda b: (b, 0, 0)),
            compiler_params=pltpu.CompilerParams(
                dimension_semantics=("parallel",),
                vmem_limit_bytes=vmem_limit),
        )

    try:
        return build(True)(*operands)
    except Exception:
        # TODO(synk): fall back to default double-buffered weights if this JAX
        # version does not honor pipeline_mode=pl.Buffered(1).
        return build(False)(*operands)


def reference_forward(x, params, *, heads):
    """Pure-JAX f32 reference mirroring the PyTorch Block forward."""
    def ln(y, s, b):
        mu = jnp.mean(y, axis=-1, keepdims=True)
        var = jnp.mean((y - mu) ** 2, axis=-1, keepdims=True)
        return (y - mu) / jnp.sqrt(var + 1e-6) * s + b

    B, S, D = x.shape
    hd = D // heads
    xn = ln(x, params["ln1_s"], params["ln1_b"])
    q = xn @ params["wq"] + params["bq"]
    k = xn @ params["wk"] + params["bk"]
    v = xn @ params["wv"] + params["bv"]
    q = q.reshape(B, S, heads, hd).transpose(0, 2, 1, 3)
    k = k.reshape(B, S, heads, hd).transpose(0, 2, 1, 3)
    v = v.reshape(B, S, heads, hd).transpose(0, 2, 1, 3)
    scores = jnp.einsum("bhqd,bhkd->bhqk", q, k) / math.sqrt(hd)
    attn = jax.nn.softmax(scores, axis=-1)
    ctx = jnp.einsum("bhqk,bhkd->bhqd", attn, v)
    ctx = ctx.transpose(0, 2, 1, 3).reshape(B, S, D)
    x1 = x + (ctx @ params["wo"] + params["bo"])
    xn2 = ln(x1, params["ln2_s"], params["ln2_b"])
    h1 = jax.nn.gelu(xn2 @ params["w1"] + params["b1"], approximate=False)
    return x1 + (h1 @ params["w2"] + params["b2"])


def init_params(key, dim, mlp_dim):
    ks = jax.random.split(key, 8)
    s = 0.02
    return {
        "ln1_s": jnp.ones((1, dim), jnp.float32),
        "ln1_b": jnp.zeros((1, dim), jnp.float32),
        "wq": s * jax.random.normal(ks[0], (dim, dim), jnp.float32),
        "bq": jnp.zeros((1, dim), jnp.float32),
        "wk": s * jax.random.normal(ks[1], (dim, dim), jnp.float32),
        "bk": jnp.zeros((1, dim), jnp.float32),
        "wv": s * jax.random.normal(ks[2], (dim, dim), jnp.float32),
        "bv": jnp.zeros((1, dim), jnp.float32),
        "wo": s * jax.random.normal(ks[3], (dim, dim), jnp.float32),
        "bo": jnp.zeros((1, dim), jnp.float32),
        "ln2_s": jnp.ones((1, dim), jnp.float32),
        "ln2_b": jnp.zeros((1, dim), jnp.float32),
        "w1": s * jax.random.normal(ks[4], (dim, mlp_dim), jnp.float32),
        "b1": s * jax.random.normal(ks[5], (1, mlp_dim), jnp.float32),
        "w2": s * jax.random.normal(ks[6], (mlp_dim, dim), jnp.float32),
        "b2": s * jax.random.normal(ks[7], (1, dim), jnp.float32),
    }


if __name__ == "__main__":
    B, S, D, H, M = 2, 8, 32, 4, 64   # batch, seq, dim, heads, mlp_dim

    key = jax.random.PRNGKey(0)
    kx, kp = jax.random.split(key)
    x = jax.random.normal(kx, (B, S, D), jnp.float32)
    params = init_params(kp, D, M)

    out = jax.block_until_ready(block_forward(x, params, heads=H))
    ref = reference_forward(x, params, heads=H)

    assert out.shape == (B, S, D)
    max_err = float(jnp.max(jnp.abs(out - ref)))
    # bf16 matmuls + approx reciprocal + deferred softmax normalization ->
    # loosened tolerance vs. the f32 reference (documented / expected).
    assert jnp.allclose(out, ref, atol=2e-2, rtol=2e-2), \
        f"mismatch vs reference (max abs err {max_err})"

    print("KERNEL_OK")
</pallas_src>

<mosaic_0001>
module attributes {stable_mosaic.version = 11 : i64} {
  func.func @block_kernel(%arg0: i32, %arg1: memref<1x8x32xf32, #tpu.memory_space<vmem>>, %arg2: memref<1x32xf32, #tpu.memory_space<vmem>>, %arg3: memref<1x32xf32, #tpu.memory_space<vmem>>, %arg4: memref<32x96xbf16, #tpu.memory_space<vmem>>, %arg5: memref<1x96xf32, #tpu.memory_space<vmem>>, %arg6: memref<32x32xbf16, #tpu.memory_space<vmem>>, %arg7: memref<1x32xf32, #tpu.memory_space<vmem>>, %arg8: memref<1x32xf32, #tpu.memory_space<vmem>>, %arg9: memref<1x32xf32, #tpu.memory_space<vmem>>, %arg10: memref<32x64xbf16, #tpu.memory_space<vmem>>, %arg11: memref<1x64xf32, #tpu.memory_space<vmem>>, %arg12: memref<64x32xbf16, #tpu.memory_space<vmem>>, %arg13: memref<1x32xf32, #tpu.memory_space<vmem>>, %arg14: memref<1x8x32xf32, #tpu.memory_space<vmem>>) attributes {dimension_semantics = [#tpu.dimension_semantics<parallel>], iteration_bounds = array<i64: 2>, scalar_prefetch = 0 : i64, scratch_operands = 0 : i64, tpu.core_type = #tpu.core_type<tc>, window_params = [{transform_indices = @transform_0, window_bounds = array<i64: 1, 8, 32>}, {pipeline_mode = #tpu.pipeline_mode<synchronous>, transform_indices = @transform_1, window_bounds = array<i64: 1, 32>}, {pipeline_mode = #tpu.pipeline_mode<synchronous>, transform_indices = @transform_2, window_bounds = array<i64: 1, 32>}, {pipeline_mode = #tpu.pipeline_mode<synchronous>, transform_indices = @transform_3, window_bounds = array<i64: 32, 96>}, {pipeline_mode = #tpu.pipeline_mode<synchronous>, transform_indices = @transform_4, window_bounds = array<i64: 1, 96>}, {pipeline_mode = #tpu.pipeline_mode<synchronous>, transform_indices = @transform_5, window_bounds = array<i64: 32, 32>}, {pipeline_mode = #tpu.pipeline_mode<synchronous>, transform_indices = @transform_6, window_bounds = array<i64: 1, 32>}, {pipeline_mode = #tpu.pipeline_mode<synchronous>, transform_indices = @transform_7, window_bounds = array<i64: 1, 32>}, {pipeline_mode = #tpu.pipeline_mode<synchronous>, transform_indices = @transform_8, window_bounds = array<i64: 1, 32>}, {pipeline_mode = #tpu.pipeline_mode<synchronous>, transform_indices = @transform_9, window_bounds = array<i64: 32, 64>}, {pipeline_mode = #tpu.pipeline_mode<synchronous>, transform_indices = @transform_10, window_bounds = array<i64: 1, 64>}, {pipeline_mode = #tpu.pipeline_mode<synchronous>, transform_indices = @transform_11, window_bounds = array<i64: 64, 32>}, {pipeline_mode = #tpu.pipeline_mode<synchronous>, transform_indices = @transform_12, window_bounds = array<i64: 1, 32>}, {transform_indices = @transform_13, window_bounds = array<i64: 1, 8, 32>}]} {
    %c0 = arith.constant 0 : index
    %c0_0 = arith.constant 0 : index
    %c0_1 = arith.constant 0 : index
    %0 = vector.load %arg1[%c0, %c0_0, %c0_1] : memref<1x8x32xf32, #tpu.memory_space<vmem>>, vector<1x8x32xf32>
    %1 = vector.shape_cast %0 : vector<1x8x32xf32> to vector<8x32xf32>
    %c0_2 = arith.constant 0 : index
    %c0_3 = arith.constant 0 : index
    %2 = vector.load %arg2[%c0_2, %c0_3] : memref<1x32xf32, #tpu.memory_space<vmem>>, vector<1x32xf32>
    %c0_4 = arith.constant 0 : index
    %c0_5 = arith.constant 0 : index
    %3 = vector.load %arg3[%c0_4, %c0_5] : memref<1x32xf32, #tpu.memory_space<vmem>>, vector<1x32xf32>
    %cst = arith.constant dense<0.000000e+00> : vector<8xf32>
    %4 = vector.multi_reduction <add>, %1, %cst [1] : vector<8x32xf32> to vector<8xf32>
    %5 = vector.shape_cast %4 : vector<8xf32> to vector<8x1xf32>
    %cst_6 = arith.constant 3.200000e+01 : f32
    %6 = vector.broadcast %cst_6 : f32 to vector<8x1xf32>
    %7 = arith.divf %5, %6 : vector<8x1xf32>
    %8 = vector.broadcast %7 : vector<8x1xf32> to vector<8x32xf32>
    %9 = arith.subf %1, %8 : vector<8x32xf32>
    %10 = arith.mulf %9, %9 : vector<8x32xf32>
    %cst_7 = arith.constant dense<0.000000e+00> : vector<8xf32>
    %11 = vector.multi_reduction <add>, %10, %cst_7 [1] : vector<8x32xf32> to vector<8xf32>
    %12 = vector.shape_cast %11 : vector<8xf32> to vector<8x1xf32>
    %cst_8 = arith.constant 3.200000e+01 : f32
    %13 = vector.broadcast %cst_8 : f32 to vector<8x1xf32>
    %14 = arith.divf %12, %13 : vector<8x1xf32>
    %cst_9 = arith.constant 9.99999997E-7 : f32
    %15 = vector.broadcast %cst_9 : f32 to vector<8x1xf32>
    %16 = arith.addf %14, %15 : vector<8x1xf32>
    %17 = math.rsqrt %16 : vector<8x1xf32>
    %18 = vector.broadcast %17 : vector<8x1xf32> to vector<8x32xf32>
    %19 = arith.mulf %9, %18 : vector<8x32xf32>
    %20 = vector.broadcast %2 : vector<1x32xf32> to vector<8x32xf32>
    %21 = arith.mulf %19, %20 : vector<8x32xf32>
    %22 = vector.broadcast %3 : vector<1x32xf32> to vector<8x32xf32>
    %23 = arith.addf %21, %22 : vector<8x32xf32>
    %24 = arith.truncf %23 : vector<8x32xf32> to vector<8x32xbf16>
    %c0_10 = arith.constant 0 : index
    %c0_11 = arith.constant 0 : index
    %25 = vector.load %arg4[%c0_10, %c0_11] : memref<32x96xbf16, #tpu.memory_space<vmem>>, vector<32x96xbf16>
    %cst_12 = arith.constant dense<0.000000e+00> : vector<8x96xf32>
    %26 = tpu.matmul %24, %25, %cst_12 {dimension_numbers = #tpu.dot_dimension_numbers<[1], [0], [0], [1], [0, 0, 1, 1], [], []>} : vector<8x32xbf16>, vector<32x96xbf16>, vector<8x96xf32> -> vector<8x96xf32>
    %c0_13 = arith.constant 0 : index
    %c0_14 = arith.constant 0 : index
    %27 = vector.load %arg5[%c0_13, %c0_14] : memref<1x96xf32, #tpu.memory_space<vmem>>, vector<1x96xf32>
    %28 = vector.broadcast %27 : vector<1x96xf32> to vector<8x96xf32>
    %29 = arith.addf %26, %28 : vector<8x96xf32>
    %30 = vector.extract_strided_slice %29 {offsets = [0, 0], sizes = [8, 8], strides = [1, 1]} : vector<8x96xf32> to vector<8x8xf32>
    %31 = vector.shape_cast %30 : vector<8x8xf32> to vector<1x8x8xf32>
    %32 = vector.extract_strided_slice %29 {offsets = [0, 8], sizes = [8, 8], strides = [1, 1]} : vector<8x96xf32> to vector<8x8xf32>
    %33 = vector.shape_cast %32 : vector<8x8xf32> to vector<1x8x8xf32>
    %34 = vector.extract_strided_slice %29 {offsets = [0, 16], sizes = [8, 8], strides = [1, 1]} : vector<8x96xf32> to vector<8x8xf32>
    %35 = vector.shape_cast %34 : vector<8x8xf32> to vector<1x8x8xf32>
    %36 = vector.extract_strided_slice %29 {offsets = [0, 24], sizes = [8, 8], strides = [1, 1]} : vector<8x96xf32> to vector<8x8xf32>
    %37 = vector.shape_cast %36 : vector<8x8xf32> to vector<1x8x8xf32>
    %38 = tpu.concatenate %31, %33, %35, %37 in 0 : vector<1x8x8xf32>, vector<1x8x8xf32>, vector<1x8x8xf32>, vector<1x8x8xf32> -> vector<4x8x8xf32>
    %39 = arith.truncf %38 : vector<4x8x8xf32> to vector<4x8x8xbf16>
    %40 = vector.extract_strided_slice %29 {offsets = [0, 32], sizes = [8, 8], strides = [1, 1]} : vector<8x96xf32> to vector<8x8xf32>
    %41 = vector.shape_cast %40 : vector<8x8xf32> to vector<1x8x8xf32>
    %42 = vector.extract_strided_slice %29 {offsets = [0, 40], sizes = [8, 8], strides = [1, 1]} : vector<8x96xf32> to vector<8x8xf32>
    %43 = vector.shape_cast %42 : vector<8x8xf32> to vector<1x8x8xf32>
    %44 = vector.extract_strided_slice %29 {offsets = [0, 48], sizes = [8, 8], strides = [1, 1]} : vector<8x96xf32> to vector<8x8xf32>
    %45 = vector.shape_cast %44 : vector<8x8xf32> to vector<1x8x8xf32>
    %46 = vector.extract_strided_slice %29 {offsets = [0, 56], sizes = [8, 8], strides = [1, 1]} : vector<8x96xf32> to vector<8x8xf32>
    %47 = vector.shape_cast %46 : vector<8x8xf32> to vector<1x8x8xf32>
    %48 = tpu.concatenate %41, %43, %45, %47 in 0 : vector<1x8x8xf32>, vector<1x8x8xf32>, vector<1x8x8xf32>, vector<1x8x8xf32> -> vector<4x8x8xf32>
    %49 = arith.truncf %48 : vector<4x8x8xf32> to vector<4x8x8xbf16>
    %50 = vector.extract_strided_slice %29 {offsets = [0, 64], sizes = [8, 8], strides = [1, 1]} : vector<8x96xf32> to vector<8x8xf32>
    %51 = vector.shape_cast %50 : vector<8x8xf32> to vector<1x8x8xf32>
    %52 = vector.extract_strided_slice %29 {offsets = [0, 72], sizes = [8, 8], strides = [1, 1]} : vector<8x96xf32> to vector<8x8xf32>
    %53 = vector.shape_cast %52 : vector<8x8xf32> to vector<1x8x8xf32>
    %54 = vector.extract_strided_slice %29 {offsets = [0, 80], sizes = [8, 8], strides = [1, 1]} : vector<8x96xf32> to vector<8x8xf32>
    %55 = vector.shape_cast %54 : vector<8x8xf32> to vector<1x8x8xf32>
    %56 = vector.extract_strided_slice %29 {offsets = [0, 88], sizes = [8, 8], strides = [1, 1]} : vector<8x96xf32> to vector<8x8xf32>
    %57 = vector.shape_cast %56 : vector<8x8xf32> to vector<1x8x8xf32>
    %58 = tpu.concatenate %51, %53, %55, %57 in 0 : vector<1x8x8xf32>, vector<1x8x8xf32>, vector<1x8x8xf32>, vector<1x8x8xf32> -> vector<4x8x8xf32>
    %59 = arith.truncf %58 : vector<4x8x8xf32> to vector<4x8x8xbf16>
    "tpu.trace_start"() <{level = 10 : i32, message = "bqd,bkd->bqk"}> : () -> ()
    %cst_15 = arith.constant dense<0.000000e+00> : vector<4x8x8xf32>
    %60 = tpu.matmul %39, %49, %cst_15 {dimension_numbers = #tpu.dot_dimension_numbers<[2], [2], [1], [1], [0, 0, 0, 1, 1, 1], [0], [0]>} : vector<4x8x8xbf16>, vector<4x8x8xbf16>, vector<4x8x8xf32> -> vector<4x8x8xf32>
    "tpu.trace_stop"() : () -> ()
    %cst_16 = arith.constant dense<0xFF800000> : vector<4x8xf32>
    %61 = vector.multi_reduction <maximumf>, %60, %cst_16 [2] : vector<4x8x8xf32> to vector<4x8xf32>
    %62 = vector.shape_cast %61 : vector<4x8xf32> to vector<4x8x1xf32>
    %63 = vector.broadcast %62 : vector<4x8x1xf32> to vector<4x8x8xf32>
    %64 = arith.subf %60, %63 : vector<4x8x8xf32>
    %65 = math.exp %64 : vector<4x8x8xf32>
    %cst_17 = arith.constant dense<0.000000e+00> : vector<4x8xf32>
    %66 = vector.multi_reduction <add>, %65, %cst_17 [2] : vector<4x8x8xf32> to vector<4x8xf32>
    %67 = vector.shape_cast %66 : vector<4x8xf32> to vector<4x8x1xf32>
    %68 = arith.truncf %65 : vector<4x8x8xf32> to vector<4x8x8xbf16>
    "tpu.trace_start"() <{level = 10 : i32, message = "bqk,bkd->bqd"}> : () -> ()
    %cst_18 = arith.constant dense<0.000000e+00> : vector<4x8x8xf32>
    %69 = tpu.matmul %68, %59, %cst_18 {dimension_numbers = #tpu.dot_dimension_numbers<[2], [1], [1], [2], [0, 0, 0, 1, 1, 2], [0], [0]>} : vector<4x8x8xbf16>, vector<4x8x8xbf16>, vector<4x8x8xf32> -> vector<4x8x8xf32>
    "tpu.trace_stop"() : () -> ()
    %70 = tpu.reciprocal %67 {approx = true} : vector<4x8x1xf32> -> vector<4x8x1xf32>
    %71 = vector.broadcast %70 : vector<4x8x1xf32> to vector<4x8x8xf32>
    %72 = arith.mulf %69, %71 : vector<4x8x8xf32>
    %73 = vector.extract_strided_slice %72 {offsets = [0, 0, 0], sizes = [1, 8, 8], strides = [1, 1, 1]} : vector<4x8x8xf32> to vector<1x8x8xf32>
    %74 = vector.shape_cast %73 : vector<1x8x8xf32> to vector<8x8xf32>
    %75 = vector.extract_strided_slice %72 {offsets = [1, 0, 0], sizes = [1, 8, 8], strides = [1, 1, 1]} : vector<4x8x8xf32> to vector<1x8x8xf32>
    %76 = vector.shape_cast %75 : vector<1x8x8xf32> to vector<8x8xf32>
    %77 = vector.extract_strided_slice %72 {offsets = [2, 0, 0], sizes = [1, 8, 8], strides = [1, 1, 1]} : vector<4x8x8xf32> to vector<1x8x8xf32>
    %78 = vector.shape_cast %77 : vector<1x8x8xf32> to vector<8x8xf32>
    %79 = vector.extract_strided_slice %72 {offsets = [3, 0, 0], sizes = [1, 8, 8], strides = [1, 1, 1]} : vector<4x8x8xf32> to vector<1x8x8xf32>
    %80 = vector.shape_cast %79 : vector<1x8x8xf32> to vector<8x8xf32>
    %81 = tpu.concatenate %74, %76, %78, %80 in 1 : vector<8x8xf32>, vector<8x8xf32>, vector<8x8xf32>, vector<8x8xf32> -> vector<8x32xf32>
    %82 = arith.truncf %81 : vector<8x32xf32> to vector<8x32xbf16>
    %c0_19 = arith.constant 0 : index
    %c0_20 = arith.constant 0 : index
    %83 = vector.load %arg6[%c0_19, %c0_20] : memref<32x32xbf16, #tpu.memory_space<vmem>>, vector<32x32xbf16>
    %cst_21 = arith.constant dense<0.000000e+00> : vector<8x32xf32>
    %84 = tpu.matmul %82, %83, %cst_21 {dimension_numbers = #tpu.dot_dimension_numbers<[1], [0], [0], [1], [0, 0, 1, 1], [], []>} : vector<8x32xbf16>, vector<32x32xbf16>, vector<8x32xf32> -> vector<8x32xf32>
    %c0_22 = arith.constant 0 : index
    %c0_23 = arith.constant 0 : index
    %85 = vector.load %arg7[%c0_22, %c0_23] : memref<1x32xf32, #tpu.memory_space<vmem>>, vector<1x32xf32>
    %86 = vector.broadcast %85 : vector<1x32xf32> to vector<8x32xf32>
    %87 = arith.addf %84, %86 : vector<8x32xf32>
    %88 = arith.addf %1, %87 : vector<8x32xf32>
    %c0_24 = arith.constant 0 : index
    %c0_25 = arith.constant 0 : index
    %89 = vector.load %arg8[%c0_24, %c0_25] : memref<1x32xf32, #tpu.memory_space<vmem>>, vector<1x32xf32>
    %c0_26 = arith.constant 0 : index
    %c0_27 = arith.constant 0 : index
    %90 = vector.load %arg9[%c0_26, %c0_27] : memref<1x32xf32, #tpu.memory_space<vmem>>, vector<1x32xf32>
    %cst_28 = arith.constant dense<0.000000e+00> : vector<8xf32>
    %91 = vector.multi_reduction <add>, %88, %cst_28 [1] : vector<8x32xf32> to vector<8xf32>
    %92 = vector.shape_cast %91 : vector<8xf32> to vector<8x1xf32>
    %cst_29 = arith.constant 3.200000e+01 : f32
    %93 = vector.broadcast %cst_29 : f32 to vector<8x1xf32>
    %94 = arith.divf %92, %93 : vector<8x1xf32>
    %95 = vector.broadcast %94 : vector<8x1xf32> to vector<8x32xf32>
    %96 = arith.subf %88, %95 : vector<8x32xf32>
    %97 = arith.mulf %96, %96 : vector<8x32xf32>
    %cst_30 = arith.constant dense<0.000000e+00> : vector<8xf32>
    %98 = vector.multi_reduction <add>, %97, %cst_30 [1] : vector<8x32xf32> to vector<8xf32>
    %99 = vector.shape_cast %98 : vector<8xf32> to vector<8x1xf32>
    %cst_31 = arith.constant 3.200000e+01 : f32
    %100 = vector.broadcast %cst_31 : f32 to vector<8x1xf32>
    %101 = arith.divf %99, %100 : vector<8x1xf32>
    %cst_32 = arith.constant 9.99999997E-7 : f32
    %102 = vector.broadcast %cst_32 : f32 to vector<8x1xf32>
    %103 = arith.addf %101, %102 : vector<8x1xf32>
    %104 = math.rsqrt %103 : vector<8x1xf32>
    %105 = vector.broadcast %104 : vector<8x1xf32> to vector<8x32xf32>
    %106 = arith.mulf %96, %105 : vector<8x32xf32>
    %107 = vector.broadcast %89 : vector<1x32xf32> to vector<8x32xf32>
    %108 = arith.mulf %106, %107 : vector<8x32xf32>
    %109 = vector.broadcast %90 : vector<1x32xf32> to vector<8x32xf32>
    %110 = arith.addf %108, %109 : vector<8x32xf32>
    %111 = arith.truncf %110 : vector<8x32xf32> to vector<8x32xbf16>
    %c0_33 = arith.constant 0 : index
    %c0_34 = arith.constant 0 : index
    %112 = vector.load %arg10[%c0_33, %c0_34] : memref<32x64xbf16, #tpu.memory_space<vmem>>, vector<32x64xbf16>
    %cst_35 = arith.constant dense<0.000000e+00> : vector<8x64xf32>
    %113 = tpu.matmul %111, %112, %cst_35 {dimension_numbers = #tpu.dot_dimension_numbers<[1], [0], [0], [1], [0, 0, 1, 1], [], []>} : vector<8x32xbf16>, vector<32x64xbf16>, vector<8x64xf32> -> vector<8x64xf32>
    %c0_36 = arith.constant 0 : index
    %c0_37 = arith.constant 0 : index
    %114 = vector.load %arg11[%c0_36, %c0_37] : memref<1x64xf32, #tpu.memory_space<vmem>>, vector<1x64xf32>
    %115 = vector.broadcast %114 : vector<1x64xf32> to vector<8x64xf32>
    %116 = arith.addf %113, %115 : vector<8x64xf32>
    %cst_38 = arith.constant 5.000000e-01 : f32
    %117 = vector.broadcast %cst_38 : f32 to vector<8x64xf32>
    %118 = arith.mulf %117, %116 : vector<8x64xf32>
    %cst_39 = arith.constant 0.707106769 : f32
    %119 = vector.broadcast %cst_39 : f32 to vector<8x64xf32>
    %120 = arith.mulf %116, %119 : vector<8x64xf32>
    %121 = math.erf %120 : vector<8x64xf32>
    %cst_40 = arith.constant 1.000000e+00 : f32
    %122 = vector.broadcast %cst_40 : f32 to vector<8x64xf32>
    %123 = arith.addf %122, %121 : vector<8x64xf32>
    %124 = arith.mulf %118, %123 : vector<8x64xf32>
    %125 = arith.truncf %124 : vector<8x64xf32> to vector<8x64xbf16>
    %c0_41 = arith.constant 0 : index
    %c0_42 = arith.constant 0 : index
    %126 = vector.load %arg12[%c0_41, %c0_42] : memref<64x32xbf16, #tpu.memory_space<vmem>>, vector<64x32xbf16>
    %cst_43 = arith.constant dense<0.000000e+00> : vector<8x32xf32>
    %127 = tpu.matmul %125, %126, %cst_43 {dimension_numbers = #tpu.dot_dimension_numbers<[1], [0], [0], [1], [0, 0, 1, 1], [], []>} : vector<8x64xbf16>, vector<64x32xbf16>, vector<8x32xf32> -> vector<8x32xf32>
    %c0_44 = arith.constant 0 : index
    %c0_45 = arith.constant 0 : index
    %128 = vector.load %arg13[%c0_44, %c0_45] : memref<1x32xf32, #tpu.memory_space<vmem>>, vector<1x32xf32>
    %129 = vector.broadcast %128 : vector<1x32xf32> to vector<8x32xf32>
    %130 = arith.addf %127, %129 : vector<8x32xf32>
    %131 = arith.addf %88, %130 : vector<8x32xf32>
    %132 = vector.shape_cast %131 : vector<8x32xf32> to vector<1x8x32xf32>
    %c0_46 = arith.constant 0 : index
    %c0_47 = arith.constant 0 : index
    %c0_48 = arith.constant 0 : index
    %133 = vector.load %arg14[%c0_46, %c0_47, %c0_48] : memref<1x8x32xf32, #tpu.memory_space<vmem>>, vector<1x8x32xf32>
    tpu.vector_store %arg14[%c0_46, %c0_47, %c0_48], %132 {strides = array<i32>} : memref<1x8x32xf32, #tpu.memory_space<vmem>>, vector<1x8x32xf32>,
    return
  }
  func.func @transform_0(%arg0: i32) -> (i32, i32, i32) {
    %c0_i32 = arith.constant 0 : i32
    %c0_i32_0 = arith.constant 0 : i32
    %c0_i32_1 = arith.constant 0 : i32
    return %arg0, %c0_i32, %c0_i32_0 : i32, i32, i32
  }
  func.func @transform_1(%arg0: i32) -> (i32, i32) {
    %c0_i32 = arith.constant 0 : i32
    %c0_i32_0 = arith.constant 0 : i32
    %c0_i32_1 = arith.constant 0 : i32
    return %c0_i32, %c0_i32_0 : i32, i32
  }
  func.func @transform_2(%arg0: i32) -> (i32, i32) {
    %c0_i32 = arith.constant 0 : i32
    %c0_i32_0 = arith.constant 0 : i32
    %c0_i32_1 = arith.constant 0 : i32
    return %c0_i32, %c0_i32_0 : i32, i32
  }
  func.func @transform_3(%arg0: i32) -> (i32, i32) {
    %c0_i32 = arith.constant 0 : i32
    %c0_i32_0 = arith.constant 0 : i32
    %c0_i32_1 = arith.constant 0 : i32
    return %c0_i32, %c0_i32_0 : i32, i32
  }
  func.func @transform_4(%arg0: i32) -> (i32, i32) {
    %c0_i32 = arith.constant 0 : i32
    %c0_i32_0 = arith.constant 0 : i32
    %c0_i32_1 = arith.constant 0 : i32
    return %c0_i32, %c0_i32_0 : i32, i32
  }
  func.func @transform_5(%arg0: i32) -> (i32, i32) {
    %c0_i32 = arith.constant 0 : i32
    %c0_i32_0 = arith.constant 0 : i32
    %c0_i32_1 = arith.constant 0 : i32
    return %c0_i32, %c0_i32_0 : i32, i32
  }
  func.func @transform_6(%arg0: i32) -> (i32, i32) {
    %c0_i32 = arith.constant 0 : i32
    %c0_i32_0 = arith.constant 0 : i32
    %c0_i32_1 = arith.constant 0 : i32
    return %c0_i32, %c0_i32_0 : i32, i32
  }
  func.func @transform_7(%arg0: i32) -> (i32, i32) {
    %c0_i32 = arith.constant 0 : i32
    %c0_i32_0 = arith.constant 0 : i32
    %c0_i32_1 = arith.constant 0 : i32
    return %c0_i32, %c0_i32_0 : i32, i32
  }
  func.func @transform_8(%arg0: i32) -> (i32, i32) {
    %c0_i32 = arith.constant 0 : i32
    %c0_i32_0 = arith.constant 0 : i32
    %c0_i32_1 = arith.constant 0 : i32
    return %c0_i32, %c0_i32_0 : i32, i32
  }
  func.func @transform_9(%arg0: i32) -> (i32, i32) {
    %c0_i32 = arith.constant 0 : i32
    %c0_i32_0 = arith.constant 0 : i32
    %c0_i32_1 = arith.constant 0 : i32
    return %c0_i32, %c0_i32_0 : i32, i32
  }
  func.func @transform_10(%arg0: i32) -> (i32, i32) {
    %c0_i32 = arith.constant 0 : i32
    %c0_i32_0 = arith.constant 0 : i32
    %c0_i32_1 = arith.constant 0 : i32
    return %c0_i32, %c0_i32_0 : i32, i32
  }
  func.func @transform_11(%arg0: i32) -> (i32, i32) {
    %c0_i32 = arith.constant 0 : i32
    %c0_i32_0 = arith.constant 0 : i32
    %c0_i32_1 = arith.constant 0 : i32
    return %c0_i32, %c0_i32_0 : i32, i32
  }
  func.func @transform_12(%arg0: i32) -> (i32, i32) {
    %c0_i32 = arith.constant 0 : i32
    %c0_i32_0 = arith.constant 0 : i32
    %c0_i32_1 = arith.constant 0 : i32
    return %c0_i32, %c0_i32_0 : i32, i32
  }
  func.func @transform_13(%arg0: i32) -> (i32, i32, i32) {
    %c0_i32 = arith.constant 0 : i32
    %c0_i32_0 = arith.constant 0 : i32
    %c0_i32_1 = arith.constant 0 : i32
    return %arg0, %c0_i32, %c0_i32_0 : i32, i32, i32
  }
}

module attributes {stable_mosaic.version = 11 : i64} {
  func.func @block_kernel(%arg0: i32, %arg1: memref<1x8x32xf32, #tpu.memory_space<vmem>>, %arg2: memref<1x32xf32, #tpu.memory_space<vmem>>, %arg3: memref<1x32xf32, #tpu.memory_space<vmem>>, %arg4: memref<32x96xbf16, #tpu.memory_space<vmem>>, %arg5: memref<1x96xf32, #tpu.memory_space<vmem>>, %arg6: memref<32x32xbf16, #tpu.memory_space<vmem>>, %arg7: memref<1x32xf32, #tpu.memory_space<vmem>>, %arg8: memref<1x32xf32, #tpu.memory_space<vmem>>, %arg9: memref<1x32xf32, #tpu.memory_space<vmem>>, %arg10: memref<32x64xbf16, #tpu.memory_space<vmem>>, %arg11: memref<1x64xf32, #tpu.memory_space<vmem>>, %arg12: memref<64x32xbf16, #tpu.memory_space<vmem>>, %arg13: memref<1x32xf32, #tpu.memory_space<vmem>>, %arg14: memref<1x8x32xf32, #tpu.memory_space<vmem>>) attributes {dimension_semantics = [#tpu.dimension_semantics<parallel>], iteration_bounds = array<i64: 2>, scalar_prefetch = 0 : i64, scratch_operands = 0 : i64, tpu.core_type = #tpu.core_type<tc>, window_params = [{transform_indices = @transform_0, window_bounds = array<i64: 1, 8, 32>}, {pipeline_mode = #tpu.pipeline_mode<synchronous>, transform_indices = @transform_1, window_bounds = array<i64: 1, 32>}, {pipeline_mode = #tpu.pipeline_mode<synchronous>, transform_indices = @transform_2, window_bounds = array<i64: 1, 32>}, {pipeline_mode = #tpu.pipeline_mode<synchronous>, transform_indices = @transform_3, window_bounds = array<i64: 32, 96>}, {pipeline_mode = #tpu.pipeline_mode<synchronous>, transform_indices = @transform_4, window_bounds = array<i64: 1, 96>}, {pipeline_mode = #tpu.pipeline_mode<synchronous>, transform_indices = @transform_5, window_bounds = array<i64: 32, 32>}, {pipeline_mode = #tpu.pipeline_mode<synchronous>, transform_indices = @transform_6, window_bounds = array<i64: 1, 32>}, {pipeline_mode = #tpu.pipeline_mode<synchronous>, transform_indices = @transform_7, window_bounds = array<i64: 1, 32>}, {pipeline_mode = #tpu.pipeline_mode<synchronous>, transform_indices = @transform_8, window_bounds = array<i64: 1, 32>}, {pipeline_mode = #tpu.pipeline_mode<synchronous>, transform_indices = @transform_9, window_bounds = array<i64: 32, 64>}, {pipeline_mode = #tpu.pipeline_mode<synchronous>, transform_indices = @transform_10, window_bounds = array<i64: 1, 64>}, {pipeline_mode = #tpu.pipeline_mode<synchronous>, transform_indices = @transform_11, window_bounds = array<i64: 64, 32>}, {pipeline_mode = #tpu.pipeline_mode<synchronous>, transform_indices = @transform_12, window_bounds = array<i64: 1, 32>}, {transform_indices = @transform_13, window_bounds = array<i64: 1, 8, 32>}]} {
    %c0 = arith.constant 0 : index
    %c0_0 = arith.constant 0 : index
    %c0_1 = arith.constant 0 : index
    %0 = vector.load %arg1[%c0, %c0_0, %c0_1] : memref<1x8x32xf32, #tpu.memory_space<vmem>>, vector<1x8x32xf32>
    %1 = vector.shape_cast %0 : vector<1x8x32xf32> to vector<8x32xf32>
    %c0_2 = arith.constant 0 : index
    %c0_3 = arith.constant 0 : index
    %2 = vector.load %arg2[%c0_2, %c0_3] : memref<1x32xf32, #tpu.memory_space<vmem>>, vector<1x32xf32>
    %c0_4 = arith.constant 0 : index
    %c0_5 = arith.constant 0 : index
    %3 = vector.load %arg3[%c0_4, %c0_5] : memref<1x32xf32, #tpu.memory_space<vmem>>, vector<1x32xf32>
    %cst = arith.constant dense<0.000000e+00> : vector<8xf32>
    %4 = vector.multi_reduction <add>, %1, %cst [1] : vector<8x32xf32> to vector<8xf32>
    %5 = vector.shape_cast %4 : vector<8xf32> to vector<8x1xf32>
    %cst_6 = arith.constant 3.200000e+01 : f32
    %6 = vector.broadcast %cst_6 : f32 to vector<8x1xf32>
    %7 = arith.divf %5, %6 : vector<8x1xf32>
    %8 = vector.broadcast %7 : vector<8x1xf32> to vector<8x32xf32>
    %9 = arith.subf %1, %8 : vector<8x32xf32>
    %10 = arith.mulf %9, %9 : vector<8x32xf32>
    %cst_7 = arith.constant dense<0.000000e+00> : vector<8xf32>
    %11 = vector.multi_reduction <add>, %10, %cst_7 [1] : vector<8x32xf32> to vector<8xf32>
    %12 = vector.shape_cast %11 : vector<8xf32> to vector<8x1xf32>
    %cst_8 = arith.constant 3.200000e+01 : f32
    %13 = vector.broadcast %cst_8 : f32 to vector<8x1xf32>
    %14 = arith.divf %12, %13 : vector<8x1xf32>
    %cst_9 = arith.constant 9.99999997E-7 : f32
    %15 = vector.broadcast %cst_9 : f32 to vector<8x1xf32>
    %16 = arith.addf %14, %15 : vector<8x1xf32>
    %17 = math.rsqrt %16 : vector<8x1xf32>
    %18 = vector.broadcast %17 : vector<8x1xf32> to vector<8x32xf32>
    %19 = arith.mulf %9, %18 : vector<8x32xf32>
    %20 = vector.broadcast %2 : vector<1x32xf32> to vector<8x32xf32>
    %21 = arith.mulf %19, %20 : vector<8x32xf32>
    %22 = vector.broadcast %3 : vector<1x32xf32> to vector<8x32xf32>
    %23 = arith.addf %21, %22 : vector<8x32xf32>
    %24 = arith.truncf %23 : vector<8x32xf32> to vector<8x32xbf16>
    %c0_10 = arith.constant 0 : index
    %c0_11 = arith.constant 0 : index
    %25 = vector.load %arg4[%c0_10, %c0_11] : memref<32x96xbf16, #tpu.memory_space<vmem>>, vector<32x96xbf16>
    %cst_12 = arith.constant dense<0.000000e+00> : vector<8x96xf32>
    %26 = tpu.matmul %24, %25, %cst_12 {dimension_numbers = #tpu.dot_dimension_numbers<[1], [0], [0], [1], [0, 0, 1, 1], [], []>} : vector<8x32xbf16>, vector<32x96xbf16>, vector<8x96xf32> -> vector<8x96xf32>
    %c0_13 = arith.constant 0 : index
    %c0_14 = arith.constant 0 : index
    %27 = vector.load %arg5[%c0_13, %c0_14] : memref<1x96xf32, #tpu.memory_space<vmem>>, vector<1x96xf32>
    %28 = vector.broadcast %27 : vector<1x96xf32> to vector<8x96xf32>
    %29 = arith.addf %26, %28 : vector<8x96xf32>
    %30 = vector.extract_strided_slice %29 {offsets = [0, 0], sizes = [8, 8], strides = [1, 1]} : vector<8x96xf32> to vector<8x8xf32>
    %31 = vector.shape_cast %30 : vector<8x8xf32> to vector<1x8x8xf32>
    %32 = vector.extract_strided_slice %29 {offsets = [0, 8], sizes = [8, 8], strides = [1, 1]} : vector<8x96xf32> to vector<8x8xf32>
    %33 = vector.shape_cast %32 : vector<8x8xf32> to vector<1x8x8xf32>
    %34 = vector.extract_strided_slice %29 {offsets = [0, 16], sizes = [8, 8], strides = [1, 1]} : vector<8x96xf32> to vector<8x8xf32>
    %35 = vector.shape_cast %34 : vector<8x8xf32> to vector<1x8x8xf32>
    %36 = vector.extract_strided_slice %29 {offsets = [0, 24], sizes = [8, 8], strides = [1, 1]} : vector<8x96xf32> to vector<8x8xf32>
    %37 = vector.shape_cast %36 : vector<8x8xf32> to vector<1x8x8xf32>
    %38 = tpu.concatenate %31, %33, %35, %37 in 0 : vector<1x8x8xf32>, vector<1x8x8xf32>, vector<1x8x8xf32>, vector<1x8x8xf32> -> vector<4x8x8xf32>
    %39 = arith.truncf %38 : vector<4x8x8xf32> to vector<4x8x8xbf16>
    %40 = vector.extract_strided_slice %29 {offsets = [0, 32], sizes = [8, 8], strides = [1, 1]} : vector<8x96xf32> to vector<8x8xf32>
    %41 = vector.shape_cast %40 : vector<8x8xf32> to vector<1x8x8xf32>
    %42 = vector.extract_strided_slice %29 {offsets = [0, 40], sizes = [8, 8], strides = [1, 1]} : vector<8x96xf32> to vector<8x8xf32>
    %43 = vector.shape_cast %42 : vector<8x8xf32> to vector<1x8x8xf32>
    %44 = vector.extract_strided_slice %29 {offsets = [0, 48], sizes = [8, 8], strides = [1, 1]} : vector<8x96xf32> to vector<8x8xf32>
    %45 = vector.shape_cast %44 : vector<8x8xf32> to vector<1x8x8xf32>
    %46 = vector.extract_strided_slice %29 {offsets = [0, 56], sizes = [8, 8], strides = [1, 1]} : vector<8x96xf32> to vector<8x8xf32>
    %47 = vector.shape_cast %46 : vector<8x8xf32> to vector<1x8x8xf32>
    %48 = tpu.concatenate %41, %43, %45, %47 in 0 : vector<1x8x8xf32>, vector<1x8x8xf32>, vector<1x8x8xf32>, vector<1x8x8xf32> -> vector<4x8x8xf32>
    %49 = arith.truncf %48 : vector<4x8x8xf32> to vector<4x8x8xbf16>
    %50 = vector.extract_strided_slice %29 {offsets = [0, 64], sizes = [8, 8], strides = [1, 1]} : vector<8x96xf32> to vector<8x8xf32>
    %51 = vector.shape_cast %50 : vector<8x8xf32> to vector<1x8x8xf32>
    %52 = vector.extract_strided_slice %29 {offsets = [0, 72], sizes = [8, 8], strides = [1, 1]} : vector<8x96xf32> to vector<8x8xf32>
    %53 = vector.shape_cast %52 : vector<8x8xf32> to vector<1x8x8xf32>
    %54 = vector.extract_strided_slice %29 {offsets = [0, 80], sizes = [8, 8], strides = [1, 1]} : vector<8x96xf32> to vector<8x8xf32>
    %55 = vector.shape_cast %54 : vector<8x8xf32> to vector<1x8x8xf32>
    %56 = vector.extract_strided_slice %29 {offsets = [0, 88], sizes = [8, 8], strides = [1, 1]} : vector<8x96xf32> to vector<8x8xf32>
    %57 = vector.shape_cast %56 : vector<8x8xf32> to vector<1x8x8xf32>
    %58 = tpu.concatenate %51, %53, %55, %57 in 0 : vector<1x8x8xf32>, vector<1x8x8xf32>, vector<1x8x8xf32>, vector<1x8x8xf32> -> vector<4x8x8xf32>
    %59 = arith.truncf %58 : vector<4x8x8xf32> to vector<4x8x8xbf16>
    "tpu.trace_start"() <{level = 10 : i32, message = "bqd,bkd->bqk"}> : () -> ()
    %cst_15 = arith.constant dense<0.000000e+00> : vector<4x8x8xf32>
    %60 = tpu.matmul %39, %49, %cst_15 {dimension_numbers = #tpu.dot_dimension_numbers<[2], [2], [1], [1], [0, 0, 0, 1, 1, 1], [0], [0]>} : vector<4x8x8xbf16>, vector<4x8x8xbf16>, vector<4x8x8xf32> -> vector<4x8x8xf32>
    "tpu.trace_stop"() : () -> ()
    %cst_16 = arith.constant dense<0xFF800000> : vector<4x8xf32>
    %61 = vector.multi_reduction <maximumf>, %60, %cst_16 [2] : vector<4x8x8xf32> to vector<4x8xf32>
    %62 = vector.shape_cast %61 : vector<4x8xf32> to vector<4x8x1xf32>
    %63 = vector.broadcast %62 : vector<4x8x1xf32> to vector<4x8x8xf32>
    %64 = arith.subf %60, %63 : vector<4x8x8xf32>
    %65 = math.exp %64 : vector<4x8x8xf32>
    %cst_17 = arith.constant dense<0.000000e+00> : vector<4x8xf32>
    %66 = vector.multi_reduction <add>, %65, %cst_17 [2] : vector<4x8x8xf32> to vector<4x8xf32>
    %67 = vector.shape_cast %66 : vector<4x8xf32> to vector<4x8x1xf32>
    %68 = arith.truncf %65 : vector<4x8x8xf32> to vector<4x8x8xbf16>
    "tpu.trace_start"() <{level = 10 : i32, message = "bqk,bkd->bqd"}> : () -> ()
    %cst_18 = arith.constant dense<0.000000e+00> : vector<4x8x8xf32>
    %69 = tpu.matmul %68, %59, %cst_18 {dimension_numbers = #tpu.dot_dimension_numbers<[2], [1], [1], [2], [0, 0, 0, 1, 1, 2], [0], [0]>} : vector<4x8x8xbf16>, vector<4x8x8xbf16>, vector<4x8x8xf32> -> vector<4x8x8xf32>
    "tpu.trace_stop"() : () -> ()
    %70 = tpu.reciprocal %67 {approx = true} : vector<4x8x1xf32> -> vector<4x8x1xf32>
    %71 = vector.broadcast %70 : vector<4x8x1xf32> to vector<4x8x8xf32>
    %72 = arith.mulf %69, %71 : vector<4x8x8xf32>
    %73 = vector.extract_strided_slice %72 {offsets = [0, 0, 0], sizes = [1, 8, 8], strides = [1, 1, 1]} : vector<4x8x8xf32> to vector<1x8x8xf32>
    %74 = vector.shape_cast %73 : vector<1x8x8xf32> to vector<8x8xf32>
    %75 = vector.extract_strided_slice %72 {offsets = [1, 0, 0], sizes = [1, 8, 8], strides = [1, 1, 1]} : vector<4x8x8xf32> to vector<1x8x8xf32>
    %76 = vector.shape_cast %75 : vector<1x8x8xf32> to vector<8x8xf32>
    %77 = vector.extract_strided_slice %72 {offsets = [2, 0, 0], sizes = [1, 8, 8], strides = [1, 1, 1]} : vector<4x8x8xf32> to vector<1x8x8xf32>
    %78 = vector.shape_cast %77 : vector<1x8x8xf32> to vector<8x8xf32>
    %79 = vector.extract_strided_slice %72 {offsets = [3, 0, 0], sizes = [1, 8, 8], strides = [1, 1, 1]} : vector<4x8x8xf32> to vector<1x8x8xf32>
    %80 = vector.shape_cast %79 : vector<1x8x8xf32> to vector<8x8xf32>
    %81 = tpu.concatenate %74, %76, %78, %80 in 1 : vector<8x8xf32>, vector<8x8xf32>, vector<8x8xf32>, vector<8x8xf32> -> vector<8x32xf32>
    %82 = arith.truncf %81 : vector<8x32xf32> to vector<8x32xbf16>
    %c0_19 = arith.constant 0 : index
    %c0_20 = arith.constant 0 : index
    %83 = vector.load %arg6[%c0_19, %c0_20] : memref<32x32xbf16, #tpu.memory_space<vmem>>, vector<32x32xbf16>
    %cst_21 = arith.constant dense<0.000000e+00> : vector<8x32xf32>
    %84 = tpu.matmul %82, %83, %cst_21 {dimension_numbers = #tpu.dot_dimension_numbers<[1], [0], [0], [1], [0, 0, 1, 1], [], []>} : vector<8x32xbf16>, vector<32x32xbf16>, vector<8x32xf32> -> vector<8x32xf32>
    %c0_22 = arith.constant 0 : index
    %c0_23 = arith.constant 0 : index
    %85 = vector.load %arg7[%c0_22, %c0_23] : memref<1x32xf32, #tpu.memory_space<vmem>>, vector<1x32xf32>
    %86 = vector.broadcast %85 : vector<1x32xf32> to vector<8x32xf32>
    %87 = arith.addf %84, %86 : vector<8x32xf32>
    %88 = arith.addf %1, %87 : vector<8x32xf32>
    %c0_24 = arith.constant 0 : index
    %c0_25 = arith.constant 0 : index
    %89 = vector.load %arg8[%c0_24, %c0_25] : memref<1x32xf32, #tpu.memory_space<vmem>>, vector<1x32xf32>
    %c0_26 = arith.constant 0 : index
    %c0_27 = arith.constant 0 : index
    %90 = vector.load %arg9[%c0_26, %c0_27] : memref<1x32xf32, #tpu.memory_space<vmem>>, vector<1x32xf32>
    %cst_28 = arith.constant dense<0.000000e+00> : vector<8xf32>
    %91 = vector.multi_reduction <add>, %88, %cst_28 [1] : vector<8x32xf32> to vector<8xf32>
    %92 = vector.shape_cast %91 : vector<8xf32> to vector<8x1xf32>
    %cst_29 = arith.constant 3.200000e+01 : f32
    %93 = vector.broadcast %cst_29 : f32 to vector<8x1xf32>
    %94 = arith.divf %92, %93 : vector<8x1xf32>
    %95 = vector.broadcast %94 : vector<8x1xf32> to vector<8x32xf32>
    %96 = arith.subf %88, %95 : vector<8x32xf32>
    %97 = arith.mulf %96, %96 : vector<8x32xf32>
    %cst_30 = arith.constant dense<0.000000e+00> : vector<8xf32>
    %98 = vector.multi_reduction <add>, %97, %cst_30 [1] : vector<8x32xf32> to vector<8xf32>
    %99 = vector.shape_cast %98 : vector<8xf32> to vector<8x1xf32>
    %cst_31 = arith.constant 3.200000e+01 : f32
    %100 = vector.broadcast %cst_31 : f32 to vector<8x1xf32>
    %101 = arith.divf %99, %100 : vector<8x1xf32>
    %cst_32 = arith.constant 9.99999997E-7 : f32
    %102 = vector.broadcast %cst_32 : f32 to vector<8x1xf32>
    %103 = arith.addf %101, %102 : vector<8x1xf32>
    %104 = math.rsqrt %103 : vector<8x1xf32>
    %105 = vector.broadcast %104 : vector<8x1xf32> to vector<8x32xf32>
    %106 = arith.mulf %96, %105 : vector<8x32xf32>
    %107 = vector.broadcast %89 : vector<1x32xf32> to vector<8x32xf32>
    %108 = arith.mulf %106, %107 : vector<8x32xf32>
    %109 = vector.broadcast %90 : vector<1x32xf32> to vector<8x32xf32>
    %110 = arith.addf %108, %109 : vector<8x32xf32>
    %111 = arith.truncf %110 : vector<8x32xf32> to vector<8x32xbf16>
    %c0_33 = arith.constant 0 : index
    %c0_34 = arith.constant 0 : index
    %112 = vector.load %arg10[%c0_33, %c0_34] : memref<32x64xbf16, #tpu.memory_space<vmem>>, vector<32x64xbf16>
    %cst_35 = arith.constant dense<0.000000e+00> : vector<8x64xf32>
    %113 = tpu.matmul %111, %112, %cst_35 {dimension_numbers = #tpu.dot_dimension_numbers<[1], [0], [0], [1], [0, 0, 1, 1], [], []>} : vector<8x32xbf16>, vector<32x64xbf16>, vector<8x64xf32> -> vector<8x64xf32>
    %c0_36 = arith.constant 0 : index
    %c0_37 = arith.constant 0 : index
    %114 = vector.load %arg11[%c0_36, %c0_37] : memref<1x64xf32, #tpu.memory_space<vmem>>, vector<1x64xf32>
    %115 = vector.broadcast %114 : vector<1x64xf32> to vector<8x64xf32>
    %116 = arith.addf %113, %115 : vector<8x64xf32>
    %cst_38 = arith.constant 5.000000e-01 : f32
    %117 = vector.broadcast %cst_38 : f32 to vector<8x64xf32>
    %118 = arith.mulf %117, %116 : vector<8x64xf32>
    %cst_39 = arith.constant 0.707106769 : f32
    %119 = vector.broadcast %cst_39 : f32 to vector<8x64xf32>
    %120 = arith.mulf %116, %119 : vector<8x64xf32>
    %121 = math.erf %120 : vector<8x64xf32>
    %cst_40 = arith.constant 1.000000e+00 : f32
    %122 = vector.broadcast %cst_40 : f32 to vector<8x64xf32>
    %123 = arith.addf %122, %121 : vector<8x64xf32>
    %124 = arith.mulf %118, %123 : vector<8x64xf32>
    %125 = arith.truncf %124 : vector<8x64xf32> to vector<8x64xbf16>
    %c0_41 = arith.constant 0 : index
    %c0_42 = arith.constant 0 : index
    %126 = vector.load %arg12[%c0_41, %c0_42] : memref<64x32xbf16, #tpu.memory_space<vmem>>, vector<64x32xbf16>
    %cst_43 = arith.constant dense<0.000000e+00> : vector<8x32xf32>
    %127 = tpu.matmul %125, %126, %cst_43 {dimension_numbers = #tpu.dot_dimension_numbers<[1], [0], [0], [1], [0, 0, 1, 1], [], []>} : vector<8x64xbf16>, vector<64x32xbf16>, vector<8x32xf32> -> vector<8x32xf32>
    %c0_44 = arith.constant 0 : index
    %c0_45 = arith.constant 0 : index
    %128 = vector.load %arg13[%c0_44, %c0_45] : memref<1x32xf32, #tpu.memory_space<vmem>>, vector<1x32xf32>
    %129 = vector.broadcast %128 : vector<1x32xf32> to vector<8x32xf32>
    %130 = arith.addf %127, %129 : vector<8x32xf32>
    %131 = arith.addf %88, %130 : vector<8x32xf32>
    %132 = vector.shape_cast %131 : vector<8x32xf32> to vector<1x8x32xf32>
    %c0_46 = arith.constant 0 : index
    %c0_47 = arith.constant 0 : index
    %c0_48 = arith.constant 0 : index
    %133 = vector.load %arg14[%c0_46, %c0_47, %c0_48] : memref<1x8x32xf32, #tpu.memory_space<vmem>>, vector<1x8x32xf32>
    tpu.vector_store %arg14[%c0_46, %c0_47, %c0_48], %132 {strides = array<i32>} : memref<1x8x32xf32, #tpu.memory_space<vmem>>, vector<1x8x32xf32>,
    return
  }
  func.func @transform_0(%arg0: i32) -> (i32, i32, i32) {
    %c0_i32 = arith.constant 0 : i32
    %c0_i32_0 = arith.constant 0 : i32
    %c0_i32_1 = arith.constant 0 : i32
    return %arg0, %c0_i32, %c0_i32_0 : i32, i32, i32
  }
  func.func @transform_1(%arg0: i32) -> (i32, i32) {
    %c0_i32 = arith.constant 0 : i32
    %c0_i32_0 = arith.constant 0 : i32
    %c0_i32_1 = arith.constant 0 : i32
    return %c0_i32, %c0_i32_0 : i32, i32
  }
  func.func @transform_2(%arg0: i32) -> (i32, i32) {
    %c0_i32 = arith.constant 0 : i32
    %c0_i32_0 = arith.constant 0 : i32
    %c0_i32_1 = arith.constant 0 : i32
    return %c0_i32, %c0_i32_0 : i32, i32
  }
  func.func @transform_3(%arg0: i32) -> (i32, i32) {
    %c0_i32 = arith.constant 0 : i32
    %c0_i32_0 = arith.constant 0 : i32
    %c0_i32_1 = arith.constant 0 : i32
    return %c0_i32, %c0_i32_0 : i32, i32
  }
  func.func @transform_4(%arg0: i32) -> (i32, i32) {
    %c0_i32 = arith.constant 0 : i32
    %c0_i32_0 = arith.constant 0 : i32
    %c0_i32_1 = arith.constant 0 : i32
    return %c0_i32, %c0_i32_0 : i32, i32
  }
  func.func @transform_5(%arg0: i32) -> (i32, i32) {
    %c0_i32 = arith.constant 0 : i32
    %c0_i32_0 = arith.constant 0 : i32
    %c0_i32_1 = arith.constant 0 : i32
    return %c0_i32, %c0_i32_0 : i32, i32
  }
  func.func @transform_6(%arg0: i32) -> (i32, i32) {
    %c0_i32 = arith.constant 0 : i32
    %c0_i32_0 = arith.constant 0 : i32
    %c0_i32_1 = arith.constant 0 : i32
    return %c0_i32, %c0_i32_0 : i32, i32
  }
  func.func @transform_7(%arg0: i32) -> (i32, i32) {
    %c0_i32 = arith.constant 0 : i32
    %c0_i32_0 = arith.constant 0 : i32
    %c0_i32_1 = arith.constant 0 : i32
    return %c0_i32, %c0_i32_0 : i32, i32
  }
  func.func @transform_8(%arg0: i32) -> (i32, i32) {
    %c0_i32 = arith.constant 0 : i32
    %c0_i32_0 = arith.constant 0 : i32
    %c0_i32_1 = arith.constant 0 : i32
    return %c0_i32, %c0_i32_0 : i32, i32
  }
  func.func @transform_9(%arg0: i32) -> (i32, i32) {
    %c0_i32 = arith.constant 0 : i32
    %c0_i32_0 = arith.constant 0 : i32
    %c0_i32_1 = arith.constant 0 : i32
    return %c0_i32, %c0_i32_0 : i32, i32
  }
  func.func @transform_10(%arg0: i32) -> (i32, i32) {
    %c0_i32 = arith.constant 0 : i32
    %c0_i32_0 = arith.constant 0 : i32
    %c0_i32_1 = arith.constant 0 : i32
    return %c0_i32, %c0_i32_0 : i32, i32
  }
  func.func @transform_11(%arg0: i32) -> (i32, i32) {
    %c0_i32 = arith.constant 0 : i32
    %c0_i32_0 = arith.constant 0 : i32
    %c0_i32_1 = arith.constant 0 : i32
    return %c0_i32, %c0_i32_0 : i32, i32
  }
  func.func @transform_12(%arg0: i32) -> (i32, i32) {
    %c0_i32 = arith.constant 0 : i32
    %c0_i32_0 = arith.constant 0 : i32
    %c0_i32_1 = arith.constant 0 : i32
    return %c0_i32, %c0_i32_0 : i32, i32
  }
  func.func @transform_13(%arg0: i32) -> (i32, i32, i32) {
    %c0_i32 = arith.constant 0 : i32
    %c0_i32_0 = arith.constant 0 : i32
    %c0_i32_1 = arith.constant 0 : i32
    return %arg0, %c0_i32, %c0_i32_0 : i32, i32, i32
  }
}

</mosaic_0001>

<llo_original>
// kernel: tpu_custom_call.1
$region0: #{tpu_custom_call.1}
  #allocation0 [shape = 'u32[]', space=smem, size = 0x4, offset = 0x4, fixed_abs, tag = 'smem constant byte address 0x4 - core index']
  #allocation1 [shape = 'u32[144,128]{1,0:T(1,128)}', space=vmem, size = 0x12000, scoped, tag = 'internal scratch']
  %s0 = inlined_call_operand.vmem [shape: f32[2,8,32], index: 0, kind: input, shape index: {}]
  %s1 = inlined_call_operand.vmem [shape: f32[1,32], index: 1, kind: input, shape index: {}]
  %s2 = inlined_call_operand.vmem [shape: f32[1,32], index: 2, kind: input, shape index: {}]
  %s3 = inlined_call_operand.vmem [shape: bf16[32,96], index: 3, kind: input, shape index: {}]
  %s4 = inlined_call_operand.vmem [shape: f32[1,96], index: 4, kind: input, shape index: {}]
  %s5 = inlined_call_operand.vmem [shape: bf16[32,32], index: 5, kind: input, shape index: {}]
  %s6 = inlined_call_operand.vmem [shape: f32[1,32], index: 6, kind: input, shape index: {}]
  %s7 = inlined_call_operand.hbm [shape: f32[1,32], index: 7, kind: input, shape index: {}]
  %s8 = inlined_call_operand.hbm [shape: f32[1,32], index: 8, kind: input, shape index: {}]
  %s9 = inlined_call_operand.hbm [shape: bf16[32,64], index: 9, kind: input, shape index: {}]
  %s10 = inlined_call_operand.hbm [shape: f32[1,64], index: 10, kind: input, shape index: {}]
  %s11 = inlined_call_operand.vmem [shape: bf16[64,32], index: 11, kind: input, shape index: {}]
  %s12 = inlined_call_operand.vmem [shape: f32[1,32], index: 12, kind: input, shape index: {}]
  %s13 = inlined_call_operand.hbm [shape: f32[2,8,32], index: 13, kind: output, shape index: {}]
  %s14 = sld [smem:[#allocation0]]
  $region101: #{tpu_custom_call.1} parent=0
    _
  %s16 = ssub.s32 1, %s14
  %s17 = scalar_select 0, %s16, %s14
  $region1: #{tpu_custom_call.1} parent=0
    #allocation2 [shape = 'u8[512]{0}', space=vmem, size = 0x400, scoped, tag = 'input window, operand 7, single buffered']
    #allocation3 [shape = 's32[2]{0}', space=sflag, size = 0x8, scoped, tag = 'scoped memory for tpu_custom_call.1']
    #allocation4 [shape = 's32[2]{0}', space=sflag, size = 0x8, scoped, tag = 'scoped memory for tpu_custom_call.1']
    #allocation5 [shape = 'u8[512]{0}', space=vmem, size = 0x400, scoped, tag = 'input window, operand 8, single buffered']
    #allocation6 [shape = 's32[1]{0}', space=sflag, size = 0x4, scoped, tag = 'scoped memory for tpu_custom_call.1']
    #allocation7 [shape = 'u8[8192]{0}', space=vmem, size = 0x2000, scoped, tag = 'input window, operand 9, single buffered']
    #allocation8 [shape = 'u8[512]{0}', space=vmem, size = 0x400, scoped, tag = 'input window, operand 10, single buffered']
    #allocation9 [shape = 's32[1]{0}', space=sflag, size = 0x4, scoped, tag = 'scoped memory for tpu_custom_call.1']
    #allocation10 [shape = 'u8[8192]{0}', space=vmem, size = 0x2000, scoped, tag = 'output window, operand 0']
    %18 = vsyncpa [#allocation3], 0
    %19 = vsyncpa [#allocation6], 0
    %20 = vsyncpa [#allocation9], 0
    %21 = vsyncpa [#allocation4], 0
    %s22 = scalar_lea.sflag [#allocation4], 1
    %23 = vsyncpa %s22, 0
    loop: start=0, step=1, limit=4
    $region2: #{tpu_custom_call.1} parent=1 // loop_pre_header
      _
    $region3: #{tpu_custom_call.1} parent=1 // loop_header
      %s25 = sphi 0, %s29
      %p26 = scmp.ge.s32.totalorder %s25, 4
      %s35 = sphi 0, %s37
      %s38 = sphi 0, %s35
      %s39 = sphi 0, %s38
      %s55 = sphi 0, %s39
      %s59 = sphi 0, %s59
      %s61 = sphi 0, %s59
      %s62 = sphi 0, %s61
      %s76 = sphi 0, %s62
      %s80 = sphi 0, %s80
      %s82 = sphi 0, %s80
      %s83 = sphi 0, %s82
      %s97 = sphi 0, %s83
      %s101 = sphi 0, %s101
      %s103 = sphi 0, %s101
      %s104 = sphi 0, %s103
      %s118 = sphi 0, %s104
      %s122 = sphi 0, %s122
      %s124 = sphi 0, %s122
      %s125 = sphi 0, %s124
      %s139 = sphi 0, %s125
      %s143 = sphi 0, %s143
      %s145 = sphi 0, %s143
      %s146 = sphi 0, %s145
      %s160 = sphi 0, %s146
      %s164 = sphi 0, %s164
      %s166 = sphi 0, %s164
      %s167 = sphi 0, %s166
      %s181 = sphi 0, %s167
      %s185 = sphi 0, %s185
      %s187 = sphi 0, %s185
      %s188 = sphi 0, %s187
      %s202 = sphi 0, %s188
      %s206 = sphi 0, %s206
      %s208 = sphi 0, %s206
      %s209 = sphi 0, %s208
      %s223 = sphi 0, %s209
      %s227 = sphi 0, %s227
      %s229 = sphi 0, %s227
      %s230 = sphi 0, %s229
      %s244 = sphi 0, %s230
      %s248 = sphi 0, %s248
      %s250 = sphi 0, %s248
      %s251 = sphi 0, %s250
      %s265 = sphi 0, %s251
      %s269 = sphi 0, %s269
      %s271 = sphi 0, %s269
      %s272 = sphi 0, %s271
      %s286 = sphi 0, %s272
      %s290 = sphi 0, %s290
      %s292 = sphi 0, %s290
      %s293 = sphi 0, %s292
      %s307 = sphi 0, %s293
      %s313 = sphi 0, %s315
      %s316 = sphi 0, %s313
      %s317 = sphi 0, %s316
      %s333 = sphi 0, %s317
    $region4: #{tpu_custom_call.1} parent=1 // loop_header_branch
      %28 = sbr.rel (%p26) target = $region8
    $region5: #{tpu_custom_call.1} parent=1 // loop_body
      %s30 = ssub.s32 %s25, 1
      %s31 = ssub.s32 %s25, 2
      %s32 = sadd.s32 %s25, 1
      %s33 = ssub.s32 %s25, %s32
      %p34 = scmp.eq.s32.totalorder %s33, 0
      %s36 = sadd.s32 %s35, 1
      %s37 = scalar_select %p34, %s35, %s36
      %p40 = pneg %p34
      %p41 = scmp.eq.s32.totalorder %s25, 1
      %p42 = por %p40, %p41
      %p43 = scmp.ne.s32.totalorder %s35, %s38
      %p44 = scmp.eq.s32.totalorder %s25, 0
      %p45 = por %p43, %p44
      %p46 = scmp.ne.s32.totalorder %s35, %s38
      %p47 = scmp.eq.s32.totalorder %s30, 1
      %p48 = por %p46, %p47
      %p49 = scmp.ne.s32.totalorder %s38, %s39
      %p50 = scmp.eq.s32.totalorder %s30, 0
      %p51 = por %p49, %p50
      %p52 = scmp.ne.s32.totalorder %s38, %s39
      %p53 = scmp.eq.s32.totalorder %s31, 1
      %p54 = por %p52, %p53
      %p56 = scmp.ne.s32.totalorder %s39, %s55
      %p57 = scmp.eq.s32.totalorder %s31, 0
      %p58 = por %p56, %p57
      %s60 = sadd.s32 %s59, 1
      %p63 = scmp.eq.s32.totalorder %s25, 1
      %p64 = scmp.ne.s32.totalorder %s59, %s61
      %p65 = scmp.eq.s32.totalorder %s25, 0
      %p66 = por %p64, %p65
      %p67 = scmp.ne.s32.totalorder %s59, %s61
      %p68 = scmp.eq.s32.totalorder %s30, 1
      %p69 = por %p67, %p68
      %p70 = scmp.ne.s32.totalorder %s61, %s62
      %p71 = scmp.eq.s32.totalorder %s30, 0
      %p72 = por %p70, %p71
      %p73 = scmp.ne.s32.totalorder %s61, %s62
      %p74 = scmp.eq.s32.totalorder %s31, 1
      %p75 = por %p73, %p74
      %p77 = scmp.ne.s32.totalorder %s62, %s76
      %p78 = scmp.eq.s32.totalorder %s31, 0
      %p79 = por %p77, %p78
      %s81 = sadd.s32 %s80, 1
      %p84 = scmp.eq.s32.totalorder %s25, 1
      %p85 = scmp.ne.s32.totalorder %s80, %s82
      %p86 = scmp.eq.s32.totalorder %s25, 0
      %p87 = por %p85, %p86
      %p88 = scmp.ne.s32.totalorder %s80, %s82
      %p89 = scmp.eq.s32.totalorder %s30, 1
      %p90 = por %p88, %p89
      %p91 = scmp.ne.s32.totalorder %s82, %s83
      %p92 = scmp.eq.s32.totalorder %s30, 0
      %p93 = por %p91, %p92
      %p94 = scmp.ne.s32.totalorder %s82, %s83
      %p95 = scmp.eq.s32.totalorder %s31, 1
      %p96 = por %p94, %p95
      %p98 = scmp.ne.s32.totalorder %s83, %s97
      %p99 = scmp.eq.s32.totalorder %s31, 0
      %p100 = por %p98, %p99
      %s102 = sadd.s32 %s101, 1
      %p105 = scmp.eq.s32.totalorder %s25, 1
      %p106 = scmp.ne.s32.totalorder %s101, %s103
      %p107 = scmp.eq.s32.totalorder %s25, 0
      %p108 = por %p106, %p107
      %p109 = scmp.ne.s32.totalorder %s101, %s103
      %p110 = scmp.eq.s32.totalorder %s30, 1
      %p111 = por %p109, %p110
      %p112 = scmp.ne.s32.totalorder %s103, %s104
      %p113 = scmp.eq.s32.totalorder %s30, 0
      %p114 = por %p112, %p113
      %p115 = scmp.ne.s32.totalorder %s103, %s104
      %p116 = scmp.eq.s32.totalorder %s31, 1
      %p117 = por %p115, %p116
      %p119 = scmp.ne.s32.totalorder %s104, %s118
      %p120 = scmp.eq.s32.totalorder %s31, 0
      %p121 = por %p119, %p120
      %s123 = sadd.s32 %s122, 1
      %p126 = scmp.eq.s32.totalorder %s25, 1
      %p127 = scmp.ne.s32.totalorder %s122, %s124
      %p128 = scmp.eq.s32.totalorder %s25, 0
      %p129 = por %p127, %p128
      %p130 = scmp.ne.s32.totalorder %s122, %s124
      %p131 = scmp.eq.s32.totalorder %s30, 1
      %p132 = por %p130, %p131
      %p133 = scmp.ne.s32.totalorder %s124, %s125
      %p134 = scmp.eq.s32.totalorder %s30, 0
      %p135 = por %p133, %p134
      %p136 = scmp.ne.s32.totalorder %s124, %s125
      %p137 = scmp.eq.s32.totalorder %s31, 1
      %p138 = por %p136, %p137
      %p140 = scmp.ne.s32.totalorder %s125, %s139
      %p141 = scmp.eq.s32.totalorder %s31, 0
      %p142 = por %p140, %p141
      %s144 = sadd.s32 %s143, 1
      %p147 = scmp.eq.s32.totalorder %s25, 1
      %p148 = scmp.ne.s32.totalorder %s143, %s145
      %p149 = scmp.eq.s32.totalorder %s25, 0
      %p150 = por %p148, %p149
      %p151 = scmp.ne.s32.totalorder %s143, %s145
      %p152 = scmp.eq.s32.totalorder %s30, 1
      %p153 = por %p151, %p152
      %p154 = scmp.ne.s32.totalorder %s145, %s146
      %p155 = scmp.eq.s32.totalorder %s30, 0
      %p156 = por %p154, %p155
      %p157 = scmp.ne.s32.totalorder %s145, %s146
      %p158 = scmp.eq.s32.totalorder %s31, 1
      %p159 = por %p157, %p158
      %p161 = scmp.ne.s32.totalorder %s146, %s160
      %p162 = scmp.eq.s32.totalorder %s31, 0
      %p163 = por %p161, %p162
      %s165 = sadd.s32 %s164, 1
      %p168 = scmp.eq.s32.totalorder %s25, 1
      %p169 = scmp.ne.s32.totalorder %s164, %s166
      %p170 = scmp.eq.s32.totalorder %s25, 0
      %p171 = por %p169, %p170
      %p172 = scmp.ne.s32.totalorder %s164, %s166
      %p173 = scmp.eq.s32.totalorder %s30, 1
      %p174 = por %p172, %p173
      %p175 = scmp.ne.s32.totalorder %s166, %s167
      %p176 = scmp.eq.s32.totalorder %s30, 0
      %p177 = por %p175, %p176
      %p178 = scmp.ne.s32.totalorder %s166, %s167
      %p179 = scmp.eq.s32.totalorder %s31, 1
      %p180 = por %p178, %p179
      %p182 = scmp.ne.s32.totalorder %s167, %s181
      %p183 = scmp.eq.s32.totalorder %s31, 0
      %p184 = por %p182, %p183
      %s186 = sadd.s32 %s185, 1
      %p189 = scmp.eq.s32.totalorder %s25, 1
      %p190 = scmp.ne.s32.totalorder %s185, %s187
      %p191 = scmp.eq.s32.totalorder %s25, 0
      %p192 = por %p190, %p191
      %p193 = scmp.ne.s32.totalorder %s185, %s187
      %p194 = scmp.eq.s32.totalorder %s30, 1
      %p195 = por %p193, %p194
      %p196 = scmp.ne.s32.totalorder %s187, %s188
      %p197 = scmp.eq.s32.totalorder %s30, 0
      %p198 = por %p196, %p197
      %p199 = scmp.ne.s32.totalorder %s187, %s188
      %p200 = scmp.eq.s32.totalorder %s31, 1
      %p201 = por %p199, %p200
      %p203 = scmp.ne.s32.totalorder %s188, %s202
      %p204 = scmp.eq.s32.totalorder %s31, 0
      %p205 = por %p203, %p204
      %s207 = sadd.s32 %s206, 1
      %p210 = scmp.eq.s32.totalorder %s25, 1
      %p211 = scmp.ne.s32.totalorder %s206, %s208
      %p212 = scmp.eq.s32.totalorder %s25, 0
      %p213 = por %p211, %p212
      %p214 = scmp.ne.s32.totalorder %s206, %s208
      %p215 = scmp.eq.s32.totalorder %s30, 1
      %p216 = por %p214, %p215
      %p217 = scmp.ne.s32.totalorder %s208, %s209
      %p218 = scmp.eq.s32.totalorder %s30, 0
      %p219 = por %p217, %p218
      %p220 = scmp.ne.s32.totalorder %s208, %s209
      %p221 = scmp.eq.s32.totalorder %s31, 1
      %p222 = por %p220, %p221
      %p224 = scmp.ne.s32.totalorder %s209, %s223
      %p225 = scmp.eq.s32.totalorder %s31, 0
      %p226 = por %p224, %p225
      %s228 = sadd.s32 %s227, 1
      %p231 = scmp.eq.s32.totalorder %s25, 1
      %p232 = scmp.ne.s32.totalorder %s227, %s229
      %p233 = scmp.eq.s32.totalorder %s25, 0
      %p234 = por %p232, %p233
      %p235 = scmp.ne.s32.totalorder %s227, %s229
      %p236 = scmp.eq.s32.totalorder %s30, 1
      %p237 = por %p235, %p236
      %p238 = scmp.ne.s32.totalorder %s229, %s230
      %p239 = scmp.eq.s32.totalorder %s30, 0
      %p240 = por %p238, %p239
      %p241 = scmp.ne.s32.totalorder %s229, %s230
      %p242 = scmp.eq.s32.totalorder %s31, 1
      %p243 = por %p241, %p242
      %p245 = scmp.ne.s32.totalorder %s230, %s244
      %p246 = scmp.eq.s32.totalorder %s31, 0
      %p247 = por %p245, %p246
      %s249 = sadd.s32 %s248, 1
      %p252 = scmp.eq.s32.totalorder %s25, 1
      %p253 = scmp.ne.s32.totalorder %s248, %s250
      %p254 = scmp.eq.s32.totalorder %s25, 0
      %p255 = por %p253, %p254
      %p256 = scmp.ne.s32.totalorder %s248, %s250
      %p257 = scmp.eq.s32.totalorder %s30, 1
      %p258 = por %p256, %p257
      %p259 = scmp.ne.s32.totalorder %s250, %s251
      %p260 = scmp.eq.s32.totalorder %s30, 0
      %p261 = por %p259, %p260
      %p262 = scmp.ne.s32.totalorder %s250, %s251
      %p263 = scmp.eq.s32.totalorder %s31, 1
      %p264 = por %p262, %p263
      %p266 = scmp.ne.s32.totalorder %s251, %s265
      %p267 = scmp.eq.s32.totalorder %s31, 0
      %p268 = por %p266, %p267
      %s270 = sadd.s32 %s269, 1
      %p273 = scmp.eq.s32.totalorder %s25, 1
      %p274 = scmp.ne.s32.totalorder %s269, %s271
      %p275 = scmp.eq.s32.totalorder %s25, 0
      %p276 = por %p274, %p275
      %p277 = scmp.ne.s32.totalorder %s269, %s271
      %p278 = scmp.eq.s32.totalorder %s30, 1
      %p279 = por %p277, %p278
      %p280 = scmp.ne.s32.totalorder %s271, %s272
      %p281 = scmp.eq.s32.totalorder %s30, 0
      %p282 = por %p280, %p281
      %p283 = scmp.ne.s32.totalorder %s271, %s272
      %p284 = scmp.eq.s32.totalorder %s31, 1
      %p285 = por %p283, %p284
      %p287 = scmp.ne.s32.totalorder %s272, %s286
      %p288 = scmp.eq.s32.totalorder %s31, 0
      %p289 = por %p287, %p288
      %s291 = sadd.s32 %s290, 1
      %p294 = scmp.eq.s32.totalorder %s25, 1
      %p295 = scmp.ne.s32.totalorder %s290, %s292
      %p296 = scmp.eq.s32.totalorder %s25, 0
      %p297 = por %p295, %p296
      %p298 = scmp.ne.s32.totalorder %s290, %s292
      %p299 = scmp.eq.s32.totalorder %s30, 1
      %p300 = por %p298, %p299
      %p301 = scmp.ne.s32.totalorder %s292, %s293
      %p302 = scmp.eq.s32.totalorder %s30, 0
      %p303 = por %p301, %p302
      %p304 = scmp.ne.s32.totalorder %s292, %s293
      %p305 = scmp.eq.s32.totalorder %s31, 1
      %p306 = por %p304, %p305
      %p308 = scmp.ne.s32.totalorder %s293, %s307
      %p309 = scmp.eq.s32.totalorder %s31, 0
      %p310 = por %p308, %p309
      %s311 = ssub.s32 %s25, %s32
      %p312 = scmp.eq.s32.totalorder %s311, 0
      %s314 = sadd.s32 %s313, 1
      %s315 = scalar_select %p312, %s313, %s314
      %p318 = pneg %p312
      %p319 = scmp.eq.s32.totalorder %s25, 1
      %p320 = por %p318, %p319
      %p321 = scmp.ne.s32.totalorder %s313, %s316
      %p322 = scmp.eq.s32.totalorder %s25, 0
      %p323 = por %p321, %p322
      %p324 = scmp.ne.s32.totalorder %s313, %s316
      %p325 = scmp.eq.s32.totalorder %s30, 1
      %p326 = por %p324, %p325
      %p327 = scmp.ne.s32.totalorder %s316, %s317
      %p328 = scmp.eq.s32.totalorder %s30, 0
      %p329 = por %p327, %p328
      %p330 = scmp.ne.s32.totalorder %s316, %s317
      %p331 = scmp.eq.s32.totalorder %s31, 1
      %p332 = por %p330, %p331
      %p334 = scmp.ne.s32.totalorder %s317, %s333
      %p335 = scmp.eq.s32.totalorder %s31, 0
      %p336 = por %p334, %p335
      %p337 = scmp.le.s32.totalorder 1, %s25
      %p338 = scmp.lt.s32.totalorder %s25, 3
      %p339 = pnand %p337, %p338
      %p340 = pneg %p339
      // Predicated region
      $region9: #{tpu_custom_call.1} parent=5 // pred_check
        _
      $region10: #{tpu_custom_call.1} parent=5 // pred_check_branch
        %342 = sbr.rel (%p339) target = $region12
      $region11: #{tpu_custom_call.1} parent=5 // pred_region
        %s343 = ssub.s32 %s25, 1
        // Predicated region
        $region13: #{tpu_custom_call.1} parent=11 // pred_check
          %p344 = pneg %p72
        $region14: #{tpu_custom_call.1} parent=11 // pred_check_branch
          %346 = sbr.rel (%p344) target = $region16
        $region15: #{tpu_custom_call.1} parent=11 // pred_region
          _
        $region16: #{tpu_custom_call.1} parent=11 // pred_fallthru
          _
        // Predicated region
        $region17: #{tpu_custom_call.1} parent=11 // pred_check
          %p347 = pneg %p93
        $region18: #{tpu_custom_call.1} parent=11 // pred_check_branch
          %349 = sbr.rel (%p347) target = $region20
        $region19: #{tpu_custom_call.1} parent=11 // pred_region
          _
        $region20: #{tpu_custom_call.1} parent=11 // pred_fallthru
          _
        // Predicated region
        $region21: #{tpu_custom_call.1} parent=11 // pred_check
          %p350 = pneg %p114
        $region22: #{tpu_custom_call.1} parent=11 // pred_check_branch
          %352 = sbr.rel (%p350) target = $region24
        $region23: #{tpu_custom_call.1} parent=11 // pred_region
          _
        $region24: #{tpu_custom_call.1} parent=11 // pred_fallthru
          _
        // Predicated region
        $region25: #{tpu_custom_call.1} parent=11 // pred_check
          %p353 = pneg %p135
        $region26: #{tpu_custom_call.1} parent=11 // pred_check_branch
          %355 = sbr.rel (%p353) target = $region28
        $region27: #{tpu_custom_call.1} parent=11 // pred_region
          _
        $region28: #{tpu_custom_call.1} parent=11 // pred_fallthru
          _
        // Predicated region
        $region29: #{tpu_custom_call.1} parent=11 // pred_check
          %p356 = pneg %p156
        $region30: #{tpu_custom_call.1} parent=11 // pred_check_branch
          %358 = sbr.rel (%p356) target = $region32
        $region31: #{tpu_custom_call.1} parent=11 // pred_region
          _
        $region32: #{tpu_custom_call.1} parent=11 // pred_fallthru
          _
        // Predicated region
        $region33: #{tpu_custom_call.1} parent=11 // pred_check
          %p359 = pneg %p177
        $region34: #{tpu_custom_call.1} parent=11 // pred_check_branch
          %361 = sbr.rel (%p359) target = $region36
        $region35: #{tpu_custom_call.1} parent=11 // pred_region
          _
        $region36: #{tpu_custom_call.1} parent=11 // pred_fallthru
          _
        // Predicated region
        $region37: #{tpu_custom_call.1} parent=11 // pred_check
          %p362 = pneg %p198
        $region38: #{tpu_custom_call.1} parent=11 // pred_check_branch
          %364 = sbr.rel (%p362) target = $region40
        $region39: #{tpu_custom_call.1} parent=11 // pred_region
          %s366 = ssub.s32 16, 16
          %367 = vsyncadd [#allocation3], %s366
          %s369 = sshll.u32 [#allocation2], 4
          %s370 = int_to_ptr.vmem [resolvable:$true] %s369
          %372 = dma.hbm_to_vmem [thread:$0]  %s7, 16, %s370, [#allocation3]
        $region40: #{tpu_custom_call.1} parent=11 // pred_fallthru
          _
        // Predicated region
        $region41: #{tpu_custom_call.1} parent=11 // pred_check
          %p373 = pneg %p219
        $region42: #{tpu_custom_call.1} parent=11 // pred_check_branch
          %375 = sbr.rel (%p373) target = $region44
        $region43: #{tpu_custom_call.1} parent=11 // pred_region
          %s377 = ssub.s32 16, 16
          %378 = vsyncadd [#allocation6], %s377
          %s380 = sshll.u32 [#allocation5], 4
          %s381 = int_to_ptr.vmem [resolvable:$true] %s380
          %383 = dma.hbm_to_vmem [thread:$0]  %s8, 16, %s381, [#allocation6]
        $region44: #{tpu_custom_call.1} parent=11 // pred_fallthru
          _
        // Predicated region
        $region45: #{tpu_custom_call.1} parent=11 // pred_check
          %p384 = pneg %p240
        $region46: #{tpu_custom_call.1} parent=11 // pred_check_branch
          %386 = sbr.rel (%p384) target = $region48
        $region47: #{tpu_custom_call.1} parent=11 // pred_region
          %s388 = ssub.s32 256, 256
          %389 = vsyncadd [#allocation6], %s388
          %s390 = sshll.u32 [#allocation7], 4
          %s391 = int_to_ptr.vmem [resolvable:$true] %s390
          %396 = dma.hbm_to_vmem [thread:$0]  %s9, 256, %s391, [#allocation6], 64, 64, 4
        $region48: #{tpu_custom_call.1} parent=11 // pred_fallthru
          _
        // Predicated region
        $region49: #{tpu_custom_call.1} parent=11 // pred_check
          %p397 = pneg %p261
        $region50: #{tpu_custom_call.1} parent=11 // pred_check_branch
          %399 = sbr.rel (%p397) target = $region52
        $region51: #{tpu_custom_call.1} parent=11 // pred_region
          %s401 = ssub.s32 16, 16
          %402 = vsyncadd [#allocation9], %s401
          %s404 = sshll.u32 [#allocation8], 4
          %s405 = int_to_ptr.vmem [resolvable:$true] %s404
          %407 = dma.hbm_to_vmem [thread:$0]  %s10, 16, %s405, [#allocation9]
        $region52: #{tpu_custom_call.1} parent=11 // pred_fallthru
          _
        // Predicated region
        $region53: #{tpu_custom_call.1} parent=11 // pred_check
          %p408 = pneg %p282
        $region54: #{tpu_custom_call.1} parent=11 // pred_check_branch
          %410 = sbr.rel (%p408) target = $region56
        $region55: #{tpu_custom_call.1} parent=11 // pred_region
          _
        $region56: #{tpu_custom_call.1} parent=11 // pred_fallthru
          _
        // Predicated region
        $region57: #{tpu_custom_call.1} parent=11 // pred_check
          %p411 = pneg %p303
        $region58: #{tpu_custom_call.1} parent=11 // pred_check_branch
          %413 = sbr.rel (%p411) target = $region60
        $region59: #{tpu_custom_call.1} parent=11 // pred_region
          _
        $region60: #{tpu_custom_call.1} parent=11 // pred_fallthru
          _
      $region12: #{tpu_custom_call.1} parent=5 // pred_fallthru
        _
      %p414 = scmp.lt.s32.totalorder %s25, 2
      // Predicated region
      $region61: #{tpu_custom_call.1} parent=5 // pred_check
        %p415 = pneg %p414
      $region62: #{tpu_custom_call.1} parent=5 // pred_check_branch
        %417 = sbr.rel (%p415) target = $region64
      $region63: #{tpu_custom_call.1} parent=5 // pred_region
        // Predicated region
        $region65: #{tpu_custom_call.1} parent=63 // pred_check
          %p418 = pneg %p45
        $region66: #{tpu_custom_call.1} parent=63 // pred_check_branch
          %420 = sbr.rel (%p418) target = $region68
        $region67: #{tpu_custom_call.1} parent=63 // pred_region
          %p421 = scmp.lt.s32.totalorder %s25, 1
          %s422 = scalar_select %p421, %s25, 1
          %s423 = smul.addr %s422, 8
          %s424 = scalar_lea.vmem %s0, %s423
        $region68: #{tpu_custom_call.1} parent=63 // pred_fallthru
          _
      $region64: #{tpu_custom_call.1} parent=5 // pred_fallthru
        _
      %p425 = scmp.le.s32.totalorder 1, %s25
      %p426 = scmp.lt.s32.totalorder %s25, 3
      %p427 = pnand %p425, %p426
      %p428 = pneg %p427
      // Predicated region
      $region69: #{tpu_custom_call.1} parent=5 // pred_check
        _
      $region70: #{tpu_custom_call.1} parent=5 // pred_check_branch
        %430 = sbr.rel (%p427) target = $region72
      $region71: #{tpu_custom_call.1} parent=5 // pred_region
        %s431 = ssub.s32 %s25, 1
        // Predicated region
        $region73: #{tpu_custom_call.1} parent=71 // pred_check
          %p432 = pneg %p198
        $region74: #{tpu_custom_call.1} parent=71 // pred_check_branch
          %434 = sbr.rel (%p432) target = $region76
        $region75: #{tpu_custom_call.1} parent=71 // pred_region
          %435 = dma.done [#allocation3], 16
        $region76: #{tpu_custom_call.1} parent=71 // pred_fallthru
          _
        // Predicated region
        $region77: #{tpu_custom_call.1} parent=71 // pred_check
          %p436 = pneg %p219
        $region78: #{tpu_custom_call.1} parent=71 // pred_check_branch
          %438 = sbr.rel (%p436) target = $region80
        $region79: #{tpu_custom_call.1} parent=71 // pred_region
          %439 = dma.done [#allocation6], 16
        $region80: #{tpu_custom_call.1} parent=71 // pred_fallthru
          _
        // Predicated region
        $region81: #{tpu_custom_call.1} parent=71 // pred_check
          %p440 = pneg %p240
        $region82: #{tpu_custom_call.1} parent=71 // pred_check_branch
          %442 = sbr.rel (%p440) target = $region84
        $region83: #{tpu_custom_call.1} parent=71 // pred_region
          %443 = dma.done [#allocation6], 256
        $region84: #{tpu_custom_call.1} parent=71 // pred_fallthru
          _
        // Predicated region
        $region85: #{tpu_custom_call.1} parent=71 // pred_check
          %p444 = pneg %p261
        $region86: #{tpu_custom_call.1} parent=71 // pred_check_branch
          %446 = sbr.rel (%p444) target = $region88
        $region87: #{tpu_custom_call.1} parent=71 // pred_region
          %447 = dma.done [#allocation9], 16
        $region88: #{tpu_custom_call.1} parent=71 // pred_fallthru
          _
        %p448 = scmp.lt.s32.totalorder %s30, 1
        %s449 = scalar_select %p448, %s30, 1
        %s450 = smul.addr %s449, 8
        %s451 = scalar_lea.vmem %s0, %s450
        %p452 = pneg %p51
        %p453 = pneg %p48
        %p454 = pneg %p72
        %p455 = pneg %p69
        %p456 = pneg %p93
        %p457 = pneg %p90
        %p458 = pneg %p114
        %p459 = pneg %p111
        %p460 = pneg %p135
        %p461 = pneg %p132
        %p462 = pneg %p156
        %p463 = pneg %p153
        %p464 = pneg %p177
        %p465 = pneg %p174
        %p466 = pneg %p198
        %p467 = pneg %p195
        %p468 = pneg %p219
        %p469 = pneg %p216
        %p470 = pneg %p240
        %p471 = pneg %p237
        %p472 = pneg %p261
        %p473 = pneg %p258
        %p474 = pneg %p282
        %p475 = pneg %p279
        %p476 = pneg %p303
        %p477 = pneg %p300
        %p478 = pneg %p329
        %p479 = pneg %p326
        %s480 = sand.u32 %s316, 1
        %s481 = scalar_lea.sflag [#allocation4], %s480
        %s482 = sand.u32 %s316, 1
        %s483 = smul.addr %s482, 8
        %s484 = scalar_lea.vmem [#allocation10], %s483
        %p485 = scmp.lt.s32.totalorder %s30, 1
        %s486 = scalar_select %p485, %s30, 1
        %s487 = smul.addr %s486, 8
        %s488 = scalar_lea.vmem %s0, %s487
        %v490 = vld [vmem:[%s488] sm:$0xff]
        %v491 = vld [vmem:[%s1] sm:$0x1]
        %v492 = vld [vmem:[%s2] sm:$0x1]
        %vm493 = vcmask 261120
        %v494 = vsel %vm493, %v490, 0.0
        %495 = vadd.xlane.f32.xlu0 %v494
        %v496 = vpop.xlane.xlu0 %495
        %v497 = vrcp.pop 32.0
        %v498 = vmul.f32 %v496, %v497
        %v499 = vsub.f32 %v490, %v498
        %v500 = vmul.f32 %v499, %v499
        %v501 = vsel %vm493, %v500, 0.0
        %502 = vadd.xlane.f32.xlu0 %v501
        %v503 = vpop.xlane.xlu0 %502
        %v504 = vmul.f32 %v503, %v497
        %v505 = vadd.f32 %v504, 1e-06
        %v506 = vrsqrt.pop %v505
        %v507 = vmul.f32 %v499, %v506
        %v509 = vlaneseq
        %v510 = vshrl.u32 %v509, 7
        %v511 = vsub.s32 0, %v510
        %v512 = vrot.slane %v491, %v511
        %v514 = vmul.f32 %v507, %v512
        %v516 = vlaneseq
        %v517 = vshrl.u32 %v516, 7
        %v518 = vsub.s32 0, %v517
        %v519 = vrot.slane %v492, %v518
        %v521 = vadd.f32 %v514, %v519
        %v522 = vpack.c.bf16 %v521, %v521
        %v523 = vld [vmem:[%s3] sm:$0xf]
        %v524 = vld [vmem:[%s3 + $0x4] sm:$0xf]
        %v525 = vld [vmem:[%s3 + $0x8] sm:$0xf]
        %v526 = vld [vmem:[%s3 + $0xc] sm:$0xf]
        %v527 = vld [vmem:[%s4] sm:$0x1]
        %v529 = vlaneseq
        %v530 = vshrl.u32 %v529, 7
        %v531 = vsub.s32 0, %v530
        %v532 = vrot.slane %v527, %v531
        %v538 = vunpack.c.l.b16 %v523
        %v539 = vunpack.c.l.b16 %v524
        %v540 = vunpack.c.l.b16 %v525
        %v541 = vunpack.c.l.b16 %v526
        %v542 = vpack.c.b16 %v539, %v538
        %v543 = vpack.c.b16 %v541, %v540
        %v547 = vsel %vm493, %v522, 0
        %549 = vmatprep.subr.bf16.mxu0 0
        %550 = vmatpush1.bf16.msra.mxu0 0
        %551 = vmatprep.subr.bf16.mxu0 0
        %552 = vmatpush1.bf16.msra.mxu0 0
        %553 = vmatprep.subr.bf16.mxu0 0
        %554 = vmatpush1.bf16.msra.mxu0 0
        %555 = vmatprep.subr.bf16.mxu0 0
        %556 = vmatpush1.bf16.msra.mxu0 0
        %557 = vmatprep.subr.bf16.mxu0 0
        %558 = vmatpush1.bf16.msra.mxu0 0
        %559 = vmatprep.subr.bf16.mxu0 0
        %560 = vmatpush1.bf16.msra.mxu0 0
        %561 = vmatprep.subr.bf16.mxu0 0
        %562 = vmatpush1.bf16.msra.mxu0 %v543
        %563 = vmatprep.subr.bf16.mxu0 0
        %564 = vmatpush1.bf16.msra.mxu0 %v542
        %565 = vmatprep.subr.bf16.mxu0 0
        %566 = vmatpush2.bf16.msra.mxu0 0
        %567 = vmatprep.subr.bf16.mxu0 0
        %568 = vmatpush2.bf16.msra.mxu0 0
        %569 = vmatprep.subr.bf16.mxu0 0
        %570 = vmatpush2.bf16.msra.mxu0 0
        %571 = vmatprep.subr.bf16.mxu0 0
        %572 = vmatpush2.bf16.msra.mxu0 0
        %573 = vmatprep.subr.bf16.mxu0 0
        %574 = vmatpush2.bf16.msra.mxu0 0
        %575 = vmatprep.subr.bf16.mxu0 0
        %576 = vmatpush2.bf16.msra.mxu0 0
        %577 = vmatprep.subr.bf16.mxu0 0
        %578 = vmatpush2.bf16.msra.mxu0 0
        %579 = vmatprep.subr.bf16.mxu0 0
        %580 = vmatpush2.bf16.msra.mxu0 0
        %581 = vmatprep.mubr.bf16.mxu0 0
        %582 = vmatmul.mubr.bf16.gmra.mxu0 %v547
        %v583 = vpop.f32.mrf.mxu0
        %v584 = vadd.f32 %v532, %v583
        %v585 = vpop.f32.mrf.mxu0
        %v586 = vpop.f32.mrf.mxu0
        %v587 = vpop.f32.mrf.mxu0
        %588 = vdwg.mxu0
        %590 = vrot.lane.b32.xlu0 %v584, 120
        %v591 = vpop.permute.xlu0 %590
        %593 = vrot.lane.b32.xlu0 %v584, 112
        %v594 = vpop.permute.xlu0 %593
        %596 = vrot.lane.b32.xlu0 %v584, 104
        %v597 = vpop.permute.xlu0 %596
        %v599 = vpack.c.bf16 %v584, %v584
        %v600 = vpack.c.bf16 %v591, %v591
        %v601 = vpack.c.bf16 %v594, %v594
        %v602 = vpack.c.bf16 %v597, %v597
        %604 = vrot.lane.b32.xlu0 %v599, 96
        %v605 = vpop.permute.xlu0 %604
        %vm606 = vcmask 64512
        %v608 = vsel %vm606, %v599, 0
        %v611 = vsel %vm606, %v605, 0
        %613 = vmatprep.subr.bf16.mxu0 0
        %614 = vmatpush1.bf16.xpose.msra.mxu0 0
        %615 = vmatprep.subr.bf16.mxu0 0
        %616 = vmatpush1.bf16.xpose.msra.mxu0 0
        %617 = vmatprep.subr.bf16.mxu0 0
        %618 = vmatpush1.bf16.xpose.msra.mxu0 0
        %619 = vmatprep.subr.bf16.mxu0 0
        %620 = vmatpush1.bf16.xpose.msra.mxu0 0
        %621 = vmatprep.subr.bf16.mxu0 0
        %622 = vmatpush1.bf16.xpose.msra.mxu0 0
        %623 = vmatprep.subr.bf16.mxu0 0
        %624 = vmatpush1.bf16.xpose.msra.mxu0 0
        %625 = vmatprep.subr.bf16.mxu0 0
        %626 = vmatpush1.bf16.xpose.msra.mxu0 0
        %627 = vmatprep.subr.bf16.mxu0 0
        %628 = vmatpush1.bf16.xpose.msra.mxu0 %v611
        %629 = vmatprep.subr.bf16.mxu0 0
        %630 = vmatpush2.bf16.xpose.msra.mxu0 0
        %631 = vmatprep.subr.bf16.mxu0 0
        %632 = vmatpush2.bf16.xpose.msra.mxu0 0
        %633 = vmatprep.subr.bf16.mxu0 0
        %634 = vmatpush2.bf16.xpose.msra.mxu0 0
        %635 = vmatprep.subr.bf16.mxu0 0
        %636 = vmatpush2.bf16.xpose.msra.mxu0 0
        %637 = vmatprep.subr.bf16.mxu0 0
        %638 = vmatpush2.bf16.xpose.msra.mxu0 0
        %639 = vmatprep.subr.bf16.mxu0 0
        %640 = vmatpush2.bf16.xpose.msra.mxu0 0
        %641 = vmatprep.subr.bf16.mxu0 0
        %642 = vmatpush2.bf16.xpose.msra.mxu0 0
        %643 = vmatprep.subr.bf16.mxu0 0
        %644 = vmatpush2.bf16.xpose.msra.mxu0 0
        %645 = vmatprep.mubr.bf16.mxu0 0
        %646 = vmatmul.mubr.bf16.gmra.mxu0 %v608
        %v647 = vpop.f32.mrf.mxu0
        %v648 = vadd.f32 0.0, %v647
        %v649 = vpop.f32.mrf.mxu0
        %v650 = vpop.f32.mrf.mxu0
        %v651 = vpop.f32.mrf.mxu0
        %652 = vdwg.mxu0
        %654 = vrot.lane.b32.xlu0 %v600, 96
        %v655 = vpop.permute.xlu0 %654
        %v657 = vsel %vm606, %v600, 0
        %v660 = vsel %vm606, %v655, 0
        %662 = vmatprep.subr.bf16.mxu0 0
        %663 = vmatpush1.bf16.xpose.msra.mxu0 0
        %664 = vmatprep.subr.bf16.mxu0 0
        %665 = vmatpush1.bf16.xpose.msra.mxu0 0
        %666 = vmatprep.subr.bf16.mxu0 0
        %667 = vmatpush1.bf16.xpose.msra.mxu0 0
        %668 = vmatprep.subr.bf16.mxu0 0
        %669 = vmatpush1.bf16.xpose.msra.mxu0 0
        %670 = vmatprep.subr.bf16.mxu0 0
        %671 = vmatpush1.bf16.xpose.msra.mxu0 0
        %672 = vmatprep.subr.bf16.mxu0 0
        %673 = vmatpush1.bf16.xpose.msra.mxu0 0
        %674 = vmatprep.subr.bf16.mxu0 0
        %675 = vmatpush1.bf16.xpose.msra.mxu0 0
        %676 = vmatprep.subr.bf16.mxu0 0
        %677 = vmatpush1.bf16.xpose.msra.mxu0 %v660
        %678 = vmatprep.subr.bf16.mxu0 0
        %679 = vmatpush2.bf16.xpose.msra.mxu0 0
        %680 = vmatprep.subr.bf16.mxu0 0
        %681 = vmatpush2.bf16.xpose.msra.mxu0 0
        %682 = vmatprep.subr.bf16.mxu0 0
        %683 = vmatpush2.bf16.xpose.msra.mxu0 0
        %684 = vmatprep.subr.bf16.mxu0 0
        %685 = vmatpush2.bf16.xpose.msra.mxu0 0
        %686 = vmatprep.subr.bf16.mxu0 0
        %687 = vmatpush2.bf16.xpose.msra.mxu0 0
        %688 = vmatprep.subr.bf16.mxu0 0
        %689 = vmatpush2.bf16.xpose.msra.mxu0 0
        %690 = vmatprep.subr.bf16.mxu0 0
        %691 = vmatpush2.bf16.xpose.msra.mxu0 0
        %692 = vmatprep.subr.bf16.mxu0 0
        %693 = vmatpush2.bf16.xpose.msra.mxu0 0
        %694 = vmatprep.mubr.bf16.mxu0 0
        %695 = vmatmul.mubr.bf16.gmra.mxu0 %v657
        %v696 = vpop.f32.mrf.mxu0
        %v697 = vadd.f32 0.0, %v696
        %v698 = vpop.f32.mrf.mxu0
        %v699 = vpop.f32.mrf.mxu0
        %v700 = vpop.f32.mrf.mxu0
        %701 = vdwg.mxu0
        %703 = vrot.lane.b32.xlu0 %v601, 96
        %v704 = vpop.permute.xlu0 %703
        %v706 = vsel %vm606, %v601, 0
        %v709 = vsel %vm606, %v704, 0
        %711 = vmatprep.subr.bf16.mxu0 0
        %712 = vmatpush1.bf16.xpose.msra.mxu0 0
        %713 = vmatprep.subr.bf16.mxu0 0
        %714 = vmatpush1.bf16.xpose.msra.mxu0 0
        %715 = vmatprep.subr.bf16.mxu0 0
        %716 = vmatpush1.bf16.xpose.msra.mxu0 0
        %717 = vmatprep.subr.bf16.mxu0 0
        %718 = vmatpush1.bf16.xpose.msra.mxu0 0
        %719 = vmatprep.subr.bf16.mxu0 0
        %720 = vmatpush1.bf16.xpose.msra.mxu0 0
        %721 = vmatprep.subr.bf16.mxu0 0
        %722 = vmatpush1.bf16.xpose.msra.mxu0 0
        %723 = vmatprep.subr.bf16.mxu0 0
        %724 = vmatpush1.bf16.xpose.msra.mxu0 0
        %725 = vmatprep.subr.bf16.mxu0 0
        %726 = vmatpush1.bf16.xpose.msra.mxu0 %v709
        %727 = vmatprep.subr.bf16.mxu0 0
        %728 = vmatpush2.bf16.xpose.msra.mxu0 0
        %729 = vmatprep.subr.bf16.mxu0 0
        %730 = vmatpush2.bf16.xpose.msra.mxu0 0
        %731 = vmatprep.subr.bf16.mxu0 0
        %732 = vmatpush2.bf16.xpose.msra.mxu0 0
        %733 = vmatprep.subr.bf16.mxu0 0
        %734 = vmatpush2.bf16.xpose.msra.mxu0 0
        %735 = vmatprep.subr.bf16.mxu0 0
        %736 = vmatpush2.bf16.xpose.msra.mxu0 0
        %737 = vmatprep.subr.bf16.mxu0 0
        %738 = vmatpush2.bf16.xpose.msra.mxu0 0
        %739 = vmatprep.subr.bf16.mxu0 0
        %740 = vmatpush2.bf16.xpose.msra.mxu0 0
        %741 = vmatprep.subr.bf16.mxu0 0
        %742 = vmatpush2.bf16.xpose.msra.mxu0 0
        %743 = vmatprep.mubr.bf16.mxu0 0
        %744 = vmatmul.mubr.bf16.gmra.mxu0 %v706
        %v745 = vpop.f32.mrf.mxu0
        %v746 = vadd.f32 0.0, %v745
        %v747 = vpop.f32.mrf.mxu0
        %v748 = vpop.f32.mrf.mxu0
        %v749 = vpop.f32.mrf.mxu0
        %750 = vdwg.mxu0
        %752 = vrot.lane.b32.xlu0 %v602, 96
        %v753 = vpop.permute.xlu0 %752
        %v755 = vsel %vm606, %v602, 0
        %v758 = vsel %vm606, %v753, 0
        %760 = vmatprep.subr.bf16.mxu0 0
        %761 = vmatpush1.bf16.xpose.msra.mxu0 0
        %762 = vmatprep.subr.bf16.mxu0 0
        %763 = vmatpush1.bf16.xpose.msra.mxu0 0
        %764 = vmatprep.subr.bf16.mxu0 0
        %765 = vmatpush1.bf16.xpose.msra.mxu0 0
        %766 = vmatprep.subr.bf16.mxu0 0
        %767 = vmatpush1.bf16.xpose.msra.mxu0 0
        %768 = vmatprep.subr.bf16.mxu0 0
        %769 = vmatpush1.bf16.xpose.msra.mxu0 0
        %770 = vmatprep.subr.bf16.mxu0 0
        %771 = vmatpush1.bf16.xpose.msra.mxu0 0
        %772 = vmatprep.subr.bf16.mxu0 0
        %773 = vmatpush1.bf16.xpose.msra.mxu0 0
        %774 = vmatprep.subr.bf16.mxu0 0
        %775 = vmatpush1.bf16.xpose.msra.mxu0 %v758
        %776 = vmatprep.subr.bf16.mxu0 0
        %777 = vmatpush2.bf16.xpose.msra.mxu0 0
        %778 = vmatprep.subr.bf16.mxu0 0
        %779 = vmatpush2.bf16.xpose.msra.mxu0 0
        %780 = vmatprep.subr.bf16.mxu0 0
        %781 = vmatpush2.bf16.xpose.msra.mxu0 0
        %782 = vmatprep.subr.bf16.mxu0 0
        %783 = vmatpush2.bf16.xpose.msra.mxu0 0
        %784 = vmatprep.subr.bf16.mxu0 0
        %785 = vmatpush2.bf16.xpose.msra.mxu0 0
        %786 = vmatprep.subr.bf16.mxu0 0
        %787 = vmatpush2.bf16.xpose.msra.mxu0 0
        %788 = vmatprep.subr.bf16.mxu0 0
        %789 = vmatpush2.bf16.xpose.msra.mxu0 0
        %790 = vmatprep.subr.bf16.mxu0 0
        %791 = vmatpush2.bf16.xpose.msra.mxu0 0
        %792 = vmatprep.mubr.bf16.mxu0 0
        %793 = vmatmul.mubr.bf16.gmra.mxu0 %v755
        %v794 = vpop.f32.mrf.mxu0
        %v795 = vadd.f32 0.0, %v794
        %v796 = vpop.f32.mrf.mxu0
        %v797 = vpop.f32.mrf.mxu0
        %v798 = vpop.f32.mrf.mxu0
        %799 = vdwg.mxu0
        %v800 = vsel %vm606, %v648, -inf
        %801 = vmax.xlane.f32.xlu0 %v800
        %v802 = vpop.xlane.xlu0 %801
        %v803 = vsel %vm606, %v697, -inf
        %804 = vmax.xlane.f32.xlu0 %v803
        %v805 = vpop.xlane.xlu0 %804
        %v806 = vsel %vm606, %v746, -inf
        %807 = vmax.xlane.f32.xlu0 %v806
        %v808 = vpop.xlane.xlu0 %807
        %v809 = vsel %vm606, %v795, -inf
        %810 = vmax.xlane.f32.xlu0 %v809
        %v811 = vpop.xlane.xlu0 %810
        %v812 = vsub.f32 %v648, %v802
        %v813 = vsub.f32 %v697, %v805
        %v814 = vsub.f32 %v746, %v808
        %v815 = vsub.f32 %v795, %v811
        %v816 = vmul.f32 %v812, 1.442695
        %v817 = vpow.pop %v816
        %v818 = vmul.f32 %v813, 1.442695
        %v819 = vpow.pop %v818
        %v820 = vmul.f32 %v814, 1.442695
        %v821 = vpow.pop %v820
        %v822 = vmul.f32 %v815, 1.442695
        %v823 = vpow.pop %v822
        %v824 = vsel %vm606, %v817, 0.0
        %825 = vadd.xlane.f32.xlu0 %v824
        %v826 = vpop.xlane.xlu0 %825
        %v827 = vsel %vm606, %v819, 0.0
        %828 = vadd.xlane.f32.xlu0 %v827
        %v829 = vpop.xlane.xlu0 %828
        %v830 = vsel %vm606, %v821, 0.0
        %831 = vadd.xlane.f32.xlu0 %v830
        %v832 = vpop.xlane.xlu0 %831
        %v833 = vsel %vm606, %v823, 0.0
        %834 = vadd.xlane.f32.xlu0 %v833
        %v835 = vpop.xlane.xlu0 %834
        %v836 = vpack.c.bf16 %v817, %v817
        %v837 = vpack.c.bf16 %v819, %v819
        %v838 = vpack.c.bf16 %v821, %v821
        %v839 = vpack.c.bf16 %v823, %v823
        %840 = vrot.lane.b32.xlu0 %v599, 64
        %v841 = vpop.permute.xlu0 %840
        %v843 = vsel %vm606, %v836, 0
        %vm845 = vcmask 1043456
        %v847 = vsel %vm845, %v841, 0
        %849 = vmatprep.subr.bf16.mxu0 0
        %850 = vmatpush1.bf16.msra.mxu0 0
        %851 = vmatprep.subr.bf16.mxu0 0
        %852 = vmatpush1.bf16.msra.mxu0 0
        %853 = vmatprep.subr.bf16.mxu0 0
        %854 = vmatpush1.bf16.msra.mxu0 0
        %855 = vmatprep.subr.bf16.mxu0 0
        %856 = vmatpush1.bf16.msra.mxu0 0
        %857 = vmatprep.subr.bf16.mxu0 0
        %858 = vmatpush1.bf16.msra.mxu0 0
        %859 = vmatprep.subr.bf16.mxu0 0
        %860 = vmatpush1.bf16.msra.mxu0 0
        %861 = vmatprep.subr.bf16.mxu0 0
        %862 = vmatpush1.bf16.msra.mxu0 0
        %863 = vmatprep.subr.bf16.mxu0 0
        %864 = vmatpush1.bf16.msra.mxu0 %v847
        %865 = vmatprep.subr.bf16.mxu0 0
        %866 = vmatpush2.bf16.msra.mxu0 0
        %867 = vmatprep.subr.bf16.mxu0 0
        %868 = vmatpush2.bf16.msra.mxu0 0
        %869 = vmatprep.subr.bf16.mxu0 0
        %870 = vmatpush2.bf16.msra.mxu0 0
        %871 = vmatprep.subr.bf16.mxu0 0
        %872 = vmatpush2.bf16.msra.mxu0 0
        %873 = vmatprep.subr.bf16.mxu0 0
        %874 = vmatpush2.bf16.msra.mxu0 0
        %875 = vmatprep.subr.bf16.mxu0 0
        %876 = vmatpush2.bf16.msra.mxu0 0
        %877 = vmatprep.subr.bf16.mxu0 0
        %878 = vmatpush2.bf16.msra.mxu0 0
        %879 = vmatprep.subr.bf16.mxu0 0
        %880 = vmatpush2.bf16.msra.mxu0 0
        %881 = vmatprep.mubr.bf16.mxu0 0
        %882 = vmatmul.mubr.bf16.gmra.mxu0 %v843
        %v883 = vpop.f32.mrf.mxu0
        %v884 = vadd.f32 0.0, %v883
        %v885 = vpop.f32.mrf.mxu0
        %v886 = vpop.f32.mrf.mxu0
        %v887 = vpop.f32.mrf.mxu0
        %888 = vdwg.mxu0
        %889 = vrot.lane.b32.xlu0 %v600, 64
        %v890 = vpop.permute.xlu0 %889
        %v892 = vsel %vm606, %v837, 0
        %v895 = vsel %vm845, %v890, 0
        %897 = vmatprep.subr.bf16.mxu0 0
        %898 = vmatpush1.bf16.msra.mxu0 0
        %899 = vmatprep.subr.bf16.mxu0 0
        %900 = vmatpush1.bf16.msra.mxu0 0
        %901 = vmatprep.subr.bf16.mxu0 0
        %902 = vmatpush1.bf16.msra.mxu0 0
        %903 = vmatprep.subr.bf16.mxu0 0
        %904 = vmatpush1.bf16.msra.mxu0 0
        %905 = vmatprep.subr.bf16.mxu0 0
        %906 = vmatpush1.bf16.msra.mxu0 0
        %907 = vmatprep.subr.bf16.mxu0 0
        %908 = vmatpush1.bf16.msra.mxu0 0
        %909 = vmatprep.subr.bf16.mxu0 0
        %910 = vmatpush1.bf16.msra.mxu0 0
        %911 = vmatprep.subr.bf16.mxu0 0
        %912 = vmatpush1.bf16.msra.mxu0 %v895
        %913 = vmatprep.subr.bf16.mxu0 0
        %914 = vmatpush2.bf16.msra.mxu0 0
        %915 = vmatprep.subr.bf16.mxu0 0
        %916 = vmatpush2.bf16.msra.mxu0 0
        %917 = vmatprep.subr.bf16.mxu0 0
        %918 = vmatpush2.bf16.msra.mxu0 0
        %919 = vmatprep.subr.bf16.mxu0 0
        %920 = vmatpush2.bf16.msra.mxu0 0
        %921 = vmatprep.subr.bf16.mxu0 0
        %922 = vmatpush2.bf16.msra.mxu0 0
        %923 = vmatprep.subr.bf16.mxu0 0
        %924 = vmatpush2.bf16.msra.mxu0 0
        %925 = vmatprep.subr.bf16.mxu0 0
        %926 = vmatpush2.bf16.msra.mxu0 0
        %927 = vmatprep.subr.bf16.mxu0 0
        %928 = vmatpush2.bf16.msra.mxu0 0
        %929 = vmatprep.mubr.bf16.mxu0 0
        %930 = vmatmul.mubr.bf16.gmra.mxu0 %v892
        %v931 = vpop.f32.mrf.mxu0
        %v932 = vadd.f32 0.0, %v931
        %v933 = vpop.f32.mrf.mxu0
        %v934 = vpop.f32.mrf.mxu0
        %v935 = vpop.f32.mrf.mxu0
        %936 = vdwg.mxu0
        %937 = vrot.lane.b32.xlu0 %v601, 64
        %v938 = vpop.permute.xlu0 %937
        %v940 = vsel %vm606, %v838, 0
        %v943 = vsel %vm845, %v938, 0
        %945 = vmatprep.subr.bf16.mxu0 0
        %946 = vmatpush1.bf16.msra.mxu0 0
        %947 = vmatprep.subr.bf16.mxu0 0
        %948 = vmatpush1.bf16.msra.mxu0 0
        %949 = vmatprep.subr.bf16.mxu0 0
        %950 = vmatpush1.bf16.msra.mxu0 0
        %951 = vmatprep.subr.bf16.mxu0 0
        %952 = vmatpush1.bf16.msra.mxu0 0
        %953 = vmatprep.subr.bf16.mxu0 0
        %954 = vmatpush1.bf16.msra.mxu0 0
        %955 = vmatprep.subr.bf16.mxu0 0
        %956 = vmatpush1.bf16.msra.mxu0 0
        %957 = vmatprep.subr.bf16.mxu0 0
        %958 = vmatpush1.bf16.msra.mxu0 0
        %959 = vmatprep.subr.bf16.mxu0 0
        %960 = vmatpush1.bf16.msra.mxu0 %v943
        %961 = vmatprep.subr.bf16.mxu0 0
        %962 = vmatpush2.bf16.msra.mxu0 0
        %963 = vmatprep.subr.bf16.mxu0 0
        %964 = vmatpush2.bf16.msra.mxu0 0
        %965 = vmatprep.subr.bf16.mxu0 0
        %966 = vmatpush2.bf16.msra.mxu0 0
        %967 = vmatprep.subr.bf16.mxu0 0
        %968 = vmatpush2.bf16.msra.mxu0 0
        %969 = vmatprep.subr.bf16.mxu0 0
        %970 = vmatpush2.bf16.msra.mxu0 0
        %971 = vmatprep.subr.bf16.mxu0 0
        %972 = vmatpush2.bf16.msra.mxu0 0
        %973 = vmatprep.subr.bf16.mxu0 0
        %974 = vmatpush2.bf16.msra.mxu0 0
        %975 = vmatprep.subr.bf16.mxu0 0
        %976 = vmatpush2.bf16.msra.mxu0 0
        %977 = vmatprep.mubr.bf16.mxu0 0
        %978 = vmatmul.mubr.bf16.gmra.mxu0 %v940
        %v979 = vpop.f32.mrf.mxu0
        %v980 = vadd.f32 0.0, %v979
        %v981 = vpop.f32.mrf.mxu0
        %v982 = vpop.f32.mrf.mxu0
        %v983 = vpop.f32.mrf.mxu0
        %984 = vdwg.mxu0
        %985 = vrot.lane.b32.xlu0 %v602, 64
        %v986 = vpop.permute.xlu0 %985
        %v988 = vsel %vm606, %v839, 0
        %v991 = vsel %vm845, %v986, 0
        %993 = vmatprep.subr.bf16.mxu0 0
        %994 = vmatpush1.bf16.msra.mxu0 0
        %995 = vmatprep.subr.bf16.mxu0 0
        %996 = vmatpush1.bf16.msra.mxu0 0
        %997 = vmatprep.subr.bf16.mxu0 0
        %998 = vmatpush1.bf16.msra.mxu0 0
        %999 = vmatprep.subr.bf16.mxu0 0
        %1000 = vmatpush1.bf16.msra.mxu0 0
        %1001 = vmatprep.subr.bf16.mxu0 0
        %1002 = vmatpush1.bf16.msra.mxu0 0
        %1003 = vmatprep.subr.bf16.mxu0 0
        %1004 = vmatpush1.bf16.msra.mxu0 0
        %1005 = vmatprep.subr.bf16.mxu0 0
        %1006 = vmatpush1.bf16.msra.mxu0 0
        %1007 = vmatprep.subr.bf16.mxu0 0
        %1008 = vmatpush1.bf16.msra.mxu0 %v991
        %1009 = vmatprep.subr.bf16.mxu0 0
        %1010 = vmatpush2.bf16.msra.mxu0 0
        %1011 = vmatprep.subr.bf16.mxu0 0
        %1012 = vmatpush2.bf16.msra.mxu0 0
        %1013 = vmatprep.subr.bf16.mxu0 0
        %1014 = vmatpush2.bf16.msra.mxu0 0
        %1015 = vmatprep.subr.bf16.mxu0 0
        %1016 = vmatpush2.bf16.msra.mxu0 0
        %1017 = vmatprep.subr.bf16.mxu0 0
        %1018 = vmatpush2.bf16.msra.mxu0 0
        %1019 = vmatprep.subr.bf16.mxu0 0
        %1020 = vmatpush2.bf16.msra.mxu0 0
        %1021 = vmatprep.subr.bf16.mxu0 0
        %1022 = vmatpush2.bf16.msra.mxu0 0
        %1023 = vmatprep.subr.bf16.mxu0 0
        %1024 = vmatpush2.bf16.msra.mxu0 0
        %1025 = vmatprep.mubr.bf16.mxu0 0
        %1026 = vmatmul.mubr.bf16.gmra.mxu0 %v988
        %v1027 = vpop.f32.mrf.mxu0
        %v1028 = vadd.f32 0.0, %v1027
        %v1029 = vpop.f32.mrf.mxu0
        %v1030 = vpop.f32.mrf.mxu0
        %v1031 = vpop.f32.mrf.mxu0
        %1032 = vdwg.mxu0
        %v1033 = vrcp.pop %v826
        %v1034 = vrcp.pop %v829
        %v1035 = vrcp.pop %v832
        %v1036 = vrcp.pop %v835
        %v1037 = vmul.f32 %v884, %v1033
        %v1038 = vmul.f32 %v932, %v1034
        %v1039 = vmul.f32 %v980, %v1035
        %v1040 = vmul.f32 %v1028, %v1036
        %1042 = vrot.lane.b32.xlu0 %v1038, 8
        %v1043 = vpop.permute.xlu0 %1042
        %1046 = vrot.lane.b32.xlu0 %v1039, 16
        %v1047 = vpop.permute.xlu0 %1046
        %1050 = vrot.lane.b32.xlu0 %v1040, 24
        %v1051 = vpop.permute.xlu0 %1050
        %v1053 = vsel %vm606, %v1037, %v1043
        %vm1054 = vcmask 130048
        %v1055 = vsel %vm1054, %v1053, %v1047
        %vm1056 = vcmask 195584
        %v1057 = vsel %vm1056, %v1055, %v1051
        %v1058 = vpack.c.bf16 %v1057, %v1057
        %v1059 = vld [vmem:[%s5] sm:$0xf]
        %v1060 = vld [vmem:[%s5 + $0x4] sm:$0xf]
        %v1061 = vld [vmem:[%s5 + $0x8] sm:$0xf]
        %v1062 = vld [vmem:[%s5 + $0xc] sm:$0xf]
        %v1063 = vld [vmem:[%s6] sm:$0x1]
        %v1065 = vlaneseq
        %v1066 = vshrl.u32 %v1065, 7
        %v1067 = vsub.s32 0, %v1066
        %v1068 = vrot.slane %v1063, %v1067
        %v1074 = vunpack.c.l.b16 %v1059
        %v1075 = vunpack.c.l.b16 %v1060
        %v1076 = vunpack.c.l.b16 %v1061
        %v1077 = vunpack.c.l.b16 %v1062
        %v1078 = vpack.c.b16 %v1075, %v1074
        %v1079 = vpack.c.b16 %v1077, %v1076
        %v1083 = vsel %vm493, %v1058, 0
        %1085 = vmatprep.subr.bf16.mxu0 0
        %1086 = vmatpush1.bf16.msra.mxu0 0
        %1087 = vmatprep.subr.bf16.mxu0 0
        %1088 = vmatpush1.bf16.msra.mxu0 0
        %1089 = vmatprep.subr.bf16.mxu0 0
        %1090 = vmatpush1.bf16.msra.mxu0 0
        %1091 = vmatprep.subr.bf16.mxu0 0
        %1092 = vmatpush1.bf16.msra.mxu0 0
        %1093 = vmatprep.subr.bf16.mxu0 0
        %1094 = vmatpush1.bf16.msra.mxu0 0
        %1095 = vmatprep.subr.bf16.mxu0 0
        %1096 = vmatpush1.bf16.msra.mxu0 0
        %1097 = vmatprep.subr.bf16.mxu0 0
        %1098 = vmatpush1.bf16.msra.mxu0 %v1079
        %1099 = vmatprep.subr.bf16.mxu0 0
        %1100 = vmatpush1.bf16.msra.mxu0 %v1078
        %1101 = vmatprep.subr.bf16.mxu0 0
        %1102 = vmatpush2.bf16.msra.mxu0 0
        %1103 = vmatprep.subr.bf16.mxu0 0
        %1104 = vmatpush2.bf16.msra.mxu0 0
        %1105 = vmatprep.subr.bf16.mxu0 0
        %1106 = vmatpush2.bf16.msra.mxu0 0
        %1107 = vmatprep.subr.bf16.mxu0 0
        %1108 = vmatpush2.bf16.msra.mxu0 0
        %1109 = vmatprep.subr.bf16.mxu0 0
        %1110 = vmatpush2.bf16.msra.mxu0 0
        %1111 = vmatprep.subr.bf16.mxu0 0
        %1112 = vmatpush2.bf16.msra.mxu0 0
        %1113 = vmatprep.subr.bf16.mxu0 0
        %1114 = vmatpush2.bf16.msra.mxu0 0
        %1115 = vmatprep.subr.bf16.mxu0 0
        %1116 = vmatpush2.bf16.msra.mxu0 0
        %1117 = vmatprep.mubr.bf16.mxu0 0
        %1118 = vmatmul.mubr.bf16.gmra.mxu0 %v1083
        %v1119 = vpop.f32.mrf.mxu0
        %v1120 = vadd.f32 %v1068, %v1119
        %v1121 = vpop.f32.mrf.mxu0
        %v1122 = vpop.f32.mrf.mxu0
        %v1123 = vpop.f32.mrf.mxu0
        %1124 = vdwg.mxu0
        %v1125 = vadd.f32 %v490, %v1120
        %v1126 = vld [vmem:[#allocation2] sm:$0x1]
        %v1127 = vld [vmem:[#allocation5] sm:$0x1]
        %v1128 = vsel %vm493, %v1125, 0.0
        %1129 = vadd.xlane.f32.xlu0 %v1128
        %v1130 = vpop.xlane.xlu0 %1129
        %v1131 = vmul.f32 %v1130, %v497
        %v1132 = vsub.f32 %v1125, %v1131
        %v1133 = vmul.f32 %v1132, %v1132
        %v1134 = vsel %vm493, %v1133, 0.0
        %1135 = vadd.xlane.f32.xlu0 %v1134
        %v1136 = vpop.xlane.xlu0 %1135
        %v1137 = vmul.f32 %v1136, %v497
        %v1138 = vadd.f32 %v1137, 1e-06
        %v1139 = vrsqrt.pop %v1138
        %v1140 = vmul.f32 %v1132, %v1139
        %v1142 = vlaneseq
        %v1143 = vshrl.u32 %v1142, 7
        %v1144 = vsub.s32 0, %v1143
        %v1145 = vrot.slane %v1126, %v1144
        %v1147 = vmul.f32 %v1140, %v1145
        %v1149 = vlaneseq
        %v1150 = vshrl.u32 %v1149, 7
        %v1151 = vsub.s32 0, %v1150
        %v1152 = vrot.slane %v1127, %v1151
        %v1154 = vadd.f32 %v1147, %v1152
        %v1155 = vpack.c.bf16 %v1154, %v1154
        %v1156 = vld [vmem:[#allocation7] sm:$0xf]
        %v1157 = vld [vmem:[#allocation7 + $0x4] sm:$0xf]
        %v1158 = vld [vmem:[#allocation7 + $0x8] sm:$0xf]
        %v1159 = vld [vmem:[#allocation7 + $0xc] sm:$0xf]
        %v1160 = vld [vmem:[#allocation8] sm:$0x1]
        %v1162 = vlaneseq
        %v1163 = vshrl.u32 %v1162, 7
        %v1164 = vsub.s32 0, %v1163
        %v1165 = vrot.slane %v1160, %v1164
        %v1171 = vunpack.c.l.b16 %v1156
        %v1172 = vunpack.c.l.b16 %v1157
        %v1173 = vunpack.c.l.b16 %v1158
        %v1174 = vunpack.c.l.b16 %v1159
        %v1175 = vpack.c.b16 %v1172, %v1171
        %v1176 = vpack.c.b16 %v1174, %v1173
        %v1180 = vsel %vm493, %v1155, 0
        %1182 = vmatprep.subr.bf16.mxu0 0
        %1183 = vmatpush1.bf16.msra.mxu0 0
        %1184 = vmatprep.subr.bf16.mxu0 0
        %1185 = vmatpush1.bf16.msra.mxu0 0
        %1186 = vmatprep.subr.bf16.mxu0 0
        %1187 = vmatpush1.bf16.msra.mxu0 0
        %1188 = vmatprep.subr.bf16.mxu0 0
        %1189 = vmatpush1.bf16.msra.mxu0 0
        %1190 = vmatprep.subr.bf16.mxu0 0
        %1191 = vmatpush1.bf16.msra.mxu0 0
        %1192 = vmatprep.subr.bf16.mxu0 0
        %1193 = vmatpush1.bf16.msra.mxu0 0
        %1194 = vmatprep.subr.bf16.mxu0 0
        %1195 = vmatpush1.bf16.msra.mxu0 %v1176
        %1196 = vmatprep.subr.bf16.mxu0 0
        %1197 = vmatpush1.bf16.msra.mxu0 %v1175
        %1198 = vmatprep.subr.bf16.mxu0 0
        %1199 = vmatpush2.bf16.msra.mxu0 0
        %1200 = vmatprep.subr.bf16.mxu0 0
        %1201 = vmatpush2.bf16.msra.mxu0 0
        %1202 = vmatprep.subr.bf16.mxu0 0
        %1203 = vmatpush2.bf16.msra.mxu0 0
        %1204 = vmatprep.subr.bf16.mxu0 0
        %1205 = vmatpush2.bf16.msra.mxu0 0
        %1206 = vmatprep.subr.bf16.mxu0 0
        %1207 = vmatpush2.bf16.msra.mxu0 0
        %1208 = vmatprep.subr.bf16.mxu0 0
        %1209 = vmatpush2.bf16.msra.mxu0 0
        %1210 = vmatprep.subr.bf16.mxu0 0
        %1211 = vmatpush2.bf16.msra.mxu0 0
        %1212 = vmatprep.subr.bf16.mxu0 0
        %1213 = vmatpush2.bf16.msra.mxu0 0
        %1214 = vmatprep.mubr.bf16.mxu0 0
        %1215 = vmatmul.mubr.bf16.gmra.mxu0 %v1180
        %v1216 = vpop.f32.mrf.mxu0
        %v1217 = vadd.f32 %v1165, %v1216
        %v1218 = vpop.f32.mrf.mxu0
        %v1219 = vpop.f32.mrf.mxu0
        %v1220 = vpop.f32.mrf.mxu0
        %1221 = vdwg.mxu0
        %v1222 = vmul.f32 %v1217, 0.5
        %v1223 = vmul.f32 %v1217, 0.70710677
        %v1224 = verf.f32.pop %v1223
        %v1225 = vadd.f32 %v1224, 1.0
        %v1226 = vmul.f32 %v1222, %v1225
        %v1227 = vpack.c.bf16 %v1226, %v1226
        %v1228 = vld [vmem:[%s11] sm:$0xf]
        %v1229 = vld [vmem:[%s11 + $0x4] sm:$0xf]
        %v1230 = vld [vmem:[%s11 + $0x8] sm:$0xf]
        %v1231 = vld [vmem:[%s11 + $0xc] sm:$0xf]
        %v1232 = vld [vmem:[%s11 + $0x10] sm:$0xf]
        %v1233 = vld [vmem:[%s11 + $0x14] sm:$0xf]
        %v1234 = vld [vmem:[%s11 + $0x18] sm:$0xf]
        %v1235 = vld [vmem:[%s11 + $0x1c] sm:$0xf]
        %v1236 = vld [vmem:[%s12] sm:$0x1]
        %v1238 = vlaneseq
        %v1239 = vshrl.u32 %v1238, 7
        %v1240 = vsub.s32 0, %v1239
        %v1241 = vrot.slane %v1236, %v1240
        %v1251 = vunpack.c.l.b16 %v1228
        %v1252 = vunpack.c.l.b16 %v1229
        %v1253 = vunpack.c.l.b16 %v1230
        %v1254 = vunpack.c.l.b16 %v1231
        %v1255 = vunpack.c.l.b16 %v1232
        %v1256 = vunpack.c.l.b16 %v1233
        %v1257 = vunpack.c.l.b16 %v1234
        %v1258 = vunpack.c.l.b16 %v1235
        %v1259 = vpack.c.b16 %v1252, %v1251
        %v1260 = vpack.c.b16 %v1254, %v1253
        %v1261 = vpack.c.b16 %v1256, %v1255
        %v1262 = vpack.c.b16 %v1258, %v1257
        %vm1267 = vcmask 523264
        %v1269 = vsel %vm1267, %v1227, 0
        %1271 = vmatprep.subr.bf16.mxu0 0
        %1272 = vmatpush1.bf16.msra.mxu0 0
        %1273 = vmatprep.subr.bf16.mxu0 0
        %1274 = vmatpush1.bf16.msra.mxu0 0
        %1275 = vmatprep.subr.bf16.mxu0 0
        %1276 = vmatpush1.bf16.msra.mxu0 0
        %1277 = vmatprep.subr.bf16.mxu0 0
        %1278 = vmatpush1.bf16.msra.mxu0 0
        %1279 = vmatprep.subr.bf16.mxu0 0
        %1280 = vmatpush1.bf16.msra.mxu0 %v1262
        %1281 = vmatprep.subr.bf16.mxu0 0
        %1282 = vmatpush1.bf16.msra.mxu0 %v1261
        %1283 = vmatprep.subr.bf16.mxu0 0
        %1284 = vmatpush1.bf16.msra.mxu0 %v1260
        %1285 = vmatprep.subr.bf16.mxu0 0
        %1286 = vmatpush1.bf16.msra.mxu0 %v1259
        %1287 = vmatprep.subr.bf16.mxu0 0
        %1288 = vmatpush2.bf16.msra.mxu0 0
        %1289 = vmatprep.subr.bf16.mxu0 0
        %1290 = vmatpush2.bf16.msra.mxu0 0
        %1291 = vmatprep.subr.bf16.mxu0 0
        %1292 = vmatpush2.bf16.msra.mxu0 0
        %1293 = vmatprep.subr.bf16.mxu0 0
        %1294 = vmatpush2.bf16.msra.mxu0 0
        %1295 = vmatprep.subr.bf16.mxu0 0
        %1296 = vmatpush2.bf16.msra.mxu0 0
        %1297 = vmatprep.subr.bf16.mxu0 0
        %1298 = vmatpush2.bf16.msra.mxu0 0
        %1299 = vmatprep.subr.bf16.mxu0 0
        %1300 = vmatpush2.bf16.msra.mxu0 0
        %1301 = vmatprep.subr.bf16.mxu0 0
        %1302 = vmatpush2.bf16.msra.mxu0 0
        %1303 = vmatprep.mubr.bf16.mxu0 0
        %1304 = vmatmul.mubr.bf16.gmra.mxu0 %v1269
        %v1305 = vpop.f32.mrf.mxu0
        %v1306 = vadd.f32 %v1241, %v1305
        %v1307 = vpop.f32.mrf.mxu0
        %v1308 = vpop.f32.mrf.mxu0
        %v1309 = vpop.f32.mrf.mxu0
        %1310 = vdwg.mxu0
        %v1311 = vadd.f32 %v1125, %v1306
        %1312 = vst.msk [vmem:[%s484] sm:$0xff] %vm493, %v1311
        %s1313 = sand.u32 %s316, 1
        %s1314 = scalar_lea.sflag [#allocation4], %s1313
        %s1315 = sand.u32 %s316, 1
        %s1316 = smul.addr %s1315, 8
        %s1317 = scalar_lea.vmem [#allocation10], %s1316
        // Predicated region
        $region89: #{tpu_custom_call.1} parent=71 // pred_check
          %p1318 = pneg %p326
        $region90: #{tpu_custom_call.1} parent=71 // pred_check_branch
          %1320 = sbr.rel (%p1318) target = $region92
        $region91: #{tpu_custom_call.1} parent=71 // pred_region
          %s1322 = ssub.s32 128, 128
          %1323 = vsyncadd %s1314, %s1322
          %s1324 = smul.addr %s30, 128
          %s1325 = scalar_lea.hbm %s13, %s1324
          %s1327 = sshll.u32 %s1317, 4
          %s1328 = int_to_ptr.vmem [resolvable:$true] %s1327
          %1330 = dma.vmem_to_hbm [thread:$0]  %s1328, 128, %s1325, %s1314
        $region92: #{tpu_custom_call.1} parent=71 // pred_fallthru
          _
      $region72: #{tpu_custom_call.1} parent=5 // pred_fallthru
        _
      %p1331 = scmp.le.s32.totalorder 2, %s25
      // Predicated region
      $region93: #{tpu_custom_call.1} parent=5 // pred_check
        %p1332 = pneg %p1331
      $region94: #{tpu_custom_call.1} parent=5 // pred_check_branch
        %1334 = sbr.rel (%p1332) target = $region96
      $region95: #{tpu_custom_call.1} parent=5 // pred_region
        %s1335 = ssub.s32 %s25, 2
        // Predicated region
        $region97: #{tpu_custom_call.1} parent=95 // pred_check
          %p1336 = pneg %p332
        $region98: #{tpu_custom_call.1} parent=95 // pred_check_branch
          %1338 = sbr.rel (%p1336) target = $region100
        $region99: #{tpu_custom_call.1} parent=95 // pred_region
          %s1339 = sand.u32 %s317, 1
          %s1340 = scalar_lea.sflag [#allocation4], %s1339
          %s1341 = sand.u32 %s317, 1
          %s1342 = smul.addr %s1341, 8
          %s1343 = scalar_lea.vmem [#allocation10], %s1342
          %1344 = dma.done %s1340, 128
        $region100: #{tpu_custom_call.1} parent=95 // pred_fallthru
          _
      $region96: #{tpu_custom_call.1} parent=5 // pred_fallthru
        _
    $region6: #{tpu_custom_call.1} parent=1 // loop_footer
      %s29 = sadd.s32 1, %s25
    $region7: #{tpu_custom_call.1} parent=1 // loop_footer_branch
      %24 = sbr.rel target = $region3
    $region8: #{tpu_custom_call.1} parent=1 // loop_exit
      _
    %1345 = vsyncpa [#allocation3], 1
    %s1346 = scalar_lea.sflag [#allocation3], 1
    %1347 = vsyncpa %s1346, 1
    %1348 = vsyncpa [#allocation6], 1
    %1349 = vsyncpa [#allocation9], 1
    %1350 = vsyncpa [#allocation4], 1
    %s1351 = scalar_lea.sflag [#allocation4], 1
    %1352 = vsyncpa %s1351, 1

// kernel: tpu_custom_call.1
$region0: #{tpu_custom_call.1}
  #allocation0 [shape = 'u32[]', space=smem, size = 0x4, offset = 0x4, fixed_abs, tag = 'smem constant byte address 0x4 - core index']
  #allocation1 [shape = 'u32[144,128]{1,0:T(1,128)}', space=vmem, size = 0x12000, scoped, tag = 'internal scratch']
  %s0 = inlined_call_operand.vmem [shape: f32[2,8,32], index: 0, kind: input, shape index: {}]
  %s1 = inlined_call_operand.vmem [shape: f32[1,32], index: 1, kind: input, shape index: {}]
  %s2 = inlined_call_operand.vmem [shape: f32[1,32], index: 2, kind: input, shape index: {}]
  %s3 = inlined_call_operand.vmem [shape: bf16[32,96], index: 3, kind: input, shape index: {}]
  %s4 = inlined_call_operand.vmem [shape: f32[1,96], index: 4, kind: input, shape index: {}]
  %s5 = inlined_call_operand.vmem [shape: bf16[32,32], index: 5, kind: input, shape index: {}]
  %s6 = inlined_call_operand.vmem [shape: f32[1,32], index: 6, kind: input, shape index: {}]
  %s7 = inlined_call_operand.hbm [shape: f32[1,32], index: 7, kind: input, shape index: {}]
  %s8 = inlined_call_operand.hbm [shape: f32[1,32], index: 8, kind: input, shape index: {}]
  %s9 = inlined_call_operand.hbm [shape: bf16[32,64], index: 9, kind: input, shape index: {}]
  %s10 = inlined_call_operand.hbm [shape: f32[1,64], index: 10, kind: input, shape index: {}]
  %s11 = inlined_call_operand.vmem [shape: bf16[64,32], index: 11, kind: input, shape index: {}]
  %s12 = inlined_call_operand.vmem [shape: f32[1,32], index: 12, kind: input, shape index: {}]
  %s13 = inlined_call_operand.hbm [shape: f32[2,8,32], index: 13, kind: output, shape index: {}]
  %s14 = sld [smem:[#allocation0]]
  $region101: #{tpu_custom_call.1} parent=0
    _
  %s16 = ssub.s32 1, %s14
  %s17 = scalar_select 0, %s16, %s14
  $region1: #{tpu_custom_call.1} parent=0
    #allocation2 [shape = 'u8[512]{0}', space=vmem, size = 0x400, scoped, tag = 'input window, operand 7, single buffered']
    #allocation3 [shape = 's32[2]{0}', space=sflag, size = 0x8, scoped, tag = 'scoped memory for tpu_custom_call.1']
    #allocation4 [shape = 's32[2]{0}', space=sflag, size = 0x8, scoped, tag = 'scoped memory for tpu_custom_call.1']
    #allocation5 [shape = 'u8[512]{0}', space=vmem, size = 0x400, scoped, tag = 'input window, operand 8, single buffered']
    #allocation6 [shape = 's32[1]{0}', space=sflag, size = 0x4, scoped, tag = 'scoped memory for tpu_custom_call.1']
    #allocation7 [shape = 'u8[8192]{0}', space=vmem, size = 0x2000, scoped, tag = 'input window, operand 9, single buffered']
    #allocation8 [shape = 'u8[512]{0}', space=vmem, size = 0x400, scoped, tag = 'input window, operand 10, single buffered']
    #allocation9 [shape = 's32[1]{0}', space=sflag, size = 0x4, scoped, tag = 'scoped memory for tpu_custom_call.1']
    #allocation10 [shape = 'u8[8192]{0}', space=vmem, size = 0x2000, scoped, tag = 'output window, operand 0']
    %18 = vsyncpa [#allocation3], 0
    %19 = vsyncpa [#allocation6], 0
    %20 = vsyncpa [#allocation9], 0
    %21 = vsyncpa [#allocation4], 0
    %s22 = scalar_lea.sflag [#allocation4], 1
    %23 = vsyncpa %s22, 0
    loop: start=0, step=1, limit=4
    $region2: #{tpu_custom_call.1} parent=1 // loop_pre_header
      _
    $region3: #{tpu_custom_call.1} parent=1 // loop_header
      %s25 = sphi 0, %s29
      %p26 = scmp.ge.s32.totalorder %s25, 4
      %s35 = sphi 0, %s37
      %s38 = sphi 0, %s35
      %s39 = sphi 0, %s38
      %s55 = sphi 0, %s39
      %s59 = sphi 0, %s59
      %s61 = sphi 0, %s59
      %s62 = sphi 0, %s61
      %s76 = sphi 0, %s62
      %s80 = sphi 0, %s80
      %s82 = sphi 0, %s80
      %s83 = sphi 0, %s82
      %s97 = sphi 0, %s83
      %s101 = sphi 0, %s101
      %s103 = sphi 0, %s101
      %s104 = sphi 0, %s103
      %s118 = sphi 0, %s104
      %s122 = sphi 0, %s122
      %s124 = sphi 0, %s122
      %s125 = sphi 0, %s124
      %s139 = sphi 0, %s125
      %s143 = sphi 0, %s143
      %s145 = sphi 0, %s143
      %s146 = sphi 0, %s145
      %s160 = sphi 0, %s146
      %s164 = sphi 0, %s164
      %s166 = sphi 0, %s164
      %s167 = sphi 0, %s166
      %s181 = sphi 0, %s167
      %s185 = sphi 0, %s185
      %s187 = sphi 0, %s185
      %s188 = sphi 0, %s187
      %s202 = sphi 0, %s188
      %s206 = sphi 0, %s206
      %s208 = sphi 0, %s206
      %s209 = sphi 0, %s208
      %s223 = sphi 0, %s209
      %s227 = sphi 0, %s227
      %s229 = sphi 0, %s227
      %s230 = sphi 0, %s229
      %s244 = sphi 0, %s230
      %s248 = sphi 0, %s248
      %s250 = sphi 0, %s248
      %s251 = sphi 0, %s250
      %s265 = sphi 0, %s251
      %s269 = sphi 0, %s269
      %s271 = sphi 0, %s269
      %s272 = sphi 0, %s271
      %s286 = sphi 0, %s272
      %s290 = sphi 0, %s290
      %s292 = sphi 0, %s290
      %s293 = sphi 0, %s292
      %s307 = sphi 0, %s293
      %s313 = sphi 0, %s315
      %s316 = sphi 0, %s313
      %s317 = sphi 0, %s316
      %s333 = sphi 0, %s317
    $region4: #{tpu_custom_call.1} parent=1 // loop_header_branch
      %28 = sbr.rel (%p26) target = $region8
    $region5: #{tpu_custom_call.1} parent=1 // loop_body
      %s30 = ssub.s32 %s25, 1
      %s31 = ssub.s32 %s25, 2
      %s32 = sadd.s32 %s25, 1
      %s33 = ssub.s32 %s25, %s32
      %p34 = scmp.eq.s32.totalorder %s33, 0
      %s36 = sadd.s32 %s35, 1
      %s37 = scalar_select %p34, %s35, %s36
      %p40 = pneg %p34
      %p41 = scmp.eq.s32.totalorder %s25, 1
      %p42 = por %p40, %p41
      %p43 = scmp.ne.s32.totalorder %s35, %s38
      %p44 = scmp.eq.s32.totalorder %s25, 0
      %p45 = por %p43, %p44
      %p46 = scmp.ne.s32.totalorder %s35, %s38
      %p47 = scmp.eq.s32.totalorder %s30, 1
      %p48 = por %p46, %p47
      %p49 = scmp.ne.s32.totalorder %s38, %s39
      %p50 = scmp.eq.s32.totalorder %s30, 0
      %p51 = por %p49, %p50
      %p52 = scmp.ne.s32.totalorder %s38, %s39
      %p53 = scmp.eq.s32.totalorder %s31, 1
      %p54 = por %p52, %p53
      %p56 = scmp.ne.s32.totalorder %s39, %s55
      %p57 = scmp.eq.s32.totalorder %s31, 0
      %p58 = por %p56, %p57
      %s60 = sadd.s32 %s59, 1
      %p63 = scmp.eq.s32.totalorder %s25, 1
      %p64 = scmp.ne.s32.totalorder %s59, %s61
      %p65 = scmp.eq.s32.totalorder %s25, 0
      %p66 = por %p64, %p65
      %p67 = scmp.ne.s32.totalorder %s59, %s61
      %p68 = scmp.eq.s32.totalorder %s30, 1
      %p69 = por %p67, %p68
      %p70 = scmp.ne.s32.totalorder %s61, %s62
      %p71 = scmp.eq.s32.totalorder %s30, 0
      %p72 = por %p70, %p71
      %p73 = scmp.ne.s32.totalorder %s61, %s62
      %p74 = scmp.eq.s32.totalorder %s31, 1
      %p75 = por %p73, %p74
      %p77 = scmp.ne.s32.totalorder %s62, %s76
      %p78 = scmp.eq.s32.totalorder %s31, 0
      %p79 = por %p77, %p78
      %s81 = sadd.s32 %s80, 1
      %p84 = scmp.eq.s32.totalorder %s25, 1
      %p85 = scmp.ne.s32.totalorder %s80, %s82
      %p86 = scmp.eq.s32.totalorder %s25, 0
      %p87 = por %p85, %p86
      %p88 = scmp.ne.s32.totalorder %s80, %s82
      %p89 = scmp.eq.s32.totalorder %s30, 1
      %p90 = por %p88, %p89
      %p91 = scmp.ne.s32.totalorder %s82, %s83
      %p92 = scmp.eq.s32.totalorder %s30, 0
      %p93 = por %p91, %p92
      %p94 = scmp.ne.s32.totalorder %s82, %s83
      %p95 = scmp.eq.s32.totalorder %s31, 1
      %p96 = por %p94, %p95
      %p98 = scmp.ne.s32.totalorder %s83, %s97
      %p99 = scmp.eq.s32.totalorder %s31, 0
      %p100 = por %p98, %p99
      %s102 = sadd.s32 %s101, 1
      %p105 = scmp.eq.s32.totalorder %s25, 1
      %p106 = scmp.ne.s32.totalorder %s101, %s103
      %p107 = scmp.eq.s32.totalorder %s25, 0
      %p108 = por %p106, %p107
      %p109 = scmp.ne.s32.totalorder %s101, %s103
      %p110 = scmp.eq.s32.totalorder %s30, 1
      %p111 = por %p109, %p110
      %p112 = scmp.ne.s32.totalorder %s103, %s104
      %p113 = scmp.eq.s32.totalorder %s30, 0
      %p114 = por %p112, %p113
      %p115 = scmp.ne.s32.totalorder %s103, %s104
      %p116 = scmp.eq.s32.totalorder %s31, 1
      %p117 = por %p115, %p116
      %p119 = scmp.ne.s32.totalorder %s104, %s118
      %p120 = scmp.eq.s32.totalorder %s31, 0
      %p121 = por %p119, %p120
      %s123 = sadd.s32 %s122, 1
      %p126 = scmp.eq.s32.totalorder %s25, 1
      %p127 = scmp.ne.s32.totalorder %s122, %s124
      %p128 = scmp.eq.s32.totalorder %s25, 0
      %p129 = por %p127, %p128
      %p130 = scmp.ne.s32.totalorder %s122, %s124
      %p131 = scmp.eq.s32.totalorder %s30, 1
      %p132 = por %p130, %p131
      %p133 = scmp.ne.s32.totalorder %s124, %s125
      %p134 = scmp.eq.s32.totalorder %s30, 0
      %p135 = por %p133, %p134
      %p136 = scmp.ne.s32.totalorder %s124, %s125
      %p137 = scmp.eq.s32.totalorder %s31, 1
      %p138 = por %p136, %p137
      %p140 = scmp.ne.s32.totalorder %s125, %s139
      %p141 = scmp.eq.s32.totalorder %s31, 0
      %p142 = por %p140, %p141
      %s144 = sadd.s32 %s143, 1
      %p147 = scmp.eq.s32.totalorder %s25, 1
      %p148 = scmp.ne.s32.totalorder %s143, %s145
      %p149 = scmp.eq.s32.totalorder %s25, 0
      %p150 = por %p148, %p149
      %p151 = scmp.ne.s32.totalorder %s143, %s145
      %p152 = scmp.eq.s32.totalorder %s30, 1
      %p153 = por %p151, %p152
      %p154 = scmp.ne.s32.totalorder %s145, %s146
      %p155 = scmp.eq.s32.totalorder %s30, 0
      %p156 = por %p154, %p155
      %p157 = scmp.ne.s32.totalorder %s145, %s146
      %p158 = scmp.eq.s32.totalorder %s31, 1
      %p159 = por %p157, %p158
      %p161 = scmp.ne.s32.totalorder %s146, %s160
      %p162 = scmp.eq.s32.totalorder %s31, 0
      %p163 = por %p161, %p162
      %s165 = sadd.s32 %s164, 1
      %p168 = scmp.eq.s32.totalorder %s25, 1
      %p169 = scmp.ne.s32.totalorder %s164, %s166
      %p170 = scmp.eq.s32.totalorder %s25, 0
      %p171 = por %p169, %p170
      %p172 = scmp.ne.s32.totalorder %s164, %s166
      %p173 = scmp.eq.s32.totalorder %s30, 1
      %p174 = por %p172, %p173
      %p175 = scmp.ne.s32.totalorder %s166, %s167
      %p176 = scmp.eq.s32.totalorder %s30, 0
      %p177 = por %p175, %p176
      %p178 = scmp.ne.s32.totalorder %s166, %s167
      %p179 = scmp.eq.s32.totalorder %s31, 1
      %p180 = por %p178, %p179
      %p182 = scmp.ne.s32.totalorder %s167, %s181
      %p183 = scmp.eq.s32.totalorder %s31, 0
      %p184 = por %p182, %p183
      %s186 = sadd.s32 %s185, 1
      %p189 = scmp.eq.s32.totalorder %s25, 1
      %p190 = scmp.ne.s32.totalorder %s185, %s187
      %p191 = scmp.eq.s32.totalorder %s25, 0
      %p192 = por %p190, %p191
      %p193 = scmp.ne.s32.totalorder %s185, %s187
      %p194 = scmp.eq.s32.totalorder %s30, 1
      %p195 = por %p193, %p194
      %p196 = scmp.ne.s32.totalorder %s187, %s188
      %p197 = scmp.eq.s32.totalorder %s30, 0
      %p198 = por %p196, %p197
      %p199 = scmp.ne.s32.totalorder %s187, %s188
      %p200 = scmp.eq.s32.totalorder %s31, 1
      %p201 = por %p199, %p200
      %p203 = scmp.ne.s32.totalorder %s188, %s202
      %p204 = scmp.eq.s32.totalorder %s31, 0
      %p205 = por %p203, %p204
      %s207 = sadd.s32 %s206, 1
      %p210 = scmp.eq.s32.totalorder %s25, 1
      %p211 = scmp.ne.s32.totalorder %s206, %s208
      %p212 = scmp.eq.s32.totalorder %s25, 0
      %p213 = por %p211, %p212
      %p214 = scmp.ne.s32.totalorder %s206, %s208
      %p215 = scmp.eq.s32.totalorder %s30, 1
      %p216 = por %p214, %p215
      %p217 = scmp.ne.s32.totalorder %s208, %s209
      %p218 = scmp.eq.s32.totalorder %s30, 0
      %p219 = por %p217, %p218
      %p220 = scmp.ne.s32.totalorder %s208, %s209
      %p221 = scmp.eq.s32.totalorder %s31, 1
      %p222 = por %p220, %p221
      %p224 = scmp.ne.s32.totalorder %s209, %s223
      %p225 = scmp.eq.s32.totalorder %s31, 0
      %p226 = por %p224, %p225
      %s228 = sadd.s32 %s227, 1
      %p231 = scmp.eq.s32.totalorder %s25, 1
      %p232 = scmp.ne.s32.totalorder %s227, %s229
      %p233 = scmp.eq.s32.totalorder %s25, 0
      %p234 = por %p232, %p233
      %p235 = scmp.ne.s32.totalorder %s227, %s229
      %p236 = scmp.eq.s32.totalorder %s30, 1
      %p237 = por %p235, %p236
      %p238 = scmp.ne.s32.totalorder %s229, %s230
      %p239 = scmp.eq.s32.totalorder %s30, 0
      %p240 = por %p238, %p239
      %p241 = scmp.ne.s32.totalorder %s229, %s230
      %p242 = scmp.eq.s32.totalorder %s31, 1
      %p243 = por %p241, %p242
      %p245 = scmp.ne.s32.totalorder %s230, %s244
      %p246 = scmp.eq.s32.totalorder %s31, 0
      %p247 = por %p245, %p246
      %s249 = sadd.s32 %s248, 1
      %p252 = scmp.eq.s32.totalorder %s25, 1
      %p253 = scmp.ne.s32.totalorder %s248, %s250
      %p254 = scmp.eq.s32.totalorder %s25, 0
      %p255 = por %p253, %p254
      %p256 = scmp.ne.s32.totalorder %s248, %s250
      %p257 = scmp.eq.s32.totalorder %s30, 1
      %p258 = por %p256, %p257
      %p259 = scmp.ne.s32.totalorder %s250, %s251
      %p260 = scmp.eq.s32.totalorder %s30, 0
      %p261 = por %p259, %p260
      %p262 = scmp.ne.s32.totalorder %s250, %s251
      %p263 = scmp.eq.s32.totalorder %s31, 1
      %p264 = por %p262, %p263
      %p266 = scmp.ne.s32.totalorder %s251, %s265
      %p267 = scmp.eq.s32.totalorder %s31, 0
      %p268 = por %p266, %p267
      %s270 = sadd.s32 %s269, 1
      %p273 = scmp.eq.s32.totalorder %s25, 1
      %p274 = scmp.ne.s32.totalorder %s269, %s271
      %p275 = scmp.eq.s32.totalorder %s25, 0
      %p276 = por %p274, %p275
      %p277 = scmp.ne.s32.totalorder %s269, %s271
      %p278 = scmp.eq.s32.totalorder %s30, 1
      %p279 = por %p277, %p278
      %p280 = scmp.ne.s32.totalorder %s271, %s272
      %p281 = scmp.eq.s32.totalorder %s30, 0
      %p282 = por %p280, %p281
      %p283 = scmp.ne.s32.totalorder %s271, %s272
      %p284 = scmp.eq.s32.totalorder %s31, 1
      %p285 = por %p283, %p284
      %p287 = scmp.ne.s32.totalorder %s272, %s286
      %p288 = scmp.eq.s32.totalorder %s31, 0
      %p289 = por %p287, %p288
      %s291 = sadd.s32 %s290, 1
      %p294 = scmp.eq.s32.totalorder %s25, 1
      %p295 = scmp.ne.s32.totalorder %s290, %s292
      %p296 = scmp.eq.s32.totalorder %s25, 0
      %p297 = por %p295, %p296
      %p298 = scmp.ne.s32.totalorder %s290, %s292
      %p299 = scmp.eq.s32.totalorder %s30, 1
      %p300 = por %p298, %p299
      %p301 = scmp.ne.s32.totalorder %s292, %s293
      %p302 = scmp.eq.s32.totalorder %s30, 0
      %p303 = por %p301, %p302
      %p304 = scmp.ne.s32.totalorder %s292, %s293
      %p305 = scmp.eq.s32.totalorder %s31, 1
      %p306 = por %p304, %p305
      %p308 = scmp.ne.s32.totalorder %s293, %s307
      %p309 = scmp.eq.s32.totalorder %s31, 0
      %p310 = por %p308, %p309
      %s311 = ssub.s32 %s25, %s32
      %p312 = scmp.eq.s32.totalorder %s311, 0
      %s314 = sadd.s32 %s313, 1
      %s315 = scalar_select %p312, %s313, %s314
      %p318 = pneg %p312
      %p319 = scmp.eq.s32.totalorder %s25, 1
      %p320 = por %p318, %p319
      %p321 = scmp.ne.s32.totalorder %s313, %s316
      %p322 = scmp.eq.s32.totalorder %s25, 0
      %p323 = por %p321, %p322
      %p324 = scmp.ne.s32.totalorder %s313, %s316
      %p325 = scmp.eq.s32.totalorder %s30, 1
      %p326 = por %p324, %p325
      %p327 = scmp.ne.s32.totalorder %s316, %s317
      %p328 = scmp.eq.s32.totalorder %s30, 0
      %p329 = por %p327, %p328
      %p330 = scmp.ne.s32.totalorder %s316, %s317
      %p331 = scmp.eq.s32.totalorder %s31, 1
      %p332 = por %p330, %p331
      %p334 = scmp.ne.s32.totalorder %s317, %s333
      %p335 = scmp.eq.s32.totalorder %s31, 0
      %p336 = por %p334, %p335
      %p337 = scmp.le.s32.totalorder 1, %s25
      %p338 = scmp.lt.s32.totalorder %s25, 3
      %p339 = pnand %p337, %p338
      %p340 = pneg %p339
      // Predicated region
      $region9: #{tpu_custom_call.1} parent=5 // pred_check
        _
      $region10: #{tpu_custom_call.1} parent=5 // pred_check_branch
        %342 = sbr.rel (%p339) target = $region12
      $region11: #{tpu_custom_call.1} parent=5 // pred_region
        %s343 = ssub.s32 %s25, 1
        // Predicated region
        $region13: #{tpu_custom_call.1} parent=11 // pred_check
          %p344 = pneg %p72
        $region14: #{tpu_custom_call.1} parent=11 // pred_check_branch
          %346 = sbr.rel (%p344) target = $region16
        $region15: #{tpu_custom_call.1} parent=11 // pred_region
          _
        $region16: #{tpu_custom_call.1} parent=11 // pred_fallthru
          _
        // Predicated region
        $region17: #{tpu_custom_call.1} parent=11 // pred_check
          %p347 = pneg %p93
        $region18: #{tpu_custom_call.1} parent=11 // pred_check_branch
          %349 = sbr.rel (%p347) target = $region20
        $region19: #{tpu_custom_call.1} parent=11 // pred_region
          _
        $region20: #{tpu_custom_call.1} parent=11 // pred_fallthru
          _
        // Predicated region
        $region21: #{tpu_custom_call.1} parent=11 // pred_check
          %p350 = pneg %p114
        $region22: #{tpu_custom_call.1} parent=11 // pred_check_branch
          %352 = sbr.rel (%p350) target = $region24
        $region23: #{tpu_custom_call.1} parent=11 // pred_region
          _
        $region24: #{tpu_custom_call.1} parent=11 // pred_fallthru
          _
        // Predicated region
        $region25: #{tpu_custom_call.1} parent=11 // pred_check
          %p353 = pneg %p135
        $region26: #{tpu_custom_call.1} parent=11 // pred_check_branch
          %355 = sbr.rel (%p353) target = $region28
        $region27: #{tpu_custom_call.1} parent=11 // pred_region
          _
        $region28: #{tpu_custom_call.1} parent=11 // pred_fallthru
          _
        // Predicated region
        $region29: #{tpu_custom_call.1} parent=11 // pred_check
          %p356 = pneg %p156
        $region30: #{tpu_custom_call.1} parent=11 // pred_check_branch
          %358 = sbr.rel (%p356) target = $region32
        $region31: #{tpu_custom_call.1} parent=11 // pred_region
          _
        $region32: #{tpu_custom_call.1} parent=11 // pred_fallthru
          _
        // Predicated region
        $region33: #{tpu_custom_call.1} parent=11 // pred_check
          %p359 = pneg %p177
        $region34: #{tpu_custom_call.1} parent=11 // pred_check_branch
          %361 = sbr.rel (%p359) target = $region36
        $region35: #{tpu_custom_call.1} parent=11 // pred_region
          _
        $region36: #{tpu_custom_call.1} parent=11 // pred_fallthru
          _
        // Predicated region
        $region37: #{tpu_custom_call.1} parent=11 // pred_check
          %p362 = pneg %p198
        $region38: #{tpu_custom_call.1} parent=11 // pred_check_branch
          %364 = sbr.rel (%p362) target = $region40
        $region39: #{tpu_custom_call.1} parent=11 // pred_region
          %s366 = ssub.s32 16, 16
          %367 = vsyncadd [#allocation3], %s366
          %s369 = sshll.u32 [#allocation2], 4
          %s370 = int_to_ptr.vmem [resolvable:$true] %s369
          %372 = dma.hbm_to_vmem [thread:$0]  %s7, 16, %s370, [#allocation3]
        $region40: #{tpu_custom_call.1} parent=11 // pred_fallthru
          _
        // Predicated region
        $region41: #{tpu_custom_call.1} parent=11 // pred_check
          %p373 = pneg %p219
        $region42: #{tpu_custom_call.1} parent=11 // pred_check_branch
          %375 = sbr.rel (%p373) target = $region44
        $region43: #{tpu_custom_call.1} parent=11 // pred_region
          %s377 = ssub.s32 16, 16
          %378 = vsyncadd [#allocation6], %s377
          %s380 = sshll.u32 [#allocation5], 4
          %s381 = int_to_ptr.vmem [resolvable:$true] %s380
          %383 = dma.hbm_to_vmem [thread:$0]  %s8, 16, %s381, [#allocation6]
        $region44: #{tpu_custom_call.1} parent=11 // pred_fallthru
          _
        // Predicated region
        $region45: #{tpu_custom_call.1} parent=11 // pred_check
          %p384 = pneg %p240
        $region46: #{tpu_custom_call.1} parent=11 // pred_check_branch
          %386 = sbr.rel (%p384) target = $region48
        $region47: #{tpu_custom_call.1} parent=11 // pred_region
          %s388 = ssub.s32 256, 256
          %389 = vsyncadd [#allocation6], %s388
          %s390 = sshll.u32 [#allocation7], 4
          %s391 = int_to_ptr.vmem [resolvable:$true] %s390
          %396 = dma.hbm_to_vmem [thread:$0]  %s9, 256, %s391, [#allocation6], 64, 64, 4
        $region48: #{tpu_custom_call.1} parent=11 // pred_fallthru
          _
        // Predicated region
        $region49: #{tpu_custom_call.1} parent=11 // pred_check
          %p397 = pneg %p261
        $region50: #{tpu_custom_call.1} parent=11 // pred_check_branch
          %399 = sbr.rel (%p397) target = $region52
        $region51: #{tpu_custom_call.1} parent=11 // pred_region
          %s401 = ssub.s32 16, 16
          %402 = vsyncadd [#allocation9], %s401
          %s404 = sshll.u32 [#allocation8], 4
          %s405 = int_to_ptr.vmem [resolvable:$true] %s404
          %407 = dma.hbm_to_vmem [thread:$0]  %s10, 16, %s405, [#allocation9]
        $region52: #{tpu_custom_call.1} parent=11 // pred_fallthru
          _
        // Predicated region
        $region53: #{tpu_custom_call.1} parent=11 // pred_check
          %p408 = pneg %p282
        $region54: #{tpu_custom_call.1} parent=11 // pred_check_branch
          %410 = sbr.rel (%p408) target = $region56
        $region55: #{tpu_custom_call.1} parent=11 // pred_region
          _
        $region56: #{tpu_custom_call.1} parent=11 // pred_fallthru
          _
        // Predicated region
        $region57: #{tpu_custom_call.1} parent=11 // pred_check
          %p411 = pneg %p303
        $region58: #{tpu_custom_call.1} parent=11 // pred_check_branch
          %413 = sbr.rel (%p411) target = $region60
        $region59: #{tpu_custom_call.1} parent=11 // pred_region
          _
        $region60: #{tpu_custom_call.1} parent=11 // pred_fallthru
          _
      $region12: #{tpu_custom_call.1} parent=5 // pred_fallthru
        _
      %p414 = scmp.lt.s32.totalorder %s25, 2
      // Predicated region
      $region61: #{tpu_custom_call.1} parent=5 // pred_check
        %p415 = pneg %p414
      $region62: #{tpu_custom_call.1} parent=5 // pred_check_branch
        %417 = sbr.rel (%p415) target = $region64
      $region63: #{tpu_custom_call.1} parent=5 // pred_region
        // Predicated region
        $region65: #{tpu_custom_call.1} parent=63 // pred_check
          %p418 = pneg %p45
        $region66: #{tpu_custom_call.1} parent=63 // pred_check_branch
          %420 = sbr.rel (%p418) target = $region68
        $region67: #{tpu_custom_call.1} parent=63 // pred_region
          %p421 = scmp.lt.s32.totalorder %s25, 1
          %s422 = scalar_select %p421, %s25, 1
          %s423 = smul.addr %s422, 8
          %s424 = scalar_lea.vmem %s0, %s423
        $region68: #{tpu_custom_call.1} parent=63 // pred_fallthru
          _
      $region64: #{tpu_custom_call.1} parent=5 // pred_fallthru
        _
      %p425 = scmp.le.s32.totalorder 1, %s25
      %p426 = scmp.lt.s32.totalorder %s25, 3
      %p427 = pnand %p425, %p426
      %p428 = pneg %p427
      // Predicated region
      $region69: #{tpu_custom_call.1} parent=5 // pred_check
        _
      $region70: #{tpu_custom_call.1} parent=5 // pred_check_branch
        %430 = sbr.rel (%p427) target = $region72
      $region71: #{tpu_custom_call.1} parent=5 // pred_region
        %s431 = ssub.s32 %s25, 1
        // Predicated region
        $region73: #{tpu_custom_call.1} parent=71 // pred_check
          %p432 = pneg %p198
        $region74: #{tpu_custom_call.1} parent=71 // pred_check_branch
          %434 = sbr.rel (%p432) target = $region76
        $region75: #{tpu_custom_call.1} parent=71 // pred_region
          %435 = dma.done [#allocation3], 16
        $region76: #{tpu_custom_call.1} parent=71 // pred_fallthru
          _
        // Predicated region
        $region77: #{tpu_custom_call.1} parent=71 // pred_check
          %p436 = pneg %p219
        $region78: #{tpu_custom_call.1} parent=71 // pred_check_branch
          %438 = sbr.rel (%p436) target = $region80
        $region79: #{tpu_custom_call.1} parent=71 // pred_region
          %439 = dma.done [#allocation6], 16
        $region80: #{tpu_custom_call.1} parent=71 // pred_fallthru
          _
        // Predicated region
        $region81: #{tpu_custom_call.1} parent=71 // pred_check
          %p440 = pneg %p240
        $region82: #{tpu_custom_call.1} parent=71 // pred_check_branch
          %442 = sbr.rel (%p440) target = $region84
        $region83: #{tpu_custom_call.1} parent=71 // pred_region
          %443 = dma.done [#allocation6], 256
        $region84: #{tpu_custom_call.1} parent=71 // pred_fallthru
          _
        // Predicated region
        $region85: #{tpu_custom_call.1} parent=71 // pred_check
          %p444 = pneg %p261
        $region86: #{tpu_custom_call.1} parent=71 // pred_check_branch
          %446 = sbr.rel (%p444) target = $region88
        $region87: #{tpu_custom_call.1} parent=71 // pred_region
          %447 = dma.done [#allocation9], 16
        $region88: #{tpu_custom_call.1} parent=71 // pred_fallthru
          _
        %p448 = scmp.lt.s32.totalorder %s30, 1
        %s449 = scalar_select %p448, %s30, 1
        %s450 = smul.addr %s449, 8
        %s451 = scalar_lea.vmem %s0, %s450
        %p452 = pneg %p51
        %p453 = pneg %p48
        %p454 = pneg %p72
        %p455 = pneg %p69
        %p456 = pneg %p93
        %p457 = pneg %p90
        %p458 = pneg %p114
        %p459 = pneg %p111
        %p460 = pneg %p135
        %p461 = pneg %p132
        %p462 = pneg %p156
        %p463 = pneg %p153
        %p464 = pneg %p177
        %p465 = pneg %p174
        %p466 = pneg %p198
        %p467 = pneg %p195
        %p468 = pneg %p219
        %p469 = pneg %p216
        %p470 = pneg %p240
        %p471 = pneg %p237
        %p472 = pneg %p261
        %p473 = pneg %p258
        %p474 = pneg %p282
        %p475 = pneg %p279
        %p476 = pneg %p303
        %p477 = pneg %p300
        %p478 = pneg %p329
        %p479 = pneg %p326
        %s480 = sand.u32 %s316, 1
        %s481 = scalar_lea.sflag [#allocation4], %s480
        %s482 = sand.u32 %s316, 1
        %s483 = smul.addr %s482, 8
        %s484 = scalar_lea.vmem [#allocation10], %s483
        %p485 = scmp.lt.s32.totalorder %s30, 1
        %s486 = scalar_select %p485, %s30, 1
        %s487 = smul.addr %s486, 8
        %s488 = scalar_lea.vmem %s0, %s487
        %v490 = vld [vmem:[%s488] sm:$0xff]
        %v491 = vld [vmem:[%s1] sm:$0x1]
        %v492 = vld [vmem:[%s2] sm:$0x1]
        %vm493 = vcmask 261120
        %v494 = vsel %vm493, %v490, 0.0
        %495 = vadd.xlane.f32.xlu0 %v494
        %v496 = vpop.xlane.xlu0 %495
        %v497 = vrcp.pop 32.0
        %v498 = vmul.f32 %v496, %v497
        %v499 = vsub.f32 %v490, %v498
        %v500 = vmul.f32 %v499, %v499
        %v501 = vsel %vm493, %v500, 0.0
        %502 = vadd.xlane.f32.xlu0 %v501
        %v503 = vpop.xlane.xlu0 %502
        %v504 = vmul.f32 %v503, %v497
        %v505 = vadd.f32 %v504, 1e-06
        %v506 = vrsqrt.pop %v505
        %v507 = vmul.f32 %v499, %v506
        %v509 = vlaneseq
        %v510 = vshrl.u32 %v509, 7
        %v511 = vsub.s32 0, %v510
        %v512 = vrot.slane %v491, %v511
        %v514 = vmul.f32 %v507, %v512
        %v516 = vlaneseq
        %v517 = vshrl.u32 %v516, 7
        %v518 = vsub.s32 0, %v517
        %v519 = vrot.slane %v492, %v518
        %v521 = vadd.f32 %v514, %v519
        %v522 = vpack.c.bf16 %v521, %v521
        %v523 = vld [vmem:[%s3] sm:$0xf]
        %v524 = vld [vmem:[%s3 + $0x4] sm:$0xf]
        %v525 = vld [vmem:[%s3 + $0x8] sm:$0xf]
        %v526 = vld [vmem:[%s3 + $0xc] sm:$0xf]
        %v527 = vld [vmem:[%s4] sm:$0x1]
        %v529 = vlaneseq
        %v530 = vshrl.u32 %v529, 7
        %v531 = vsub.s32 0, %v530
        %v532 = vrot.slane %v527, %v531
        %v538 = vunpack.c.l.b16 %v523
        %v539 = vunpack.c.l.b16 %v524
        %v540 = vunpack.c.l.b16 %v525
        %v541 = vunpack.c.l.b16 %v526
        %v542 = vpack.c.b16 %v539, %v538
        %v543 = vpack.c.b16 %v541, %v540
        %v547 = vsel %vm493, %v522, 0
        %549 = vmatprep.subr.bf16.mxu0 0
        %550 = vmatpush1.bf16.msra.mxu0 0
        %551 = vmatprep.subr.bf16.mxu0 0
        %552 = vmatpush1.bf16.msra.mxu0 0
        %553 = vmatprep.subr.bf16.mxu0 0
        %554 = vmatpush1.bf16.msra.mxu0 0
        %555 = vmatprep.subr.bf16.mxu0 0
        %556 = vmatpush1.bf16.msra.mxu0 0
        %557 = vmatprep.subr.bf16.mxu0 0
        %558 = vmatpush1.bf16.msra.mxu0 0
        %559 = vmatprep.subr.bf16.mxu0 0
        %560 = vmatpush1.bf16.msra.mxu0 0
        %561 = vmatprep.subr.bf16.mxu0 0
        %562 = vmatpush1.bf16.msra.mxu0 %v543
        %563 = vmatprep.subr.bf16.mxu0 0
        %564 = vmatpush1.bf16.msra.mxu0 %v542
        %565 = vmatprep.subr.bf16.mxu0 0
        %566 = vmatpush2.bf16.msra.mxu0 0
        %567 = vmatprep.subr.bf16.mxu0 0
        %568 = vmatpush2.bf16.msra.mxu0 0
        %569 = vmatprep.subr.bf16.mxu0 0
        %570 = vmatpush2.bf16.msra.mxu0 0
        %571 = vmatprep.subr.bf16.mxu0 0
        %572 = vmatpush2.bf16.msra.mxu0 0
        %573 = vmatprep.subr.bf16.mxu0 0
        %574 = vmatpush2.bf16.msra.mxu0 0
        %575 = vmatprep.subr.bf16.mxu0 0
        %576 = vmatpush2.bf16.msra.mxu0 0
        %577 = vmatprep.subr.bf16.mxu0 0
        %578 = vmatpush2.bf16.msra.mxu0 0
        %579 = vmatprep.subr.bf16.mxu0 0
        %580 = vmatpush2.bf16.msra.mxu0 0
        %581 = vmatprep.mubr.bf16.mxu0 0
        %582 = vmatmul.mubr.bf16.gmra.mxu0 %v547
        %v583 = vpop.f32.mrf.mxu0
        %v584 = vadd.f32 %v532, %v583
        %v585 = vpop.f32.mrf.mxu0
        %v586 = vpop.f32.mrf.mxu0
        %v587 = vpop.f32.mrf.mxu0
        %588 = vdwg.mxu0
        %590 = vrot.lane.b32.xlu0 %v584, 120
        %v591 = vpop.permute.xlu0 %590
        %593 = vrot.lane.b32.xlu0 %v584, 112
        %v594 = vpop.permute.xlu0 %593
        %596 = vrot.lane.b32.xlu0 %v584, 104
        %v597 = vpop.permute.xlu0 %596
        %v599 = vpack.c.bf16 %v584, %v584
        %v600 = vpack.c.bf16 %v591, %v591
        %v601 = vpack.c.bf16 %v594, %v594
        %v602 = vpack.c.bf16 %v597, %v597
        %604 = vrot.lane.b32.xlu0 %v599, 96
        %v605 = vpop.permute.xlu0 %604
        %vm606 = vcmask 64512
        %v608 = vsel %vm606, %v599, 0
        %v611 = vsel %vm606, %v605, 0
        %613 = vmatprep.subr.bf16.mxu0 0
        %614 = vmatpush1.bf16.xpose.msra.mxu0 0
        %615 = vmatprep.subr.bf16.mxu0 0
        %616 = vmatpush1.bf16.xpose.msra.mxu0 0
        %617 = vmatprep.subr.bf16.mxu0 0
        %618 = vmatpush1.bf16.xpose.msra.mxu0 0
        %619 = vmatprep.subr.bf16.mxu0 0
        %620 = vmatpush1.bf16.xpose.msra.mxu0 0
        %621 = vmatprep.subr.bf16.mxu0 0
        %622 = vmatpush1.bf16.xpose.msra.mxu0 0
        %623 = vmatprep.subr.bf16.mxu0 0
        %624 = vmatpush1.bf16.xpose.msra.mxu0 0
        %625 = vmatprep.subr.bf16.mxu0 0
        %626 = vmatpush1.bf16.xpose.msra.mxu0 0
        %627 = vmatprep.subr.bf16.mxu0 0
        %628 = vmatpush1.bf16.xpose.msra.mxu0 %v611
        %629 = vmatprep.subr.bf16.mxu0 0
        %630 = vmatpush2.bf16.xpose.msra.mxu0 0
        %631 = vmatprep.subr.bf16.mxu0 0
        %632 = vmatpush2.bf16.xpose.msra.mxu0 0
        %633 = vmatprep.subr.bf16.mxu0 0
        %634 = vmatpush2.bf16.xpose.msra.mxu0 0
        %635 = vmatprep.subr.bf16.mxu0 0
        %636 = vmatpush2.bf16.xpose.msra.mxu0 0
        %637 = vmatprep.subr.bf16.mxu0 0
        %638 = vmatpush2.bf16.xpose.msra.mxu0 0
        %639 = vmatprep.subr.bf16.mxu0 0
        %640 = vmatpush2.bf16.xpose.msra.mxu0 0
        %641 = vmatprep.subr.bf16.mxu0 0
        %642 = vmatpush2.bf16.xpose.msra.mxu0 0
        %643 = vmatprep.subr.bf16.mxu0 0
        %644 = vmatpush2.bf16.xpose.msra.mxu0 0
        %645 = vmatprep.mubr.bf16.mxu0 0
        %646 = vmatmul.mubr.bf16.gmra.mxu0 %v608
        %v647 = vpop.f32.mrf.mxu0
        %v648 = vadd.f32 0.0, %v647
        %v649 = vpop.f32.mrf.mxu0
        %v650 = vpop.f32.mrf.mxu0
        %v651 = vpop.f32.mrf.mxu0
        %652 = vdwg.mxu0
        %654 = vrot.lane.b32.xlu0 %v600, 96
        %v655 = vpop.permute.xlu0 %654
        %v657 = vsel %vm606, %v600, 0
        %v660 = vsel %vm606, %v655, 0
        %662 = vmatprep.subr.bf16.mxu0 0
        %663 = vmatpush1.bf16.xpose.msra.mxu0 0
        %664 = vmatprep.subr.bf16.mxu0 0
        %665 = vmatpush1.bf16.xpose.msra.mxu0 0
        %666 = vmatprep.subr.bf16.mxu0 0
        %667 = vmatpush1.bf16.xpose.msra.mxu0 0
        %668 = vmatprep.subr.bf16.mxu0 0
        %669 = vmatpush1.bf16.xpose.msra.mxu0 0
        %670 = vmatprep.subr.bf16.mxu0 0
        %671 = vmatpush1.bf16.xpose.msra.mxu0 0
        %672 = vmatprep.subr.bf16.mxu0 0
        %673 = vmatpush1.bf16.xpose.msra.mxu0 0
        %674 = vmatprep.subr.bf16.mxu0 0
        %675 = vmatpush1.bf16.xpose.msra.mxu0 0
        %676 = vmatprep.subr.bf16.mxu0 0
        %677 = vmatpush1.bf16.xpose.msra.mxu0 %v660
        %678 = vmatprep.subr.bf16.mxu0 0
        %679 = vmatpush2.bf16.xpose.msra.mxu0 0
        %680 = vmatprep.subr.bf16.mxu0 0
        %681 = vmatpush2.bf16.xpose.msra.mxu0 0
        %682 = vmatprep.subr.bf16.mxu0 0
        %683 = vmatpush2.bf16.xpose.msra.mxu0 0
        %684 = vmatprep.subr.bf16.mxu0 0
        %685 = vmatpush2.bf16.xpose.msra.mxu0 0
        %686 = vmatprep.subr.bf16.mxu0 0
        %687 = vmatpush2.bf16.xpose.msra.mxu0 0
        %688 = vmatprep.subr.bf16.mxu0 0
        %689 = vmatpush2.bf16.xpose.msra.mxu0 0
        %690 = vmatprep.subr.bf16.mxu0 0
        %691 = vmatpush2.bf16.xpose.msra.mxu0 0
        %692 = vmatprep.subr.bf16.mxu0 0
        %693 = vmatpush2.bf16.xpose.msra.mxu0 0
        %694 = vmatprep.mubr.bf16.mxu0 0
        %695 = vmatmul.mubr.bf16.gmra.mxu0 %v657
        %v696 = vpop.f32.mrf.mxu0
        %v697 = vadd.f32 0.0, %v696
        %v698 = vpop.f32.mrf.mxu0
        %v699 = vpop.f32.mrf.mxu0
        %v700 = vpop.f32.mrf.mxu0
        %701 = vdwg.mxu0
        %703 = vrot.lane.b32.xlu0 %v601, 96
        %v704 = vpop.permute.xlu0 %703
        %v706 = vsel %vm606, %v601, 0
        %v709 = vsel %vm606, %v704, 0
        %711 = vmatprep.subr.bf16.mxu0 0
        %712 = vmatpush1.bf16.xpose.msra.mxu0 0
        %713 = vmatprep.subr.bf16.mxu0 0
        %714 = vmatpush1.bf16.xpose.msra.mxu0 0
        %715 = vmatprep.subr.bf16.mxu0 0
        %716 = vmatpush1.bf16.xpose.msra.mxu0 0
        %717 = vmatprep.subr.bf16.mxu0 0
        %718 = vmatpush1.bf16.xpose.msra.mxu0 0
        %719 = vmatprep.subr.bf16.mxu0 0
        %720 = vmatpush1.bf16.xpose.msra.mxu0 0
        %721 = vmatprep.subr.bf16.mxu0 0
        %722 = vmatpush1.bf16.xpose.msra.mxu0 0
        %723 = vmatprep.subr.bf16.mxu0 0
        %724 = vmatpush1.bf16.xpose.msra.mxu0 0
        %725 = vmatprep.subr.bf16.mxu0 0
        %726 = vmatpush1.bf16.xpose.msra.mxu0 %v709
        %727 = vmatprep.subr.bf16.mxu0 0
        %728 = vmatpush2.bf16.xpose.msra.mxu0 0
        %729 = vmatprep.subr.bf16.mxu0 0
        %730 = vmatpush2.bf16.xpose.msra.mxu0 0
        %731 = vmatprep.subr.bf16.mxu0 0
        %732 = vmatpush2.bf16.xpose.msra.mxu0 0
        %733 = vmatprep.subr.bf16.mxu0 0
        %734 = vmatpush2.bf16.xpose.msra.mxu0 0
        %735 = vmatprep.subr.bf16.mxu0 0
        %736 = vmatpush2.bf16.xpose.msra.mxu0 0
        %737 = vmatprep.subr.bf16.mxu0 0
        %738 = vmatpush2.bf16.xpose.msra.mxu0 0
        %739 = vmatprep.subr.bf16.mxu0 0
        %740 = vmatpush2.bf16.xpose.msra.mxu0 0
        %741 = vmatprep.subr.bf16.mxu0 0
        %742 = vmatpush2.bf16.xpose.msra.mxu0 0
        %743 = vmatprep.mubr.bf16.mxu0 0
        %744 = vmatmul.mubr.bf16.gmra.mxu0 %v706
        %v745 = vpop.f32.mrf.mxu0
        %v746 = vadd.f32 0.0, %v745
        %v747 = vpop.f32.mrf.mxu0
        %v748 = vpop.f32.mrf.mxu0
        %v749 = vpop.f32.mrf.mxu0
        %750 = vdwg.mxu0
        %752 = vrot.lane.b32.xlu0 %v602, 96
        %v753 = vpop.permute.xlu0 %752
        %v755 = vsel %vm606, %v602, 0
        %v758 = vsel %vm606, %v753, 0
        %760 = vmatprep.subr.bf16.mxu0 0
        %761 = vmatpush1.bf16.xpose.msra.mxu0 0
        %762 = vmatprep.subr.bf16.mxu0 0
        %763 = vmatpush1.bf16.xpose.msra.mxu0 0
        %764 = vmatprep.subr.bf16.mxu0 0
        %765 = vmatpush1.bf16.xpose.msra.mxu0 0
        %766 = vmatprep.subr.bf16.mxu0 0
        %767 = vmatpush1.bf16.xpose.msra.mxu0 0
        %768 = vmatprep.subr.bf16.mxu0 0
        %769 = vmatpush1.bf16.xpose.msra.mxu0 0
        %770 = vmatprep.subr.bf16.mxu0 0
        %771 = vmatpush1.bf16.xpose.msra.mxu0 0
        %772 = vmatprep.subr.bf16.mxu0 0
        %773 = vmatpush1.bf16.xpose.msra.mxu0 0
        %774 = vmatprep.subr.bf16.mxu0 0
        %775 = vmatpush1.bf16.xpose.msra.mxu0 %v758
        %776 = vmatprep.subr.bf16.mxu0 0
        %777 = vmatpush2.bf16.xpose.msra.mxu0 0
        %778 = vmatprep.subr.bf16.mxu0 0
        %779 = vmatpush2.bf16.xpose.msra.mxu0 0
        %780 = vmatprep.subr.bf16.mxu0 0
        %781 = vmatpush2.bf16.xpose.msra.mxu0 0
        %782 = vmatprep.subr.bf16.mxu0 0
        %783 = vmatpush2.bf16.xpose.msra.mxu0 0
        %784 = vmatprep.subr.bf16.mxu0 0
        %785 = vmatpush2.bf16.xpose.msra.mxu0 0
        %786 = vmatprep.subr.bf16.mxu0 0
        %787 = vmatpush2.bf16.xpose.msra.mxu0 0
        %788 = vmatprep.subr.bf16.mxu0 0
        %789 = vmatpush2.bf16.xpose.msra.mxu0 0
        %790 = vmatprep.subr.bf16.mxu0 0
        %791 = vmatpush2.bf16.xpose.msra.mxu0 0
        %792 = vmatprep.mubr.bf16.mxu0 0
        %793 = vmatmul.mubr.bf16.gmra.mxu0 %v755
        %v794 = vpop.f32.mrf.mxu0
        %v795 = vadd.f32 0.0, %v794
        %v796 = vpop.f32.mrf.mxu0
        %v797 = vpop.f32.mrf.mxu0
        %v798 = vpop.f32.mrf.mxu0
        %799 = vdwg.mxu0
        %v800 = vsel %vm606, %v648, -inf
        %801 = vmax.xlane.f32.xlu0 %v800
        %v802 = vpop.xlane.xlu0 %801
        %v803 = vsel %vm606, %v697, -inf
        %804 = vmax.xlane.f32.xlu0 %v803
        %v805 = vpop.xlane.xlu0 %804
        %v806 = vsel %vm606, %v746, -inf
        %807 = vmax.xlane.f32.xlu0 %v806
        %v808 = vpop.xlane.xlu0 %807
        %v809 = vsel %vm606, %v795, -inf
        %810 = vmax.xlane.f32.xlu0 %v809
        %v811 = vpop.xlane.xlu0 %810
        %v812 = vsub.f32 %v648, %v802
        %v813 = vsub.f32 %v697, %v805
        %v814 = vsub.f32 %v746, %v808
        %v815 = vsub.f32 %v795, %v811
        %v816 = vmul.f32 %v812, 1.442695
        %v817 = vpow.pop %v816
        %v818 = vmul.f32 %v813, 1.442695
        %v819 = vpow.pop %v818
        %v820 = vmul.f32 %v814, 1.442695
        %v821 = vpow.pop %v820
        %v822 = vmul.f32 %v815, 1.442695
        %v823 = vpow.pop %v822
        %v824 = vsel %vm606, %v817, 0.0
        %825 = vadd.xlane.f32.xlu0 %v824
        %v826 = vpop.xlane.xlu0 %825
        %v827 = vsel %vm606, %v819, 0.0
        %828 = vadd.xlane.f32.xlu0 %v827
        %v829 = vpop.xlane.xlu0 %828
        %v830 = vsel %vm606, %v821, 0.0
        %831 = vadd.xlane.f32.xlu0 %v830
        %v832 = vpop.xlane.xlu0 %831
        %v833 = vsel %vm606, %v823, 0.0
        %834 = vadd.xlane.f32.xlu0 %v833
        %v835 = vpop.xlane.xlu0 %834
        %v836 = vpack.c.bf16 %v817, %v817
        %v837 = vpack.c.bf16 %v819, %v819
        %v838 = vpack.c.bf16 %v821, %v821
        %v839 = vpack.c.bf16 %v823, %v823
        %840 = vrot.lane.b32.xlu0 %v599, 64
        %v841 = vpop.permute.xlu0 %840
        %v843 = vsel %vm606, %v836, 0
        %vm845 = vcmask 1043456
        %v847 = vsel %vm845, %v841, 0
        %849 = vmatprep.subr.bf16.mxu0 0
        %850 = vmatpush1.bf16.msra.mxu0 0
        %851 = vmatprep.subr.bf16.mxu0 0
        %852 = vmatpush1.bf16.msra.mxu0 0
        %853 = vmatprep.subr.bf16.mxu0 0
        %854 = vmatpush1.bf16.msra.mxu0 0
        %855 = vmatprep.subr.bf16.mxu0 0
        %856 = vmatpush1.bf16.msra.mxu0 0
        %857 = vmatprep.subr.bf16.mxu0 0
        %858 = vmatpush1.bf16.msra.mxu0 0
        %859 = vmatprep.subr.bf16.mxu0 0
        %860 = vmatpush1.bf16.msra.mxu0 0
        %861 = vmatprep.subr.bf16.mxu0 0
        %862 = vmatpush1.bf16.msra.mxu0 0
        %863 = vmatprep.subr.bf16.mxu0 0
        %864 = vmatpush1.bf16.msra.mxu0 %v847
        %865 = vmatprep.subr.bf16.mxu0 0
        %866 = vmatpush2.bf16.msra.mxu0 0
        %867 = vmatprep.subr.bf16.mxu0 0
        %868 = vmatpush2.bf16.msra.mxu0 0
        %869 = vmatprep.subr.bf16.mxu0 0
        %870 = vmatpush2.bf16.msra.mxu0 0
        %871 = vmatprep.subr.bf16.mxu0 0
        %872 = vmatpush2.bf16.msra.mxu0 0
        %873 = vmatprep.subr.bf16.mxu0 0
        %874 = vmatpush2.bf16.msra.mxu0 0
        %875 = vmatprep.subr.bf16.mxu0 0
        %876 = vmatpush2.bf16.msra.mxu0 0
        %877 = vmatprep.subr.bf16.mxu0 0
        %878 = vmatpush2.bf16.msra.mxu0 0
        %879 = vmatprep.subr.bf16.mxu0 0
        %880 = vmatpush2.bf16.msra.mxu0 0
        %881 = vmatprep.mubr.bf16.mxu0 0
        %882 = vmatmul.mubr.bf16.gmra.mxu0 %v843
        %v883 = vpop.f32.mrf.mxu0
        %v884 = vadd.f32 0.0, %v883
        %v885 = vpop.f32.mrf.mxu0
        %v886 = vpop.f32.mrf.mxu0
        %v887 = vpop.f32.mrf.mxu0
        %888 = vdwg.mxu0
        %889 = vrot.lane.b32.xlu0 %v600, 64
        %v890 = vpop.permute.xlu0 %889
        %v892 = vsel %vm606, %v837, 0
        %v895 = vsel %vm845, %v890, 0
        %897 = vmatprep.subr.bf16.mxu0 0
        %898 = vmatpush1.bf16.msra.mxu0 0
        %899 = vmatprep.subr.bf16.mxu0 0
        %900 = vmatpush1.bf16.msra.mxu0 0
        %901 = vmatprep.subr.bf16.mxu0 0
        %902 = vmatpush1.bf16.msra.mxu0 0
        %903 = vmatprep.subr.bf16.mxu0 0
        %904 = vmatpush1.bf16.msra.mxu0 0
        %905 = vmatprep.subr.bf16.mxu0 0
        %906 = vmatpush1.bf16.msra.mxu0 0
        %907 = vmatprep.subr.bf16.mxu0 0
        %908 = vmatpush1.bf16.msra.mxu0 0
        %909 = vmatprep.subr.bf16.mxu0 0
        %910 = vmatpush1.bf16.msra.mxu0 0
        %911 = vmatprep.subr.bf16.mxu0 0
        %912 = vmatpush1.bf16.msra.mxu0 %v895
        %913 = vmatprep.subr.bf16.mxu0 0
        %914 = vmatpush2.bf16.msra.mxu0 0
        %915 = vmatprep.subr.bf16.mxu0 0
        %916 = vmatpush2.bf16.msra.mxu0 0
        %917 = vmatprep.subr.bf16.mxu0 0
        %918 = vmatpush2.bf16.msra.mxu0 0
        %919 = vmatprep.subr.bf16.mxu0 0
        %920 = vmatpush2.bf16.msra.mxu0 0
        %921 = vmatprep.subr.bf16.mxu0 0
        %922 = vmatpush2.bf16.msra.mxu0 0
        %923 = vmatprep.subr.bf16.mxu0 0
        %924 = vmatpush2.bf16.msra.mxu0 0
        %925 = vmatprep.subr.bf16.mxu0 0
        %926 = vmatpush2.bf16.msra.mxu0 0
        %927 = vmatprep.subr.bf16.mxu0 0
        %928 = vmatpush2.bf16.msra.mxu0 0
        %929 = vmatprep.mubr.bf16.mxu0 0
        %930 = vmatmul.mubr.bf16.gmra.mxu0 %v892
        %v931 = vpop.f32.mrf.mxu0
        %v932 = vadd.f32 0.0, %v931
        %v933 = vpop.f32.mrf.mxu0
        %v934 = vpop.f32.mrf.mxu0
        %v935 = vpop.f32.mrf.mxu0
        %936 = vdwg.mxu0
        %937 = vrot.lane.b32.xlu0 %v601, 64
        %v938 = vpop.permute.xlu0 %937
        %v940 = vsel %vm606, %v838, 0
        %v943 = vsel %vm845, %v938, 0
        %945 = vmatprep.subr.bf16.mxu0 0
        %946 = vmatpush1.bf16.msra.mxu0 0
        %947 = vmatprep.subr.bf16.mxu0 0
        %948 = vmatpush1.bf16.msra.mxu0 0
        %949 = vmatprep.subr.bf16.mxu0 0
        %950 = vmatpush1.bf16.msra.mxu0 0
        %951 = vmatprep.subr.bf16.mxu0 0
        %952 = vmatpush1.bf16.msra.mxu0 0
        %953 = vmatprep.subr.bf16.mxu0 0
        %954 = vmatpush1.bf16.msra.mxu0 0
        %955 = vmatprep.subr.bf16.mxu0 0
        %956 = vmatpush1.bf16.msra.mxu0 0
        %957 = vmatprep.subr.bf16.mxu0 0
        %958 = vmatpush1.bf16.msra.mxu0 0
        %959 = vmatprep.subr.bf16.mxu0 0
        %960 = vmatpush1.bf16.msra.mxu0 %v943
        %961 = vmatprep.subr.bf16.mxu0 0
        %962 = vmatpush2.bf16.msra.mxu0 0
        %963 = vmatprep.subr.bf16.mxu0 0
        %964 = vmatpush2.bf16.msra.mxu0 0
        %965 = vmatprep.subr.bf16.mxu0 0
        %966 = vmatpush2.bf16.msra.mxu0 0
        %967 = vmatprep.subr.bf16.mxu0 0
        %968 = vmatpush2.bf16.msra.mxu0 0
        %969 = vmatprep.subr.bf16.mxu0 0
        %970 = vmatpush2.bf16.msra.mxu0 0
        %971 = vmatprep.subr.bf16.mxu0 0
        %972 = vmatpush2.bf16.msra.mxu0 0
        %973 = vmatprep.subr.bf16.mxu0 0
        %974 = vmatpush2.bf16.msra.mxu0 0
        %975 = vmatprep.subr.bf16.mxu0 0
        %976 = vmatpush2.bf16.msra.mxu0 0
        %977 = vmatprep.mubr.bf16.mxu0 0
        %978 = vmatmul.mubr.bf16.gmra.mxu0 %v940
        %v979 = vpop.f32.mrf.mxu0
        %v980 = vadd.f32 0.0, %v979
        %v981 = vpop.f32.mrf.mxu0
        %v982 = vpop.f32.mrf.mxu0
        %v983 = vpop.f32.mrf.mxu0
        %984 = vdwg.mxu0
        %985 = vrot.lane.b32.xlu0 %v602, 64
        %v986 = vpop.permute.xlu0 %985
        %v988 = vsel %vm606, %v839, 0
        %v991 = vsel %vm845, %v986, 0
        %993 = vmatprep.subr.bf16.mxu0 0
        %994 = vmatpush1.bf16.msra.mxu0 0
        %995 = vmatprep.subr.bf16.mxu0 0
        %996 = vmatpush1.bf16.msra.mxu0 0
        %997 = vmatprep.subr.bf16.mxu0 0
        %998 = vmatpush1.bf16.msra.mxu0 0
        %999 = vmatprep.subr.bf16.mxu0 0
        %1000 = vmatpush1.bf16.msra.mxu0 0
        %1001 = vmatprep.subr.bf16.mxu0 0
        %1002 = vmatpush1.bf16.msra.mxu0 0
        %1003 = vmatprep.subr.bf16.mxu0 0
        %1004 = vmatpush1.bf16.msra.mxu0 0
        %1005 = vmatprep.subr.bf16.mxu0 0
        %1006 = vmatpush1.bf16.msra.mxu0 0
        %1007 = vmatprep.subr.bf16.mxu0 0
        %1008 = vmatpush1.bf16.msra.mxu0 %v991
        %1009 = vmatprep.subr.bf16.mxu0 0
        %1010 = vmatpush2.bf16.msra.mxu0 0
        %1011 = vmatprep.subr.bf16.mxu0 0
        %1012 = vmatpush2.bf16.msra.mxu0 0
        %1013 = vmatprep.subr.bf16.mxu0 0
        %1014 = vmatpush2.bf16.msra.mxu0 0
        %1015 = vmatprep.subr.bf16.mxu0 0
        %1016 = vmatpush2.bf16.msra.mxu0 0
        %1017 = vmatprep.subr.bf16.mxu0 0
        %1018 = vmatpush2.bf16.msra.mxu0 0
        %1019 = vmatprep.subr.bf16.mxu0 0
        %1020 = vmatpush2.bf16.msra.mxu0 0
        %1021 = vmatprep.subr.bf16.mxu0 0
        %1022 = vmatpush2.bf16.msra.mxu0 0
        %1023 = vmatprep.subr.bf16.mxu0 0
        %1024 = vmatpush2.bf16.msra.mxu0 0
        %1025 = vmatprep.mubr.bf16.mxu0 0
        %1026 = vmatmul.mubr.bf16.gmra.mxu0 %v988
        %v1027 = vpop.f32.mrf.mxu0
        %v1028 = vadd.f32 0.0, %v1027
        %v1029 = vpop.f32.mrf.mxu0
        %v1030 = vpop.f32.mrf.mxu0
        %v1031 = vpop.f32.mrf.mxu0
        %1032 = vdwg.mxu0
        %v1033 = vrcp.pop %v826
        %v1034 = vrcp.pop %v829
        %v1035 = vrcp.pop %v832
        %v1036 = vrcp.pop %v835
        %v1037 = vmul.f32 %v884, %v1033
        %v1038 = vmul.f32 %v932, %v1034
        %v1039 = vmul.f32 %v980, %v1035
        %v1040 = vmul.f32 %v1028, %v1036
        %1042 = vrot.lane.b32.xlu0 %v1038, 8
        %v1043 = vpop.permute.xlu0 %1042
        %1046 = vrot.lane.b32.xlu0 %v1039, 16
        %v1047 = vpop.permute.xlu0 %1046
        %1050 = vrot.lane.b32.xlu0 %v1040, 24
        %v1051 = vpop.permute.xlu0 %1050
        %v1053 = vsel %vm606, %v1037, %v1043
        %vm1054 = vcmask 130048
        %v1055 = vsel %vm1054, %v1053, %v1047
        %vm1056 = vcmask 195584
        %v1057 = vsel %vm1056, %v1055, %v1051
        %v1058 = vpack.c.bf16 %v1057, %v1057
        %v1059 = vld [vmem:[%s5] sm:$0xf]
        %v1060 = vld [vmem:[%s5 + $0x4] sm:$0xf]
        %v1061 = vld [vmem:[%s5 + $0x8] sm:$0xf]
        %v1062 = vld [vmem:[%s5 + $0xc] sm:$0xf]
        %v1063 = vld [vmem:[%s6] sm:$0x1]
        %v1065 = vlaneseq
        %v1066 = vshrl.u32 %v1065, 7
        %v1067 = vsub.s32 0, %v1066
        %v1068 = vrot.slane %v1063, %v1067
        %v1074 = vunpack.c.l.b16 %v1059
        %v1075 = vunpack.c.l.b16 %v1060
        %v1076 = vunpack.c.l.b16 %v1061
        %v1077 = vunpack.c.l.b16 %v1062
        %v1078 = vpack.c.b16 %v1075, %v1074
        %v1079 = vpack.c.b16 %v1077, %v1076
        %v1083 = vsel %vm493, %v1058, 0
        %1085 = vmatprep.subr.bf16.mxu0 0
        %1086 = vmatpush1.bf16.msra.mxu0 0
        %1087 = vmatprep.subr.bf16.mxu0 0
        %1088 = vmatpush1.bf16.msra.mxu0 0
        %1089 = vmatprep.subr.bf16.mxu0 0
        %1090 = vmatpush1.bf16.msra.mxu0 0
        %1091 = vmatprep.subr.bf16.mxu0 0
        %1092 = vmatpush1.bf16.msra.mxu0 0
        %1093 = vmatprep.subr.bf16.mxu0 0
        %1094 = vmatpush1.bf16.msra.mxu0 0
        %1095 = vmatprep.subr.bf16.mxu0 0
        %1096 = vmatpush1.bf16.msra.mxu0 0
        %1097 = vmatprep.subr.bf16.mxu0 0
        %1098 = vmatpush1.bf16.msra.mxu0 %v1079
        %1099 = vmatprep.subr.bf16.mxu0 0
        %1100 = vmatpush1.bf16.msra.mxu0 %v1078
        %1101 = vmatprep.subr.bf16.mxu0 0
        %1102 = vmatpush2.bf16.msra.mxu0 0
        %1103 = vmatprep.subr.bf16.mxu0 0
        %1104 = vmatpush2.bf16.msra.mxu0 0
        %1105 = vmatprep.subr.bf16.mxu0 0
        %1106 = vmatpush2.bf16.msra.mxu0 0
        %1107 = vmatprep.subr.bf16.mxu0 0
        %1108 = vmatpush2.bf16.msra.mxu0 0
        %1109 = vmatprep.subr.bf16.mxu0 0
        %1110 = vmatpush2.bf16.msra.mxu0 0
        %1111 = vmatprep.subr.bf16.mxu0 0
        %1112 = vmatpush2.bf16.msra.mxu0 0
        %1113 = vmatprep.subr.bf16.mxu0 0
        %1114 = vmatpush2.bf16.msra.mxu0 0
        %1115 = vmatprep.subr.bf16.mxu0 0
        %1116 = vmatpush2.bf16.msra.mxu0 0
        %1117 = vmatprep.mubr.bf16.mxu0 0
        %1118 = vmatmul.mubr.bf16.gmra.mxu0 %v1083
        %v1119 = vpop.f32.mrf.mxu0
        %v1120 = vadd.f32 %v1068, %v1119
        %v1121 = vpop.f32.mrf.mxu0
        %v1122 = vpop.f32.mrf.mxu0
        %v1123 = vpop.f32.mrf.mxu0
        %1124 = vdwg.mxu0
        %v1125 = vadd.f32 %v490, %v1120
        %v1126 = vld [vmem:[#allocation2] sm:$0x1]
        %v1127 = vld [vmem:[#allocation5] sm:$0x1]
        %v1128 = vsel %vm493, %v1125, 0.0
        %1129 = vadd.xlane.f32.xlu0 %v1128
        %v1130 = vpop.xlane.xlu0 %1129
        %v1131 = vmul.f32 %v1130, %v497
        %v1132 = vsub.f32 %v1125, %v1131
        %v1133 = vmul.f32 %v1132, %v1132
        %v1134 = vsel %vm493, %v1133, 0.0
        %1135 = vadd.xlane.f32.xlu0 %v1134
        %v1136 = vpop.xlane.xlu0 %1135
        %v1137 = vmul.f32 %v1136, %v497
        %v1138 = vadd.f32 %v1137, 1e-06
        %v1139 = vrsqrt.pop %v1138
        %v1140 = vmul.f32 %v1132, %v1139
        %v1142 = vlaneseq
        %v1143 = vshrl.u32 %v1142, 7
        %v1144 = vsub.s32 0, %v1143
        %v1145 = vrot.slane %v1126, %v1144
        %v1147 = vmul.f32 %v1140, %v1145
        %v1149 = vlaneseq
        %v1150 = vshrl.u32 %v1149, 7
        %v1151 = vsub.s32 0, %v1150
        %v1152 = vrot.slane %v1127, %v1151
        %v1154 = vadd.f32 %v1147, %v1152
        %v1155 = vpack.c.bf16 %v1154, %v1154
        %v1156 = vld [vmem:[#allocation7] sm:$0xf]
        %v1157 = vld [vmem:[#allocation7 + $0x4] sm:$0xf]
        %v1158 = vld [vmem:[#allocation7 + $0x8] sm:$0xf]
        %v1159 = vld [vmem:[#allocation7 + $0xc] sm:$0xf]
        %v1160 = vld [vmem:[#allocation8] sm:$0x1]
        %v1162 = vlaneseq
        %v1163 = vshrl.u32 %v1162, 7
        %v1164 = vsub.s32 0, %v1163
        %v1165 = vrot.slane %v1160, %v1164
        %v1171 = vunpack.c.l.b16 %v1156
        %v1172 = vunpack.c.l.b16 %v1157
        %v1173 = vunpack.c.l.b16 %v1158
        %v1174 = vunpack.c.l.b16 %v1159
        %v1175 = vpack.c.b16 %v1172, %v1171
        %v1176 = vpack.c.b16 %v1174, %v1173
        %v1180 = vsel %vm493, %v1155, 0
        %1182 = vmatprep.subr.bf16.mxu0 0
        %1183 = vmatpush1.bf16.msra.mxu0 0
        %1184 = vmatprep.subr.bf16.mxu0 0
        %1185 = vmatpush1.bf16.msra.mxu0 0
        %1186 = vmatprep.subr.bf16.mxu0 0
        %1187 = vmatpush1.bf16.msra.mxu0 0
        %1188 = vmatprep.subr.bf16.mxu0 0
        %1189 = vmatpush1.bf16.msra.mxu0 0
        %1190 = vmatprep.subr.bf16.mxu0 0
        %1191 = vmatpush1.bf16.msra.mxu0 0
        %1192 = vmatprep.subr.bf16.mxu0 0
        %1193 = vmatpush1.bf16.msra.mxu0 0
        %1194 = vmatprep.subr.bf16.mxu0 0
        %1195 = vmatpush1.bf16.msra.mxu0 %v1176
        %1196 = vmatprep.subr.bf16.mxu0 0
        %1197 = vmatpush1.bf16.msra.mxu0 %v1175
        %1198 = vmatprep.subr.bf16.mxu0 0
        %1199 = vmatpush2.bf16.msra.mxu0 0
        %1200 = vmatprep.subr.bf16.mxu0 0
        %1201 = vmatpush2.bf16.msra.mxu0 0
        %1202 = vmatprep.subr.bf16.mxu0 0
        %1203 = vmatpush2.bf16.msra.mxu0 0
        %1204 = vmatprep.subr.bf16.mxu0 0
        %1205 = vmatpush2.bf16.msra.mxu0 0
        %1206 = vmatprep.subr.bf16.mxu0 0
        %1207 = vmatpush2.bf16.msra.mxu0 0
        %1208 = vmatprep.subr.bf16.mxu0 0
        %1209 = vmatpush2.bf16.msra.mxu0 0
        %1210 = vmatprep.subr.bf16.mxu0 0
        %1211 = vmatpush2.bf16.msra.mxu0 0
        %1212 = vmatprep.subr.bf16.mxu0 0
        %1213 = vmatpush2.bf16.msra.mxu0 0
        %1214 = vmatprep.mubr.bf16.mxu0 0
        %1215 = vmatmul.mubr.bf16.gmra.mxu0 %v1180
        %v1216 = vpop.f32.mrf.mxu0
        %v1217 = vadd.f32 %v1165, %v1216
        %v1218 = vpop.f32.mrf.mxu0
        %v1219 = vpop.f32.mrf.mxu0
        %v1220 = vpop.f32.mrf.mxu0
        %1221 = vdwg.mxu0
        %v1222 = vmul.f32 %v1217, 0.5
        %v1223 = vmul.f32 %v1217, 0.70710677
        %v1224 = verf.f32.pop %v1223
        %v1225 = vadd.f32 %v1224, 1.0
        %v1226 = vmul.f32 %v1222, %v1225
        %v1227 = vpack.c.bf16 %v1226, %v1226
        %v1228 = vld [vmem:[%s11] sm:$0xf]
        %v1229 = vld [vmem:[%s11 + $0x4] sm:$0xf]
        %v1230 = vld [vmem:[%s11 + $0x8] sm:$0xf]
        %v1231 = vld [vmem:[%s11 + $0xc] sm:$0xf]
        %v1232 = vld [vmem:[%s11 + $0x10] sm:$0xf]
        %v1233 = vld [vmem:[%s11 + $0x14] sm:$0xf]
        %v1234 = vld [vmem:[%s11 + $0x18] sm:$0xf]
        %v1235 = vld [vmem:[%s11 + $0x1c] sm:$0xf]
        %v1236 = vld [vmem:[%s12] sm:$0x1]
        %v1238 = vlaneseq
        %v1239 = vshrl.u32 %v1238, 7
        %v1240 = vsub.s32 0, %v1239
        %v1241 = vrot.slane %v1236, %v1240
        %v1251 = vunpack.c.l.b16 %v1228
        %v1252 = vunpack.c.l.b16 %v1229
        %v1253 = vunpack.c.l.b16 %v1230
        %v1254 = vunpack.c.l.b16 %v1231
        %v1255 = vunpack.c.l.b16 %v1232
        %v1256 = vunpack.c.l.b16 %v1233
        %v1257 = vunpack.c.l.b16 %v1234
        %v1258 = vunpack.c.l.b16 %v1235
        %v1259 = vpack.c.b16 %v1252, %v1251
        %v1260 = vpack.c.b16 %v1254, %v1253
        %v1261 = vpack.c.b16 %v1256, %v1255
        %v1262 = vpack.c.b16 %v1258, %v1257
        %vm1267 = vcmask 523264
        %v1269 = vsel %vm1267, %v1227, 0
        %1271 = vmatprep.subr.bf16.mxu0 0
        %1272 = vmatpush1.bf16.msra.mxu0 0
        %1273 = vmatprep.subr.bf16.mxu0 0
        %1274 = vmatpush1.bf16.msra.mxu0 0
        %1275 = vmatprep.subr.bf16.mxu0 0
        %1276 = vmatpush1.bf16.msra.mxu0 0
        %1277 = vmatprep.subr.bf16.mxu0 0
        %1278 = vmatpush1.bf16.msra.mxu0 0
        %1279 = vmatprep.subr.bf16.mxu0 0
        %1280 = vmatpush1.bf16.msra.mxu0 %v1262
        %1281 = vmatprep.subr.bf16.mxu0 0
        %1282 = vmatpush1.bf16.msra.mxu0 %v1261
        %1283 = vmatprep.subr.bf16.mxu0 0
        %1284 = vmatpush1.bf16.msra.mxu0 %v1260
        %1285 = vmatprep.subr.bf16.mxu0 0
        %1286 = vmatpush1.bf16.msra.mxu0 %v1259
        %1287 = vmatprep.subr.bf16.mxu0 0
        %1288 = vmatpush2.bf16.msra.mxu0 0
        %1289 = vmatprep.subr.bf16.mxu0 0
        %1290 = vmatpush2.bf16.msra.mxu0 0
        %1291 = vmatprep.subr.bf16.mxu0 0
        %1292 = vmatpush2.bf16.msra.mxu0 0
        %1293 = vmatprep.subr.bf16.mxu0 0
        %1294 = vmatpush2.bf16.msra.mxu0 0
        %1295 = vmatprep.subr.bf16.mxu0 0
        %1296 = vmatpush2.bf16.msra.mxu0 0
        %1297 = vmatprep.subr.bf16.mxu0 0
        %1298 = vmatpush2.bf16.msra.mxu0 0
        %1299 = vmatprep.subr.bf16.mxu0 0
        %1300 = vmatpush2.bf16.msra.mxu0 0
        %1301 = vmatprep.subr.bf16.mxu0 0
        %1302 = vmatpush2.bf16.msra.mxu0 0
        %1303 = vmatprep.mubr.bf16.mxu0 0
        %1304 = vmatmul.mubr.bf16.gmra.mxu0 %v1269
        %v1305 = vpop.f32.mrf.mxu0
        %v1306 = vadd.f32 %v1241, %v1305
        %v1307 = vpop.f32.mrf.mxu0
        %v1308 = vpop.f32.mrf.mxu0
        %v1309 = vpop.f32.mrf.mxu0
        %1310 = vdwg.mxu0
        %v1311 = vadd.f32 %v1125, %v1306
        %1312 = vst.msk [vmem:[%s484] sm:$0xff] %vm493, %v1311
        %s1313 = sand.u32 %s316, 1
        %s1314 = scalar_lea.sflag [#allocation4], %s1313
        %s1315 = sand.u32 %s316, 1
        %s1316 = smul.addr %s1315, 8
        %s1317 = scalar_lea.vmem [#allocation10], %s1316
        // Predicated region
        $region89: #{tpu_custom_call.1} parent=71 // pred_check
          %p1318 = pneg %p326
        $region90: #{tpu_custom_call.1} parent=71 // pred_check_branch
          %1320 = sbr.rel (%p1318) target = $region92
        $region91: #{tpu_custom_call.1} parent=71 // pred_region
          %s1322 = ssub.s32 128, 128
          %1323 = vsyncadd %s1314, %s1322
          %s1324 = smul.addr %s30, 128
          %s1325 = scalar_lea.hbm %s13, %s1324
          %s1327 = sshll.u32 %s1317, 4
          %s1328 = int_to_ptr.vmem [resolvable:$true] %s1327
          %1330 = dma.vmem_to_hbm [thread:$0]  %s1328, 128, %s1325, %s1314
        $region92: #{tpu_custom_call.1} parent=71 // pred_fallthru
          _
      $region72: #{tpu_custom_call.1} parent=5 // pred_fallthru
        _
      %p1331 = scmp.le.s32.totalorder 2, %s25
      // Predicated region
      $region93: #{tpu_custom_call.1} parent=5 // pred_check
        %p1332 = pneg %p1331
      $region94: #{tpu_custom_call.1} parent=5 // pred_check_branch
        %1334 = sbr.rel (%p1332) target = $region96
      $region95: #{tpu_custom_call.1} parent=5 // pred_region
        %s1335 = ssub.s32 %s25, 2
        // Predicated region
        $region97: #{tpu_custom_call.1} parent=95 // pred_check
          %p1336 = pneg %p332
        $region98: #{tpu_custom_call.1} parent=95 // pred_check_branch
          %1338 = sbr.rel (%p1336) target = $region100
        $region99: #{tpu_custom_call.1} parent=95 // pred_region
          %s1339 = sand.u32 %s317, 1
          %s1340 = scalar_lea.sflag [#allocation4], %s1339
          %s1341 = sand.u32 %s317, 1
          %s1342 = smul.addr %s1341, 8
          %s1343 = scalar_lea.vmem [#allocation10], %s1342
          %1344 = dma.done %s1340, 128
        $region100: #{tpu_custom_call.1} parent=95 // pred_fallthru
          _
      $region96: #{tpu_custom_call.1} parent=5 // pred_fallthru
        _
    $region6: #{tpu_custom_call.1} parent=1 // loop_footer
      %s29 = sadd.s32 1, %s25
    $region7: #{tpu_custom_call.1} parent=1 // loop_footer_branch
      %24 = sbr.rel target = $region3
    $region8: #{tpu_custom_call.1} parent=1 // loop_exit
      _
    %1345 = vsyncpa [#allocation3], 1
    %s1346 = scalar_lea.sflag [#allocation3], 1
    %1347 = vsyncpa %s1346, 1
    %1348 = vsyncpa [#allocation6], 1
    %1349 = vsyncpa [#allocation9], 1
    %1350 = vsyncpa [#allocation4], 1
    %s1351 = scalar_lea.sflag [#allocation4], 1
    %1352 = vsyncpa %s1351, 1

</llo_original>
